<compile_context>
chip_gen: v7x
topology: tpu7x:2x2x1
jax: 0.10.0
libtpu: 0.0.40
codegen_flags: <defaults>
</compile_context>

<pallas_src>
import jax
import jax.numpy as jnp
import numpy as np
from jax.experimental import pallas as pl
from jax.experimental.pallas import tpu as pltpu


def plastic_lstm_seq_kernel(xproj_ref, h0_ref, c0_ref, hebb0_ref,
                            whr_ref, alpha_ref, wmod_ref, wfan_ref, bfan_ref,
                            bmod_ref,
                            hseq_ref, cfin_ref, hebbout_ref,
                            h_sc, c_sc):
    t = pl.program_id(1)
    H = h_sc.shape[1]

    # t == 0: load initial recurrent state for this batch tile. h/c live in
    # VMEM scratch; hebb lives in the revisited output block so it stays
    # VMEM-resident across all T steps (HBM touched once per tile each way).
    @pl.when(t == 0)
    def _():
        h_sc[...] = h0_ref[...]
        c_sc[...] = c0_ref[...]
        hebbout_ref[...] = hebb0_ref[...]

    h = h_sc[...]                      # (TB, H)
    c = c_sc[...]                      # (TB, H)
    hebb = hebbout_ref[...]            # (TB, H, H)  [b, pre, post]

    # Gates. xproj already holds x @ [x2f|x2i|x2opt|x2c] plus all biases; add
    # the fixed recurrent part with ONE MXU matmul against [wh_f|wh_i|wh_o|w].
    gz = xproj_ref[...] + jnp.dot(h, whr_ref[...],
                                  preferred_element_type=jnp.float32)
    fgt = jax.nn.sigmoid(gz[:, 0 * H:1 * H])
    ipt = jax.nn.sigmoid(gz[:, 1 * H:2 * H])
    opt = jax.nn.sigmoid(gz[:, 2 * H:3 * H])
    pre_c = gz[:, 3 * H:4 * H]         # x2c(x) + h @ w  (fixed recurrent part)

    # Plastic recurrent term: sum_j h[b,j] * alpha[j,k] * hebb[b,j,k]
    # (VPU multiplies + sublane reduction; avoids tiny batched MXU matmuls).
    h2c_plastic = jnp.sum((alpha_ref[...][None, :, :] * hebb) * h[:, :, None],
                          axis=1)

    inputstocell = jnp.tanh(pre_c + h2c_plastic)
    cell = fgt * c + ipt * inputstocell
    hactiv = opt * jnp.tanh(cell)

    # modultype == "modplasth2mod": tanh(h2mod(hactiv)) as a VPU multiply +
    # lane reduction (Linear(H,1) without an N=1 MXU matmul); bmod from SMEM.
    myeta = jnp.tanh(jnp.sum(hactiv * wmod_ref[...], axis=-1, keepdims=True)
                     + bmod_ref[0])                        # (TB, 1)
    # modulout == "fanout": Linear(1, H) applied to the per-batch scalar eta.
    eta = myeta * wfan_ref[...] + bfan_ref[...]            # (TB, H)

    # cliptype == "decay":  hebb <- (1-eta)*hebb + eta*outer(h, inputstocell)
    # 3 elementwise ops per hebb element (ome / ei precomputed on (TB,H)).
    ome = 1.0 - eta
    ei = eta * inputstocell
    hebbout_ref[...] = (ome[:, None, :] * hebb
                        + h[:, :, None] * ei[:, None, :])

    # Carry state and stream this step's outputs.
    h_sc[...] = hactiv
    c_sc[...] = cell
    hseq_ref[...] = hactiv
    cfin_ref[...] = cell


def fuse_params(params):
    """One-time parameter fusion. Call ONCE, outside any step/scan loop."""
    H = params["wh"].shape[0]
    # Recurrent weights for all four column blocks: [h2f | h2i | h2opt | w].
    whr = jnp.concatenate([params["wh"], params["w"]], axis=1)          # (H,4H)
    # All biases folded into the x-side projection.
    b_all = params["bx"] + jnp.concatenate(
        [params["bh"], jnp.zeros((1, H), params["bh"].dtype)], axis=1)  # (1,4H)
    return {
        "wx": params["wx"], "b_all": b_all, "whr": whr,
        "alpha": params["alpha"],
        "wmod_row": params["wmod"].reshape(1, H),
        "bmod": params["bmod"].reshape(1),
        "wfan": params["wfan"], "bfan": params["bfan"],
    }


def plastic_lstm_sequence(x_seq, hidden0, fused, *, batch_tile=8):
    """Run T PlasticLSTM steps in a single pallas_call.

    Returns (h_seq, (h_T, c_T, hebb_T)); step semantics match the module's
    forward. On single-TC v5e/v6e pass batch_tile=B; keep B//batch_tile >= 2
    on v7x so both TensorCores are used.
    """
    h0, c0, hebb0 = hidden0
    T, B, _I = x_seq.shape
    H = h0.shape[1]
    TB = min(batch_tile, B)
    assert B % TB == 0, "batch must be divisible by the batch tile"

    # Whole-sequence input projection as one large XLA matmul (M = T*B fills
    # the MXU far better than an in-kernel M=TB matmul would).
    xproj = (x_seq.reshape(T * B, -1) @ fused["wx"]
             + fused["b_all"]).reshape(T, B, 4 * H)

    grid = (B // TB, T)   # t innermost so the recurrent state stays resident

    in_specs = [
        pl.BlockSpec((None, TB, 4 * H), lambda b, t: (t, b, 0)),   # xproj_t
        pl.BlockSpec((TB, H), lambda b, t: (b, 0)),                # h0
        pl.BlockSpec((TB, H), lambda b, t: (b, 0)),                # c0
        pl.BlockSpec((TB, H, H), lambda b, t: (b, 0, 0)),          # hebb0
        pl.BlockSpec((H, 4 * H), lambda b, t: (0, 0)),             # whr
        pl.BlockSpec((H, H), lambda b, t: (0, 0)),                 # alpha
        pl.BlockSpec((1, H), lambda b, t: (0, 0)),                 # wmod_row
        pl.BlockSpec((1, H), lambda b, t: (0, 0)),                 # wfan
        pl.BlockSpec((1, H), lambda b, t: (0, 0)),                 # bfan
        pl.BlockSpec(memory_space=pltpu.MemorySpace.SMEM),         # bmod (1,)
    ]
    out_specs = (
        pl.BlockSpec((None, TB, H), lambda b, t: (t, b, 0)),       # h_seq
        pl.BlockSpec((TB, H), lambda b, t: (b, 0)),                # c_final
        pl.BlockSpec((TB, H, H), lambda b, t: (b, 0, 0)),          # hebb_final
    )

    h_seq, c_fin, hebb_fin = pl.pallas_call(
        plastic_lstm_seq_kernel,
        out_shape=(jax.ShapeDtypeStruct((T, B, H), jnp.float32),
                   jax.ShapeDtypeStruct((B, H), jnp.float32),
                   jax.ShapeDtypeStruct((B, H, H), jnp.float32)),
        grid=grid,
        in_specs=in_specs,
        out_specs=out_specs,
        scratch_shapes=[pltpu.VMEM((TB, H), jnp.float32),   # h state
                        pltpu.VMEM((TB, H), jnp.float32)],  # c state
        compiler_params=pltpu.CompilerParams(
            dimension_semantics=("parallel", "arbitrary"),
            vmem_limit_bytes=32 * 1024 * 1024),
    )(xproj, h0, c0, hebb0, fused["whr"], fused["alpha"],
      fused["wmod_row"], fused["wfan"], fused["bfan"], fused["bmod"])

    return h_seq, (h_seq[-1], c_fin, hebb_fin)


def plastic_lstm_step(x, hidden, fused, *, batch_tile=8):
    """Single forward step (== the PyTorch module's forward): T = 1."""
    h_seq, hidden = plastic_lstm_sequence(x[None], hidden, fused,
                                          batch_tile=batch_tile)
    return h_seq[0], hidden


# ----------------------------- pure-JAX reference ---------------------------

def plastic_lstm_reference_step(x, hidden, p):
    """Un-fused mirror of the PyTorch forward for this config."""
    h, c, hebb = hidden
    H = h.shape[1]
    gx = x @ p["wx"] + p["bx"]
    gh = h @ p["wh"] + p["bh"]
    fgt = jax.nn.sigmoid(gx[:, 0 * H:1 * H] + gh[:, 0 * H:1 * H])
    ipt = jax.nn.sigmoid(gx[:, 1 * H:2 * H] + gh[:, 1 * H:2 * H])
    opt = jax.nn.sigmoid(gx[:, 2 * H:3 * H] + gh[:, 2 * H:3 * H])
    W_plastic = p["w"][None, :, :] + p["alpha"][None, :, :] * hebb
    h2coutput = jnp.einsum("bj,bjk->bk", h, W_plastic)
    inputstocell = jnp.tanh(gx[:, 3 * H:4 * H] + h2coutput)
    cell = fgt * c + ipt * inputstocell
    hactiv = opt * jnp.tanh(cell)
    deltahebb = h[:, :, None] * inputstocell[:, None, :]
    myeta = jnp.tanh(hactiv @ p["wmod"] + p["bmod"])           # (B, 1)
    eta = (myeta @ p["wfan"] + p["bfan"])[:, None, :]          # (B, 1, H)
    hebb_new = (1.0 - eta) * hebb + eta * deltahebb
    return hactiv, (hactiv, cell, hebb_new)


def plastic_lstm_reference_sequence(x_seq, hidden0, p):
    def step(carry, x_t):
        out, new_carry = plastic_lstm_reference_step(x_t, carry, p)
        return new_carry, out
    carry, h_seq = jax.lax.scan(step, hidden0, x_seq)
    return h_seq, carry


if __name__ == "__main__":
    # Lane-dense small config: H multiple of 128, B multiple of the batch
    # tile, B//TB = 2 so the parallel batch axis feeds both v7x TensorCores.
    T, B, I, H, TB = 8, 16, 64, 128, 8
    key = jax.random.PRNGKey(0)
    keys = jax.random.split(key, 16)

    def unif(k, shape, scale):
        return (jax.random.uniform(k, shape, jnp.float32) * 2.0 - 1.0) * scale

    params = {
        # fused x projections [x2f | x2i | x2opt | x2c], stored (I, 4H)
        "wx": unif(keys[0], (I, 4 * H), 1.0 / np.sqrt(I)),
        "bx": unif(keys[1], (1, 4 * H), 1.0 / np.sqrt(I)),
        # fused h projections [h2f | h2i | h2opt], stored (H, 3H)
        "wh": unif(keys[2], (H, 3 * H), 1.0 / np.sqrt(H)),
        "bh": unif(keys[3], (1, 3 * H), 1.0 / np.sqrt(H)),
        # plastic recurrent weights: w ~ U(-0.01, 0.01), alpha ~ U(0, 1e-5)
        "w": jax.random.uniform(keys[4], (H, H), jnp.float32) * 0.02 - 0.01,
        "alpha": jax.random.uniform(keys[5], (H, H), jnp.float32) * 1e-5,
        # h2mod: Linear(H, 1)
        "wmod": unif(keys[6], (H, 1), 1.0 / np.sqrt(H)),
        "bmod": unif(keys[7], (1, 1), 1.0 / np.sqrt(H)),
        # modfanout: Linear(1, H)
        "wfan": unif(keys[8], (1, H), 1.0),
        "bfan": unif(keys[9], (1, H), 1.0),
    }

    x_seq = jax.random.normal(keys[10], (T, B, I), jnp.float32)
    h0 = jax.random.normal(keys[11], (B, H), jnp.float32) * 0.1
    c0 = jax.random.normal(keys[12], (B, H), jnp.float32) * 0.1
    hebb0 = jax.random.normal(keys[13], (B, H, H), jnp.float32) * 0.01

    ref_hseq, (_, ref_c, ref_hebb) = plastic_lstm_reference_sequence(
        x_seq, (h0, c0, hebb0), params)
    jax.block_until_ready((ref_hseq, ref_c, ref_hebb))

    fused = fuse_params(params)   # hoisted: built once, outside any loop
    h_seq, (hn, cn, hebbn) = plastic_lstm_sequence(
        x_seq, (h0, c0, hebb0), fused, batch_tile=TB)
    jax.block_until_ready((h_seq, hn, cn, hebbn))

    np.testing.assert_allclose(np.asarray(h_seq), np.asarray(ref_hseq),
                               rtol=1e-4, atol=5e-5)
    np.testing.assert_allclose(np.asarray(cn), np.asarray(ref_c),
                               rtol=1e-4, atol=5e-5)
    np.testing.assert_allclose(np.asarray(hebbn), np.asarray(ref_hebb),
                               rtol=1e-4, atol=5e-5)

    # TODO(synk): other module configs (cliptype "clip"/"aditya", modultype
    # "none"/"modplastc2mod", hebboutput variants) would need small kernel
    # variants; only the "decay"/"modplasth2mod"/"fanout"/"i2c"/full-alpha
    # path is implemented here.
    print("KERNEL_OK")
</pallas_src>

<mosaic_0001>
module attributes {stable_mosaic.version = 11 : i64} {
  func.func @plastic_lstm_seq_kernel(%arg0: i32, %arg1: i32, %arg2: memref<1x8x512xf32, #tpu.memory_space<vmem>>, %arg3: memref<8x128xf32, #tpu.memory_space<vmem>>, %arg4: memref<8x128xf32, #tpu.memory_space<vmem>>, %arg5: memref<8x128x128xf32, #tpu.memory_space<vmem>>, %arg6: memref<128x512xf32, #tpu.memory_space<vmem>>, %arg7: memref<128x128xf32, #tpu.memory_space<vmem>>, %arg8: memref<1x128xf32, #tpu.memory_space<vmem>>, %arg9: memref<1x128xf32, #tpu.memory_space<vmem>>, %arg10: memref<1x128xf32, #tpu.memory_space<vmem>>, %arg11: memref<1xf32, #tpu.memory_space<smem>>, %arg12: memref<1x8x128xf32, #tpu.memory_space<vmem>>, %arg13: memref<8x128xf32, #tpu.memory_space<vmem>>, %arg14: memref<8x128x128xf32, #tpu.memory_space<vmem>>, %arg15: memref<8x128xf32, #tpu.memory_space<vmem>>, %arg16: memref<8x128xf32, #tpu.memory_space<vmem>>) attributes {dimension_semantics = [#tpu.dimension_semantics<parallel>, #tpu.dimension_semantics<arbitrary>], iteration_bounds = array<i64: 2, 8>, scalar_prefetch = 0 : i64, scratch_operands = 2 : i64, tpu.core_type = #tpu.core_type<tc>, window_params = [{transform_indices = @transform_0, window_bounds = array<i64: 1, 8, 512>}, {transform_indices = @transform_1, window_bounds = array<i64: 8, 128>}, {transform_indices = @transform_2, window_bounds = array<i64: 8, 128>}, {transform_indices = @transform_3, window_bounds = array<i64: 8, 128, 128>}, {pipeline_mode = #tpu.pipeline_mode<synchronous>, transform_indices = @transform_4, window_bounds = array<i64: 128, 512>}, {pipeline_mode = #tpu.pipeline_mode<synchronous>, transform_indices = @transform_5, window_bounds = array<i64: 128, 128>}, {pipeline_mode = #tpu.pipeline_mode<synchronous>, transform_indices = @transform_6, window_bounds = array<i64: 1, 128>}, {pipeline_mode = #tpu.pipeline_mode<synchronous>, transform_indices = @transform_7, window_bounds = array<i64: 1, 128>}, {pipeline_mode = #tpu.pipeline_mode<synchronous>, transform_indices = @transform_8, window_bounds = array<i64: 1, 128>}, {transform_indices = @transform_9, window_bounds = array<i64: 1>}, {transform_indices = @transform_10, window_bounds = array<i64: 1, 8, 128>}, {transform_indices = @transform_11, window_bounds = array<i64: 8, 128>}, {transform_indices = @transform_12, window_bounds = array<i64: 8, 128, 128>}]} {
    %c0_i32 = arith.constant 0 : i32
    %0 = arith.cmpi eq, %arg1, %c0_i32 : i32
    %1 = arith.extui %0 : i1 to i32
    %c0_i32_0 = arith.constant 0 : i32
    %2 = arith.cmpi ne, %1, %c0_i32_0 : i32
    scf.if %2 {
      %c0_39 = arith.constant 0 : index
      %c0_40 = arith.constant 0 : index
      %80 = vector.load %arg3[%c0_39, %c0_40] : memref<8x128xf32, #tpu.memory_space<vmem>>, vector<8x128xf32>
      %c0_41 = arith.constant 0 : index
      %c0_42 = arith.constant 0 : index
      %81 = vector.load %arg15[%c0_41, %c0_42] : memref<8x128xf32, #tpu.memory_space<vmem>>, vector<8x128xf32>
      tpu.vector_store %arg15[%c0_41, %c0_42], %80 {strides = array<i32>} : memref<8x128xf32, #tpu.memory_space<vmem>>, vector<8x128xf32>,
      %c0_43 = arith.constant 0 : index
      %c0_44 = arith.constant 0 : index
      %82 = vector.load %arg4[%c0_43, %c0_44] : memref<8x128xf32, #tpu.memory_space<vmem>>, vector<8x128xf32>
      %c0_45 = arith.constant 0 : index
      %c0_46 = arith.constant 0 : index
      %83 = vector.load %arg16[%c0_45, %c0_46] : memref<8x128xf32, #tpu.memory_space<vmem>>, vector<8x128xf32>
      tpu.vector_store %arg16[%c0_45, %c0_46], %82 {strides = array<i32>} : memref<8x128xf32, #tpu.memory_space<vmem>>, vector<8x128xf32>,
      %c0_47 = arith.constant 0 : index
      %c0_48 = arith.constant 0 : index
      %c0_49 = arith.constant 0 : index
      %84 = vector.load %arg5[%c0_47, %c0_48, %c0_49] : memref<8x128x128xf32, #tpu.memory_space<vmem>>, vector<8x128x128xf32>
      %c0_50 = arith.constant 0 : index
      %c0_51 = arith.constant 0 : index
      %c0_52 = arith.constant 0 : index
      %85 = vector.load %arg14[%c0_50, %c0_51, %c0_52] : memref<8x128x128xf32, #tpu.memory_space<vmem>>, vector<8x128x128xf32>
      tpu.vector_store %arg14[%c0_50, %c0_51, %c0_52], %84 {strides = array<i32>} : memref<8x128x128xf32, #tpu.memory_space<vmem>>, vector<8x128x128xf32>,
    } else {
    }
    %c0 = arith.constant 0 : index
    %c0_1 = arith.constant 0 : index
    %3 = vector.load %arg15[%c0, %c0_1] : memref<8x128xf32, #tpu.memory_space<vmem>>, vector<8x128xf32>
    %c0_2 = arith.constant 0 : index
    %c0_3 = arith.constant 0 : index
    %4 = vector.load %arg16[%c0_2, %c0_3] : memref<8x128xf32, #tpu.memory_space<vmem>>, vector<8x128xf32>
    %c0_4 = arith.constant 0 : index
    %c0_5 = arith.constant 0 : index
    %c0_6 = arith.constant 0 : index
    %5 = vector.load %arg14[%c0_4, %c0_5, %c0_6] : memref<8x128x128xf32, #tpu.memory_space<vmem>>, vector<8x128x128xf32>
    %c0_7 = arith.constant 0 : index
    %c0_8 = arith.constant 0 : index
    %c0_9 = arith.constant 0 : index
    %6 = vector.load %arg2[%c0_7, %c0_8, %c0_9] : memref<1x8x512xf32, #tpu.memory_space<vmem>>, vector<1x8x512xf32>
    %7 = vector.shape_cast %6 : vector<1x8x512xf32> to vector<8x512xf32>
    %c0_10 = arith.constant 0 : index
    %c0_11 = arith.constant 0 : index
    %8 = vector.load %arg6[%c0_10, %c0_11] : memref<128x512xf32, #tpu.memory_space<vmem>>, vector<128x512xf32>
    %cst = arith.constant dense<0.000000e+00> : vector<8x512xf32>
    %9 = tpu.matmul %3, %8, %cst {dimension_numbers = #tpu.dot_dimension_numbers<[1], [0], [0], [1], [0, 0, 1, 1], [], []>} : vector<8x128xf32>, vector<128x512xf32>, vector<8x512xf32> -> vector<8x512xf32>
    %10 = arith.addf %7, %9 : vector<8x512xf32>
    %11 = vector.extract_strided_slice %10 {offsets = [0, 0], sizes = [8, 128], strides = [1, 1]} : vector<8x512xf32> to vector<8x128xf32>
    %12 = arith.negf %11 : vector<8x128xf32>
    %13 = math.exp %12 : vector<8x128xf32>
    %cst_12 = arith.constant 1.000000e+00 : f32
    %14 = vector.broadcast %cst_12 : f32 to vector<8x128xf32>
    %15 = arith.addf %14, %13 : vector<8x128xf32>
    %16 = arith.divf %14, %15 : vector<8x128xf32>
    %17 = vector.extract_strided_slice %10 {offsets = [0, 128], sizes = [8, 128], strides = [1, 1]} : vector<8x512xf32> to vector<8x128xf32>
    %18 = arith.negf %17 : vector<8x128xf32>
    %19 = math.exp %18 : vector<8x128xf32>
    %cst_13 = arith.constant 1.000000e+00 : f32
    %20 = vector.broadcast %cst_13 : f32 to vector<8x128xf32>
    %21 = arith.addf %20, %19 : vector<8x128xf32>
    %22 = arith.divf %20, %21 : vector<8x128xf32>
    %23 = vector.extract_strided_slice %10 {offsets = [0, 256], sizes = [8, 128], strides = [1, 1]} : vector<8x512xf32> to vector<8x128xf32>
    %24 = arith.negf %23 : vector<8x128xf32>
    %25 = math.exp %24 : vector<8x128xf32>
    %cst_14 = arith.constant 1.000000e+00 : f32
    %26 = vector.broadcast %cst_14 : f32 to vector<8x128xf32>
    %27 = arith.addf %26, %25 : vector<8x128xf32>
    %28 = arith.divf %26, %27 : vector<8x128xf32>
    %29 = vector.extract_strided_slice %10 {offsets = [0, 384], sizes = [8, 128], strides = [1, 1]} : vector<8x512xf32> to vector<8x128xf32>
    %c0_15 = arith.constant 0 : index
    %c0_16 = arith.constant 0 : index
    %30 = vector.load %arg7[%c0_15, %c0_16] : memref<128x128xf32, #tpu.memory_space<vmem>>, vector<128x128xf32>
    %31 = vector.shape_cast %30 : vector<128x128xf32> to vector<1x128x128xf32>
    %32 = vector.broadcast %31 : vector<1x128x128xf32> to vector<8x128x128xf32>
    %33 = arith.mulf %32, %5 : vector<8x128x128xf32>
    %34 = vector.shape_cast %3 : vector<8x128xf32> to vector<8x128x1xf32>
    %35 = vector.broadcast %34 : vector<8x128x1xf32> to vector<8x128x128xf32>
    %36 = arith.mulf %33, %35 : vector<8x128x128xf32>
    %cst_17 = arith.constant dense<0.000000e+00> : vector<8x128xf32>
    %37 = vector.multi_reduction <add>, %36, %cst_17 [1] : vector<8x128x128xf32> to vector<8x128xf32>
    %38 = arith.addf %29, %37 : vector<8x128xf32>
    %39 = math.tanh %38 : vector<8x128xf32>
    %40 = arith.mulf %16, %4 : vector<8x128xf32>
    %41 = arith.mulf %22, %39 : vector<8x128xf32>
    %42 = arith.addf %40, %41 : vector<8x128xf32>
    %43 = math.tanh %42 : vector<8x128xf32>
    %44 = arith.mulf %28, %43 : vector<8x128xf32>
    %c0_18 = arith.constant 0 : index
    %c0_19 = arith.constant 0 : index
    %45 = vector.load %arg8[%c0_18, %c0_19] : memref<1x128xf32, #tpu.memory_space<vmem>>, vector<1x128xf32>
    %46 = vector.broadcast %45 : vector<1x128xf32> to vector<8x128xf32>
    %47 = arith.mulf %44, %46 : vector<8x128xf32>
    %cst_20 = arith.constant dense<0.000000e+00> : vector<8xf32>
    %48 = vector.multi_reduction <add>, %47, %cst_20 [1] : vector<8x128xf32> to vector<8xf32>
    %49 = vector.shape_cast %48 : vector<8xf32> to vector<8x1xf32>
    %c0_21 = arith.constant 0 : index
    %50 = memref.load %arg11[%c0_21] : memref<1xf32, #tpu.memory_space<smem>>
    %51 = vector.broadcast %50 : f32 to vector<8x1xf32>
    %52 = arith.addf %49, %51 : vector<8x1xf32>
    %53 = math.tanh %52 : vector<8x1xf32>
    %c0_22 = arith.constant 0 : index
    %c0_23 = arith.constant 0 : index
    %54 = vector.load %arg9[%c0_22, %c0_23] : memref<1x128xf32, #tpu.memory_space<vmem>>, vector<1x128xf32>
    %55 = vector.broadcast %53 : vector<8x1xf32> to vector<8x128xf32>
    %56 = vector.broadcast %54 : vector<1x128xf32> to vector<8x128xf32>
    %57 = arith.mulf %55, %56 : vector<8x128xf32>
    %c0_24 = arith.constant 0 : index
    %c0_25 = arith.constant 0 : index
    %58 = vector.load %arg10[%c0_24, %c0_25] : memref<1x128xf32, #tpu.memory_space<vmem>>, vector<1x128xf32>
    %59 = vector.broadcast %58 : vector<1x128xf32> to vector<8x128xf32>
    %60 = arith.addf %57, %59 : vector<8x128xf32>
    %cst_26 = arith.constant 1.000000e+00 : f32
    %61 = vector.broadcast %cst_26 : f32 to vector<8x128xf32>
    %62 = arith.subf %61, %60 : vector<8x128xf32>
    %63 = arith.mulf %60, %39 : vector<8x128xf32>
    %64 = vector.shape_cast %62 : vector<8x128xf32> to vector<8x1x128xf32>
    %65 = vector.broadcast %64 : vector<8x1x128xf32> to vector<8x128x128xf32>
    %66 = arith.mulf %65, %5 : vector<8x128x128xf32>
    %67 = vector.shape_cast %3 : vector<8x128xf32> to vector<8x128x1xf32>
    %68 = vector.shape_cast %63 : vector<8x128xf32> to vector<8x1x128xf32>
    %69 = vector.broadcast %67 : vector<8x128x1xf32> to vector<8x128x128xf32>
    %70 = vector.broadcast %68 : vector<8x1x128xf32> to vector<8x128x128xf32>
    %71 = arith.mulf %69, %70 : vector<8x128x128xf32>
    %72 = arith.addf %66, %71 : vector<8x128x128xf32>
    %c0_27 = arith.constant 0 : index
    %c0_28 = arith.constant 0 : index
    %c0_29 = arith.constant 0 : index
    %73 = vector.load %arg14[%c0_27, %c0_28, %c0_29] : memref<8x128x128xf32, #tpu.memory_space<vmem>>, vector<8x128x128xf32>
    tpu.vector_store %arg14[%c0_27, %c0_28, %c0_29], %72 {strides = array<i32>} : memref<8x128x128xf32, #tpu.memory_space<vmem>>, vector<8x128x128xf32>,
    %c0_30 = arith.constant 0 : index
    %c0_31 = arith.constant 0 : index
    %74 = vector.load %arg15[%c0_30, %c0_31] : memref<8x128xf32, #tpu.memory_space<vmem>>, vector<8x128xf32>
    tpu.vector_store %arg15[%c0_30, %c0_31], %44 {strides = array<i32>} : memref<8x128xf32, #tpu.memory_space<vmem>>, vector<8x128xf32>,
    %c0_32 = arith.constant 0 : index
    %c0_33 = arith.constant 0 : index
    %75 = vector.load %arg16[%c0_32, %c0_33] : memref<8x128xf32, #tpu.memory_space<vmem>>, vector<8x128xf32>
    tpu.vector_store %arg16[%c0_32, %c0_33], %42 {strides = array<i32>} : memref<8x128xf32, #tpu.memory_space<vmem>>, vector<8x128xf32>,
    %c0_34 = arith.constant 0 : index
    %c0_35 = arith.constant 0 : index
    %c0_36 = arith.constant 0 : index
    %76 = vector.load %arg12[%c0_34, %c0_35, %c0_36] : memref<1x8x128xf32, #tpu.memory_space<vmem>>, vector<1x8x128xf32>
    %77 = vector.shape_cast %76 : vector<1x8x128xf32> to vector<8x128xf32>
    %78 = vector.shape_cast %44 : vector<8x128xf32> to vector<1x8x128xf32>
    tpu.vector_store %arg12[%c0_34, %c0_35, %c0_36], %78 {strides = array<i32>} : memref<1x8x128xf32, #tpu.memory_space<vmem>>, vector<1x8x128xf32>,
    %c0_37 = arith.constant 0 : index
    %c0_38 = arith.constant 0 : index
    %79 = vector.load %arg13[%c0_37, %c0_38] : memref<8x128xf32, #tpu.memory_space<vmem>>, vector<8x128xf32>
    tpu.vector_store %arg13[%c0_37, %c0_38], %42 {strides = array<i32>} : memref<8x128xf32, #tpu.memory_space<vmem>>, vector<8x128xf32>,
    return
  }
  func.func @transform_0(%arg0: i32, %arg1: i32) -> (i32, i32, i32) {
    %c0_i32 = arith.constant 0 : i32
    %c0_i32_0 = arith.constant 0 : i32
    return %arg1, %arg0, %c0_i32 : i32, i32, i32
  }
  func.func @transform_1(%arg0: i32, %arg1: i32) -> (i32, i32) {
    %c0_i32 = arith.constant 0 : i32
    %c0_i32_0 = arith.constant 0 : i32
    return %arg0, %c0_i32 : i32, i32
  }
  func.func @transform_2(%arg0: i32, %arg1: i32) -> (i32, i32) {
    %c0_i32 = arith.constant 0 : i32
    %c0_i32_0 = arith.constant 0 : i32
    return %arg0, %c0_i32 : i32, i32
  }
  func.func @transform_3(%arg0: i32, %arg1: i32) -> (i32, i32, i32) {
    %c0_i32 = arith.constant 0 : i32
    %c0_i32_0 = arith.constant 0 : i32
    %c0_i32_1 = arith.constant 0 : i32
    return %arg0, %c0_i32, %c0_i32_0 : i32, i32, i32
  }
  func.func @transform_4(%arg0: i32, %arg1: i32) -> (i32, i32) {
    %c0_i32 = arith.constant 0 : i32
    %c0_i32_0 = arith.constant 0 : i32
    %c0_i32_1 = arith.constant 0 : i32
    return %c0_i32, %c0_i32_0 : i32, i32
  }
  func.func @transform_5(%arg0: i32, %arg1: i32) -> (i32, i32) {
    %c0_i32 = arith.constant 0 : i32
    %c0_i32_0 = arith.constant 0 : i32
    %c0_i32_1 = arith.constant 0 : i32
    return %c0_i32, %c0_i32_0 : i32, i32
  }
  func.func @transform_6(%arg0: i32, %arg1: i32) -> (i32, i32) {
    %c0_i32 = arith.constant 0 : i32
    %c0_i32_0 = arith.constant 0 : i32
    %c0_i32_1 = arith.constant 0 : i32
    return %c0_i32, %c0_i32_0 : i32, i32
  }
  func.func @transform_7(%arg0: i32, %arg1: i32) -> (i32, i32) {
    %c0_i32 = arith.constant 0 : i32
    %c0_i32_0 = arith.constant 0 : i32
    %c0_i32_1 = arith.constant 0 : i32
    return %c0_i32, %c0_i32_0 : i32, i32
  }
  func.func @transform_8(%arg0: i32, %arg1: i32) -> (i32, i32) {
    %c0_i32 = arith.constant 0 : i32
    %c0_i32_0 = arith.constant 0 : i32
    %c0_i32_1 = arith.constant 0 : i32
    return %c0_i32, %c0_i32_0 : i32, i32
  }
  func.func @transform_9(%arg0: i32, %arg1: i32) -> i32 {
    %c0_i32 = arith.constant 0 : i32
    %c0_i32_0 = arith.constant 0 : i32
    return %c0_i32 : i32
  }
  func.func @transform_10(%arg0: i32, %arg1: i32) -> (i32, i32, i32) {
    %c0_i32 = arith.constant 0 : i32
    %c0_i32_0 = arith.constant 0 : i32
    return %arg1, %arg0, %c0_i32 : i32, i32, i32
  }
  func.func @transform_11(%arg0: i32, %arg1: i32) -> (i32, i32) {
    %c0_i32 = arith.constant 0 : i32
    %c0_i32_0 = arith.constant 0 : i32
    return %arg0, %c0_i32 : i32, i32
  }
  func.func @transform_12(%arg0: i32, %arg1: i32) -> (i32, i32, i32) {
    %c0_i32 = arith.constant 0 : i32
    %c0_i32_0 = arith.constant 0 : i32
    %c0_i32_1 = arith.constant 0 : i32
    return %arg0, %c0_i32, %c0_i32_0 : i32, i32, i32
  }
}

</mosaic_0001>

<llo_original>
// kernel: tpu_custom_call.1
$region0: #{tpu_custom_call.1}
  #allocation0 [shape = 'u32[]', space=smem, size = 0x4, offset = 0x4, fixed_abs, tag = 'smem constant byte address 0x4 - core index']
  #allocation1 [shape = 'u32[144,128]{1,0:T(1,128)}', space=vmem, size = 0x12000, scoped, tag = 'internal scratch']
  #allocation2 [shape = 'f32[8,128]{1,0:T(8,128)}', space=vmem, size = 0x1000, scoped, tag = 'scratch operand']
  #allocation3 [shape = 'f32[8,128]{1,0:T(8,128)}', space=vmem, size = 0x1000, scoped, tag = 'scratch operand']
  #allocation4 [shape = 'f32[1]{0:T(128)S(6)}', space=smem, size = 0x200, scoped, tag = 'scoped memory for tpu_custom_call.1']
  %s0 = inlined_call_operand.hbm [shape: f32[8,16,512], index: 0, kind: input, shape index: {}]
  %s1 = inlined_call_operand.hbm [shape: f32[16,128], index: 1, kind: input, shape index: {}]
  %s2 = inlined_call_operand.hbm [shape: f32[16,128], index: 2, kind: input, shape index: {}]
  %s3 = inlined_call_operand.hbm [shape: f32[16,128,128], index: 3, kind: input, shape index: {}]
  %s4 = inlined_call_operand.hbm [shape: f32[128,512], index: 4, kind: input, shape index: {}]
  %s5 = inlined_call_operand.hbm [shape: f32[128,128], index: 5, kind: input, shape index: {}]
  %s6 = inlined_call_operand.vmem [shape: f32[1,128], index: 6, kind: input, shape index: {}]
  %s7 = inlined_call_operand.vmem [shape: f32[1,128], index: 7, kind: input, shape index: {}]
  %s8 = inlined_call_operand.vmem [shape: f32[1,128], index: 8, kind: input, shape index: {}]
  %s9 = inlined_call_operand.<no memory space> [shape: f32[1], index: 9, kind: input, shape index: {}]
  %s10 = inlined_call_operand.hbm [shape: f32[8,16,128], index: 10, kind: output, shape index: {0}]
  %s11 = inlined_call_operand.hbm [shape: f32[16,128], index: 11, kind: output, shape index: {1}]
  %s12 = inlined_call_operand.hbm [shape: f32[16,128,128], index: 12, kind: output, shape index: {2}]
  %13 = xla_tuple %s10, %s11, %s12
  %s14 = sld [smem:[#allocation0]]
  $region117: #{tpu_custom_call.1} parent=0
    _
  %s16 = ssub.s32 1, %s14
  %s17 = scalar_select 0, %s16, %s14
  %18 = sst [smem:[#allocation4]] %s9
  $region1: #{tpu_custom_call.1} parent=0
    #allocation5 [shape = 'u8[32768]{0}', space=vmem, size = 0x8000, scoped, tag = 'input window, operand 0']
    #allocation6 [shape = 's32[2]{0}', space=sflag, size = 0x8, scoped, tag = 'scoped memory for tpu_custom_call.1']
    #allocation7 [shape = 's32[2]{0}', space=sflag, size = 0x8, scoped, tag = 'scoped memory for tpu_custom_call.1']
    #allocation8 [shape = 'u8[8192]{0}', space=vmem, size = 0x2000, scoped, tag = 'input window, operand 1']
    #allocation9 [shape = 's32[2]{0}', space=sflag, size = 0x8, scoped, tag = 'scoped memory for tpu_custom_call.1']
    #allocation10 [shape = 'u8[8192]{0}', space=vmem, size = 0x2000, scoped, tag = 'input window, operand 2']
    #allocation11 [shape = 'u8[1048576]{0}', space=vmem, size = 0x100000, scoped, tag = 'input window, operand 3']
    #allocation12 [shape = 's32[2]{0}', space=sflag, size = 0x8, scoped, tag = 'scoped memory for tpu_custom_call.1']
    #allocation13 [shape = 'u8[262144]{0}', space=vmem, size = 0x40000, scoped, tag = 'input window, operand 4, single buffered']
    #allocation14 [shape = 'u8[65536]{0}', space=vmem, size = 0x10000, scoped, tag = 'input window, operand 5, single buffered']
    #allocation15 [shape = 's32[1]{0}', space=sflag, size = 0x4, scoped, tag = 'scoped memory for tpu_custom_call.1']
    #allocation16 [shape = 'u8[8192]{0}', space=vmem, size = 0x2000, scoped, tag = 'output window, operand 0']
    #allocation17 [shape = 'u8[8192]{0}', space=vmem, size = 0x2000, scoped, tag = 'output window, operand 1']
    #allocation18 [shape = 's32[2]{0}', space=sflag, size = 0x8, scoped, tag = 'scoped memory for tpu_custom_call.1']
    #allocation19 [shape = 'u8[1048576]{0}', space=vmem, size = 0x100000, scoped, tag = 'output window, operand 2']
    %19 = vsyncpa [#allocation6], 0
    %s20 = scalar_lea.sflag [#allocation6], 1
    %21 = vsyncpa %s20, 0
    %22 = vsyncpa [#allocation9], 0
    %s23 = scalar_lea.sflag [#allocation9], 1
    %24 = vsyncpa %s23, 0
    %25 = vsyncpa [#allocation12], 0
    %s26 = scalar_lea.sflag [#allocation12], 1
    %27 = vsyncpa %s26, 0
    %28 = vsyncpa [#allocation15], 0
    %29 = vsyncpa [#allocation7], 0
    %s30 = scalar_lea.sflag [#allocation7], 1
    %31 = vsyncpa %s30, 0
    %32 = vsyncpa [#allocation18], 0
    %s33 = scalar_lea.sflag [#allocation18], 1
    %34 = vsyncpa %s33, 0
    loop: start=0, step=1, limit=18
    $region2: #{tpu_custom_call.1} parent=1 // loop_pre_header
      _
    $region3: #{tpu_custom_call.1} parent=1 // loop_header
      %s36 = sphi 0, %s40
      %p37 = scmp.ge.s32.totalorder %s36, 18
      %s43 = sphi 0, %s55
      %s44 = sphi 0, %s51
      %s45 = sphi 0, %s43
      %s46 = sphi 0, %s44
      %s47 = sphi 0, %s45
      %s48 = sphi 0, %s46
      %s60 = sphi 0, %s62
      %s63 = sphi 0, %s60
      %s64 = sphi 0, %s63
      %s80 = sphi 0, %s64
      %s86 = sphi 0, %s88
      %s89 = sphi 0, %s86
      %s90 = sphi 0, %s89
      %s106 = sphi 0, %s90
      %s112 = sphi 0, %s114
      %s115 = sphi 0, %s112
      %s116 = sphi 0, %s115
      %s132 = sphi 0, %s116
      %s138 = sphi 0, %s140
      %s141 = sphi 0, %s138
      %s142 = sphi 0, %s141
      %s158 = sphi 0, %s142
      %s162 = sphi 0, %s162
      %s164 = sphi 0, %s162
      %s165 = sphi 0, %s164
      %s179 = sphi 0, %s165
      %s183 = sphi 0, %s183
      %s185 = sphi 0, %s183
      %s186 = sphi 0, %s185
      %s200 = sphi 0, %s186
      %s204 = sphi 0, %s204
      %s206 = sphi 0, %s204
      %s207 = sphi 0, %s206
      %s221 = sphi 0, %s207
      %s225 = sphi 0, %s225
      %s227 = sphi 0, %s225
      %s228 = sphi 0, %s227
      %s242 = sphi 0, %s228
      %s246 = sphi 0, %s246
      %s248 = sphi 0, %s246
      %s249 = sphi 0, %s248
      %s263 = sphi 0, %s249
      %s267 = sphi 0, %s267
      %s269 = sphi 0, %s267
      %s270 = sphi 0, %s269
      %s284 = sphi 0, %s270
      %s292 = sphi 0, %s294
      %s295 = sphi 0, %s292
      %s296 = sphi 0, %s295
      %s312 = sphi 0, %s296
      %s318 = sphi 0, %s320
      %s321 = sphi 0, %s318
      %s322 = sphi 0, %s321
      %s338 = sphi 0, %s322
      %s344 = sphi 0, %s346
      %s347 = sphi 0, %s344
      %s348 = sphi 0, %s347
      %s364 = sphi 0, %s348
    $region4: #{tpu_custom_call.1} parent=1 // loop_header_branch
      %39 = sbr.rel (%p37) target = $region8
    $region5: #{tpu_custom_call.1} parent=1 // loop_body
      %s41 = ssub.s32 %s36, 1
      %s42 = ssub.s32 %s36, 2
      %s49 = sadd.s32 1, %s44
      %p50 = scmp.ge.s32.totalorder %s49, 8
      %s51 = scalar_select %p50, 0, %s49
      %s52 = sadd.s32 1, %s43
      %s53 = scalar_select %p50, %s52, %s43
      %p54 = scmp.ge.s32.totalorder %s53, 2
      %s55 = scalar_select %p54, 0, %s53
      %s56 = ssub.s32 %s44, %s51
      %s57 = ssub.s32 %s43, %s55
      %s58 = sor.u32 %s56, %s57
      %p59 = scmp.eq.s32.totalorder %s58, 0
      %s61 = sadd.s32 %s60, 1
      %s62 = scalar_select %p59, %s60, %s61
      %p65 = pneg %p59
      %p66 = scmp.eq.s32.totalorder %s36, 15
      %p67 = por %p65, %p66
      %p68 = scmp.ne.s32.totalorder %s60, %s63
      %p69 = scmp.eq.s32.totalorder %s36, 0
      %p70 = por %p68, %p69
      %p71 = scmp.ne.s32.totalorder %s60, %s63
      %p72 = scmp.eq.s32.totalorder %s41, 15
      %p73 = por %p71, %p72
      %p74 = scmp.ne.s32.totalorder %s63, %s64
      %p75 = scmp.eq.s32.totalorder %s41, 0
      %p76 = por %p74, %p75
      %p77 = scmp.ne.s32.totalorder %s63, %s64
      %p78 = scmp.eq.s32.totalorder %s42, 15
      %p79 = por %p77, %p78
      %p81 = scmp.ne.s32.totalorder %s64, %s80
      %p82 = scmp.eq.s32.totalorder %s42, 0
      %p83 = por %p81, %p82
      %s84 = ssub.s32 %s43, %s55
      %p85 = scmp.eq.s32.totalorder %s84, 0
      %s87 = sadd.s32 %s86, 1
      %s88 = scalar_select %p85, %s86, %s87
      %p91 = pneg %p85
      %p92 = scmp.eq.s32.totalorder %s36, 15
      %p93 = por %p91, %p92
      %p94 = scmp.ne.s32.totalorder %s86, %s89
      %p95 = scmp.eq.s32.totalorder %s36, 0
      %p96 = por %p94, %p95
      %p97 = scmp.ne.s32.totalorder %s86, %s89
      %p98 = scmp.eq.s32.totalorder %s41, 15
      %p99 = por %p97, %p98
      %p100 = scmp.ne.s32.totalorder %s89, %s90
      %p101 = scmp.eq.s32.totalorder %s41, 0
      %p102 = por %p100, %p101
      %p103 = scmp.ne.s32.totalorder %s89, %s90
      %p104 = scmp.eq.s32.totalorder %s42, 15
      %p105 = por %p103, %p104
      %p107 = scmp.ne.s32.totalorder %s90, %s106
      %p108 = scmp.eq.s32.totalorder %s42, 0
      %p109 = por %p107, %p108
      %s110 = ssub.s32 %s43, %s55
      %p111 = scmp.eq.s32.totalorder %s110, 0
      %s113 = sadd.s32 %s112, 1
      %s114 = scalar_select %p111, %s112, %s113
      %p117 = pneg %p111
      %p118 = scmp.eq.s32.totalorder %s36, 15
      %p119 = por %p117, %p118
      %p120 = scmp.ne.s32.totalorder %s112, %s115
      %p121 = scmp.eq.s32.totalorder %s36, 0
      %p122 = por %p120, %p121
      %p123 = scmp.ne.s32.totalorder %s112, %s115
      %p124 = scmp.eq.s32.totalorder %s41, 15
      %p125 = por %p123, %p124
      %p126 = scmp.ne.s32.totalorder %s115, %s116
      %p127 = scmp.eq.s32.totalorder %s41, 0
      %p128 = por %p126, %p127
      %p129 = scmp.ne.s32.totalorder %s115, %s116
      %p130 = scmp.eq.s32.totalorder %s42, 15
      %p131 = por %p129, %p130
      %p133 = scmp.ne.s32.totalorder %s116, %s132
      %p134 = scmp.eq.s32.totalorder %s42, 0
      %p135 = por %p133, %p134
      %s136 = ssub.s32 %s43, %s55
      %p137 = scmp.eq.s32.totalorder %s136, 0
      %s139 = sadd.s32 %s138, 1
      %s140 = scalar_select %p137, %s138, %s139
      %p143 = pneg %p137
      %p144 = scmp.eq.s32.totalorder %s36, 15
      %p145 = por %p143, %p144
      %p146 = scmp.ne.s32.totalorder %s138, %s141
      %p147 = scmp.eq.s32.totalorder %s36, 0
      %p148 = por %p146, %p147
      %p149 = scmp.ne.s32.totalorder %s138, %s141
      %p150 = scmp.eq.s32.totalorder %s41, 15
      %p151 = por %p149, %p150
      %p152 = scmp.ne.s32.totalorder %s141, %s142
      %p153 = scmp.eq.s32.totalorder %s41, 0
      %p154 = por %p152, %p153
      %p155 = scmp.ne.s32.totalorder %s141, %s142
      %p156 = scmp.eq.s32.totalorder %s42, 15
      %p157 = por %p155, %p156
      %p159 = scmp.ne.s32.totalorder %s142, %s158
      %p160 = scmp.eq.s32.totalorder %s42, 0
      %p161 = por %p159, %p160
      %s163 = sadd.s32 %s162, 1
      %p166 = scmp.eq.s32.totalorder %s36, 15
      %p167 = scmp.ne.s32.totalorder %s162, %s164
      %p168 = scmp.eq.s32.totalorder %s36, 0
      %p169 = por %p167, %p168
      %p170 = scmp.ne.s32.totalorder %s162, %s164
      %p171 = scmp.eq.s32.totalorder %s41, 15
      %p172 = por %p170, %p171
      %p173 = scmp.ne.s32.totalorder %s164, %s165
      %p174 = scmp.eq.s32.totalorder %s41, 0
      %p175 = por %p173, %p174
      %p176 = scmp.ne.s32.totalorder %s164, %s165
      %p177 = scmp.eq.s32.totalorder %s42, 15
      %p178 = por %p176, %p177
      %p180 = scmp.ne.s32.totalorder %s165, %s179
      %p181 = scmp.eq.s32.totalorder %s42, 0
      %p182 = por %p180, %p181
      %s184 = sadd.s32 %s183, 1
      %p187 = scmp.eq.s32.totalorder %s36, 15
      %p188 = scmp.ne.s32.totalorder %s183, %s185
      %p189 = scmp.eq.s32.totalorder %s36, 0
      %p190 = por %p188, %p189
      %p191 = scmp.ne.s32.totalorder %s183, %s185
      %p192 = scmp.eq.s32.totalorder %s41, 15
      %p193 = por %p191, %p192
      %p194 = scmp.ne.s32.totalorder %s185, %s186
      %p195 = scmp.eq.s32.totalorder %s41, 0
      %p196 = por %p194, %p195
      %p197 = scmp.ne.s32.totalorder %s185, %s186
      %p198 = scmp.eq.s32.totalorder %s42, 15
      %p199 = por %p197, %p198
      %p201 = scmp.ne.s32.totalorder %s186, %s200
      %p202 = scmp.eq.s32.totalorder %s42, 0
      %p203 = por %p201, %p202
      %s205 = sadd.s32 %s204, 1
      %p208 = scmp.eq.s32.totalorder %s36, 15
      %p209 = scmp.ne.s32.totalorder %s204, %s206
      %p210 = scmp.eq.s32.totalorder %s36, 0
      %p211 = por %p209, %p210
      %p212 = scmp.ne.s32.totalorder %s204, %s206
      %p213 = scmp.eq.s32.totalorder %s41, 15
      %p214 = por %p212, %p213
      %p215 = scmp.ne.s32.totalorder %s206, %s207
      %p216 = scmp.eq.s32.totalorder %s41, 0
      %p217 = por %p215, %p216
      %p218 = scmp.ne.s32.totalorder %s206, %s207
      %p219 = scmp.eq.s32.totalorder %s42, 15
      %p220 = por %p218, %p219
      %p222 = scmp.ne.s32.totalorder %s207, %s221
      %p223 = scmp.eq.s32.totalorder %s42, 0
      %p224 = por %p222, %p223
      %s226 = sadd.s32 %s225, 1
      %p229 = scmp.eq.s32.totalorder %s36, 15
      %p230 = scmp.ne.s32.totalorder %s225, %s227
      %p231 = scmp.eq.s32.totalorder %s36, 0
      %p232 = por %p230, %p231
      %p233 = scmp.ne.s32.totalorder %s225, %s227
      %p234 = scmp.eq.s32.totalorder %s41, 15
      %p235 = por %p233, %p234
      %p236 = scmp.ne.s32.totalorder %s227, %s228
      %p237 = scmp.eq.s32.totalorder %s41, 0
      %p238 = por %p236, %p237
      %p239 = scmp.ne.s32.totalorder %s227, %s228
      %p240 = scmp.eq.s32.totalorder %s42, 15
      %p241 = por %p239, %p240
      %p243 = scmp.ne.s32.totalorder %s228, %s242
      %p244 = scmp.eq.s32.totalorder %s42, 0
      %p245 = por %p243, %p244
      %s247 = sadd.s32 %s246, 1
      %p250 = scmp.eq.s32.totalorder %s36, 15
      %p251 = scmp.ne.s32.totalorder %s246, %s248
      %p252 = scmp.eq.s32.totalorder %s36, 0
      %p253 = por %p251, %p252
      %p254 = scmp.ne.s32.totalorder %s246, %s248
      %p255 = scmp.eq.s32.totalorder %s41, 15
      %p256 = por %p254, %p255
      %p257 = scmp.ne.s32.totalorder %s248, %s249
      %p258 = scmp.eq.s32.totalorder %s41, 0
      %p259 = por %p257, %p258
      %p260 = scmp.ne.s32.totalorder %s248, %s249
      %p261 = scmp.eq.s32.totalorder %s42, 15
      %p262 = por %p260, %p261
      %p264 = scmp.ne.s32.totalorder %s249, %s263
      %p265 = scmp.eq.s32.totalorder %s42, 0
      %p266 = por %p264, %p265
      %s268 = sadd.s32 %s267, 1
      %p271 = scmp.eq.s32.totalorder %s36, 15
      %p272 = scmp.ne.s32.totalorder %s267, %s269
      %p273 = scmp.eq.s32.totalorder %s36, 0
      %p274 = por %p272, %p273
      %p275 = scmp.ne.s32.totalorder %s267, %s269
      %p276 = scmp.eq.s32.totalorder %s41, 15
      %p277 = por %p275, %p276
      %p278 = scmp.ne.s32.totalorder %s269, %s270
      %p279 = scmp.eq.s32.totalorder %s41, 0
      %p280 = por %p278, %p279
      %p281 = scmp.ne.s32.totalorder %s269, %s270
      %p282 = scmp.eq.s32.totalorder %s42, 15
      %p283 = por %p281, %p282
      %p285 = scmp.ne.s32.totalorder %s270, %s284
      %p286 = scmp.eq.s32.totalorder %s42, 0
      %p287 = por %p285, %p286
      %s288 = ssub.s32 %s44, %s51
      %s289 = ssub.s32 %s43, %s55
      %s290 = sor.u32 %s288, %s289
      %p291 = scmp.eq.s32.totalorder %s290, 0
      %s293 = sadd.s32 %s292, 1
      %s294 = scalar_select %p291, %s292, %s293
      %p297 = pneg %p291
      %p298 = scmp.eq.s32.totalorder %s36, 15
      %p299 = por %p297, %p298
      %p300 = scmp.ne.s32.totalorder %s292, %s295
      %p301 = scmp.eq.s32.totalorder %s36, 0
      %p302 = por %p300, %p301
      %p303 = scmp.ne.s32.totalorder %s292, %s295
      %p304 = scmp.eq.s32.totalorder %s41, 15
      %p305 = por %p303, %p304
      %p306 = scmp.ne.s32.totalorder %s295, %s296
      %p307 = scmp.eq.s32.totalorder %s41, 0
      %p308 = por %p306, %p307
      %p309 = scmp.ne.s32.totalorder %s295, %s296
      %p310 = scmp.eq.s32.totalorder %s42, 15
      %p311 = por %p309, %p310
      %p313 = scmp.ne.s32.totalorder %s296, %s312
      %p314 = scmp.eq.s32.totalorder %s42, 0
      %p315 = por %p313, %p314
      %s316 = ssub.s32 %s43, %s55
      %p317 = scmp.eq.s32.totalorder %s316, 0
      %s319 = sadd.s32 %s318, 1
      %s320 = scalar_select %p317, %s318, %s319
      %p323 = pneg %p317
      %p324 = scmp.eq.s32.totalorder %s36, 15
      %p325 = por %p323, %p324
      %p326 = scmp.ne.s32.totalorder %s318, %s321
      %p327 = scmp.eq.s32.totalorder %s36, 0
      %p328 = por %p326, %p327
      %p329 = scmp.ne.s32.totalorder %s318, %s321
      %p330 = scmp.eq.s32.totalorder %s41, 15
      %p331 = por %p329, %p330
      %p332 = scmp.ne.s32.totalorder %s321, %s322
      %p333 = scmp.eq.s32.totalorder %s41, 0
      %p334 = por %p332, %p333
      %p335 = scmp.ne.s32.totalorder %s321, %s322
      %p336 = scmp.eq.s32.totalorder %s42, 15
      %p337 = por %p335, %p336
      %p339 = scmp.ne.s32.totalorder %s322, %s338
      %p340 = scmp.eq.s32.totalorder %s42, 0
      %p341 = por %p339, %p340
      %s342 = ssub.s32 %s43, %s55
      %p343 = scmp.eq.s32.totalorder %s342, 0
      %s345 = sadd.s32 %s344, 1
      %s346 = scalar_select %p343, %s344, %s345
      %p349 = pneg %p343
      %p350 = scmp.eq.s32.totalorder %s36, 15
      %p351 = por %p349, %p350
      %p352 = scmp.ne.s32.totalorder %s344, %s347
      %p353 = scmp.eq.s32.totalorder %s36, 0
      %p354 = por %p352, %p353
      %p355 = scmp.ne.s32.totalorder %s344, %s347
      %p356 = scmp.eq.s32.totalorder %s41, 15
      %p357 = por %p355, %p356
      %p358 = scmp.ne.s32.totalorder %s347, %s348
      %p359 = scmp.eq.s32.totalorder %s41, 0
      %p360 = por %p358, %p359
      %p361 = scmp.ne.s32.totalorder %s347, %s348
      %p362 = scmp.eq.s32.totalorder %s42, 15
      %p363 = por %p361, %p362
      %p365 = scmp.ne.s32.totalorder %s348, %s364
      %p366 = scmp.eq.s32.totalorder %s42, 0
      %p367 = por %p365, %p366
      %p368 = scmp.le.s32.totalorder 1, %s36
      %p369 = scmp.lt.s32.totalorder %s36, 17
      %p370 = pnand %p368, %p369
      %p371 = pneg %p370
      // Predicated region
      $region9: #{tpu_custom_call.1} parent=5 // pred_check
        _
      $region10: #{tpu_custom_call.1} parent=5 // pred_check_branch
        %373 = sbr.rel (%p370) target = $region12
      $region11: #{tpu_custom_call.1} parent=5 // pred_region
        %s374 = ssub.s32 %s36, 1
        // Predicated region
        $region13: #{tpu_custom_call.1} parent=11 // pred_check
          %p375 = pneg %p175
        $region14: #{tpu_custom_call.1} parent=11 // pred_check_branch
          %377 = sbr.rel (%p375) target = $region16
        $region15: #{tpu_custom_call.1} parent=11 // pred_region
          %s379 = ssub.s32 8192, 8192
          %380 = vsyncadd [#allocation12], %s379
          %s381 = sshll.u32 [#allocation13], 4
          %s382 = int_to_ptr.vmem [resolvable:$true] %s381
          %387 = dma.hbm_to_vmem [thread:$0]  %s4, 8192, %s382, [#allocation12], 512, 512, 32
        $region16: #{tpu_custom_call.1} parent=11 // pred_fallthru
          _
        // Predicated region
        $region17: #{tpu_custom_call.1} parent=11 // pred_check
          %p388 = pneg %p196
        $region18: #{tpu_custom_call.1} parent=11 // pred_check_branch
          %390 = sbr.rel (%p388) target = $region20
        $region19: #{tpu_custom_call.1} parent=11 // pred_region
          %s392 = ssub.s32 2048, 2048
          %393 = vsyncadd [#allocation15], %s392
          %s394 = sshll.u32 [#allocation14], 4
          %s395 = int_to_ptr.vmem [resolvable:$true] %s394
          %400 = dma.hbm_to_vmem [thread:$0]  %s5, 2048, %s395, [#allocation15], 128, 128, 8
        $region20: #{tpu_custom_call.1} parent=11 // pred_fallthru
          _
        // Predicated region
        $region21: #{tpu_custom_call.1} parent=11 // pred_check
          %p401 = pneg %p217
        $region22: #{tpu_custom_call.1} parent=11 // pred_check_branch
          %403 = sbr.rel (%p401) target = $region24
        $region23: #{tpu_custom_call.1} parent=11 // pred_region
          _
        $region24: #{tpu_custom_call.1} parent=11 // pred_fallthru
          _
        // Predicated region
        $region25: #{tpu_custom_call.1} parent=11 // pred_check
          %p404 = pneg %p238
        $region26: #{tpu_custom_call.1} parent=11 // pred_check_branch
          %406 = sbr.rel (%p404) target = $region28
        $region27: #{tpu_custom_call.1} parent=11 // pred_region
          _
        $region28: #{tpu_custom_call.1} parent=11 // pred_fallthru
          _
        // Predicated region
        $region29: #{tpu_custom_call.1} parent=11 // pred_check
          %p407 = pneg %p259
        $region30: #{tpu_custom_call.1} parent=11 // pred_check_branch
          %409 = sbr.rel (%p407) target = $region32
        $region31: #{tpu_custom_call.1} parent=11 // pred_region
          _
        $region32: #{tpu_custom_call.1} parent=11 // pred_fallthru
          _
        // Predicated region
        $region33: #{tpu_custom_call.1} parent=11 // pred_check
          %p410 = pneg %p280
        $region34: #{tpu_custom_call.1} parent=11 // pred_check_branch
          %412 = sbr.rel (%p410) target = $region36
        $region35: #{tpu_custom_call.1} parent=11 // pred_region
          _
        $region36: #{tpu_custom_call.1} parent=11 // pred_fallthru
          _
      $region12: #{tpu_custom_call.1} parent=5 // pred_fallthru
        _
      %p413 = scmp.lt.s32.totalorder %s36, 16
      // Predicated region
      $region37: #{tpu_custom_call.1} parent=5 // pred_check
        %p414 = pneg %p413
      $region38: #{tpu_custom_call.1} parent=5 // pred_check_branch
        %416 = sbr.rel (%p414) target = $region40
      $region39: #{tpu_custom_call.1} parent=5 // pred_region
        // Predicated region
        $region41: #{tpu_custom_call.1} parent=39 // pred_check
          %p417 = pneg %p70
        $region42: #{tpu_custom_call.1} parent=39 // pred_check_branch
          %419 = sbr.rel (%p417) target = $region44
        $region43: #{tpu_custom_call.1} parent=39 // pred_region
          %s420 = sand.u32 %s60, 1
          %s421 = scalar_lea.sflag [#allocation6], %s420
          %s422 = sand.u32 %s60, 1
          %s423 = smul.addr %s422, 32
          %s424 = scalar_lea.vmem [#allocation5], %s423
          %s426 = ssub.s32 512, 512
          %427 = vsyncadd %s421, %s426
          %s428 = smul.addr %s43, 4
          %s429 = smul.addr %s44, 8
          %s430 = sadd.s32 %s428, %s429
          %s431 = smul.addr %s430, 128
          %s432 = scalar_lea.hbm %s0, %s431
          %s434 = sshll.u32 %s424, 4
          %s435 = int_to_ptr.vmem [resolvable:$true] %s434
          %437 = dma.hbm_to_vmem [thread:$0]  %s432, 512, %s435, %s421
        $region44: #{tpu_custom_call.1} parent=39 // pred_fallthru
          _
        // Predicated region
        $region45: #{tpu_custom_call.1} parent=39 // pred_check
          %p438 = pneg %p96
        $region46: #{tpu_custom_call.1} parent=39 // pred_check_branch
          %440 = sbr.rel (%p438) target = $region48
        $region47: #{tpu_custom_call.1} parent=39 // pred_region
          %s441 = sand.u32 %s36, 1
          %s442 = scalar_lea.sflag [#allocation9], %s441
          %s443 = sand.u32 %s86, 1
          %s444 = smul.addr %s443, 8
          %s445 = scalar_lea.vmem [#allocation8], %s444
          %s447 = ssub.s32 128, 128
          %448 = vsyncadd %s442, %s447
          %s449 = smul.addr %s43, 128
          %s450 = scalar_lea.hbm %s1, %s449
          %s452 = sshll.u32 %s445, 4
          %s453 = int_to_ptr.vmem [resolvable:$true] %s452
          %455 = dma.hbm_to_vmem [thread:$0]  %s450, 128, %s453, %s442
        $region48: #{tpu_custom_call.1} parent=39 // pred_fallthru
          _
        // Predicated region
        $region49: #{tpu_custom_call.1} parent=39 // pred_check
          %p456 = pneg %p122
        $region50: #{tpu_custom_call.1} parent=39 // pred_check_branch
          %458 = sbr.rel (%p456) target = $region52
        $region51: #{tpu_custom_call.1} parent=39 // pred_region
          %s459 = sand.u32 %s36, 1
          %s460 = scalar_lea.sflag [#allocation9], %s459
          %s461 = sand.u32 %s112, 1
          %s462 = smul.addr %s461, 8
          %s463 = scalar_lea.vmem [#allocation10], %s462
          %s465 = ssub.s32 128, 128
          %466 = vsyncadd %s460, %s465
          %s467 = smul.addr %s43, 128
          %s468 = scalar_lea.hbm %s2, %s467
          %s470 = sshll.u32 %s463, 4
          %s471 = int_to_ptr.vmem [resolvable:$true] %s470
          %473 = dma.hbm_to_vmem [thread:$0]  %s468, 128, %s471, %s460
        $region52: #{tpu_custom_call.1} parent=39 // pred_fallthru
          _
        // Predicated region
        $region53: #{tpu_custom_call.1} parent=39 // pred_check
          %p474 = pneg %p148
        $region54: #{tpu_custom_call.1} parent=39 // pred_check_branch
          %476 = sbr.rel (%p474) target = $region56
        $region55: #{tpu_custom_call.1} parent=39 // pred_region
          %s477 = sand.u32 %s36, 1
          %s478 = scalar_lea.sflag [#allocation12], %s477
          %s479 = sand.u32 %s138, 1
          %s480 = smul.addr %s479, 1024
          %s481 = scalar_lea.vmem [#allocation11], %s480
          %s482 = smul.u32 8, %s43
          %s484 = ssub.s32 16384, 16384
          %485 = vsyncadd %s478, %s484
          %s486 = smul.addr %s482, 16
          %s487 = smul.addr %s486, 128
          %s488 = scalar_lea.hbm %s3, %s487
          %s489 = sshll.u32 %s481, 4
          %s490 = int_to_ptr.vmem [resolvable:$true] %s489
          %495 = dma.hbm_to_vmem [thread:$0]  %s488, 16384, %s490, %s478, 128, 128, 8
        $region56: #{tpu_custom_call.1} parent=39 // pred_fallthru
          _
      $region40: #{tpu_custom_call.1} parent=5 // pred_fallthru
        _
      %p496 = scmp.le.s32.totalorder 1, %s36
      %p497 = scmp.lt.s32.totalorder %s36, 17
      %p498 = pnand %p496, %p497
      %p499 = pneg %p498
      // Predicated region
      $region57: #{tpu_custom_call.1} parent=5 // pred_check
        _
      $region58: #{tpu_custom_call.1} parent=5 // pred_check_branch
        %501 = sbr.rel (%p498) target = $region60
      $region59: #{tpu_custom_call.1} parent=5 // pred_region
        %s502 = ssub.s32 %s36, 1
        %s503 = sand.u32 %s63, 1
        %s504 = scalar_lea.sflag [#allocation6], %s503
        %s505 = sand.u32 %s63, 1
        %s506 = smul.addr %s505, 32
        %s507 = scalar_lea.vmem [#allocation5], %s506
        // Predicated region
        $region61: #{tpu_custom_call.1} parent=59 // pred_check
          %p508 = pneg %p76
        $region62: #{tpu_custom_call.1} parent=59 // pred_check_branch
          %510 = sbr.rel (%p508) target = $region64
        $region63: #{tpu_custom_call.1} parent=59 // pred_region
          %511 = dma.done %s504, 512
        $region64: #{tpu_custom_call.1} parent=59 // pred_fallthru
          _
        %s512 = sand.u32 %s41, 1
        %s513 = scalar_lea.sflag [#allocation9], %s512
        %s514 = sand.u32 %s89, 1
        %s515 = smul.addr %s514, 8
        %s516 = scalar_lea.vmem [#allocation8], %s515
        // Predicated region
        $region65: #{tpu_custom_call.1} parent=59 // pred_check
          %p517 = pneg %p102
        $region66: #{tpu_custom_call.1} parent=59 // pred_check_branch
          %519 = sbr.rel (%p517) target = $region68
        $region67: #{tpu_custom_call.1} parent=59 // pred_region
          %520 = dma.done %s513, 128
        $region68: #{tpu_custom_call.1} parent=59 // pred_fallthru
          _
        %s521 = sand.u32 %s41, 1
        %s522 = scalar_lea.sflag [#allocation9], %s521
        %s523 = sand.u32 %s115, 1
        %s524 = smul.addr %s523, 8
        %s525 = scalar_lea.vmem [#allocation10], %s524
        // Predicated region
        $region69: #{tpu_custom_call.1} parent=59 // pred_check
          %p526 = pneg %p128
        $region70: #{tpu_custom_call.1} parent=59 // pred_check_branch
          %528 = sbr.rel (%p526) target = $region72
        $region71: #{tpu_custom_call.1} parent=59 // pred_region
          %529 = dma.done %s522, 128
        $region72: #{tpu_custom_call.1} parent=59 // pred_fallthru
          _
        %s530 = sand.u32 %s41, 1
        %s531 = scalar_lea.sflag [#allocation12], %s530
        %s532 = sand.u32 %s141, 1
        %s533 = smul.addr %s532, 1024
        %s534 = scalar_lea.vmem [#allocation11], %s533
        // Predicated region
        $region73: #{tpu_custom_call.1} parent=59 // pred_check
          %p535 = pneg %p154
        $region74: #{tpu_custom_call.1} parent=59 // pred_check_branch
          %537 = sbr.rel (%p535) target = $region76
        $region75: #{tpu_custom_call.1} parent=59 // pred_region
          %538 = dma.done %s531, 16384
        $region76: #{tpu_custom_call.1} parent=59 // pred_fallthru
          _
        // Predicated region
        $region77: #{tpu_custom_call.1} parent=59 // pred_check
          %p539 = pneg %p175
        $region78: #{tpu_custom_call.1} parent=59 // pred_check_branch
          %541 = sbr.rel (%p539) target = $region80
        $region79: #{tpu_custom_call.1} parent=59 // pred_region
          %542 = dma.done [#allocation12], 8192
        $region80: #{tpu_custom_call.1} parent=59 // pred_fallthru
          _
        // Predicated region
        $region81: #{tpu_custom_call.1} parent=59 // pred_check
          %p543 = pneg %p196
        $region82: #{tpu_custom_call.1} parent=59 // pred_check_branch
          %545 = sbr.rel (%p543) target = $region84
        $region83: #{tpu_custom_call.1} parent=59 // pred_region
          %546 = dma.done [#allocation15], 2048
        $region84: #{tpu_custom_call.1} parent=59 // pred_fallthru
          _
        %s547 = sand.u32 %s63, 1
        %s548 = scalar_lea.sflag [#allocation6], %s547
        %s549 = sand.u32 %s63, 1
        %s550 = smul.addr %s549, 32
        %s551 = scalar_lea.vmem [#allocation5], %s550
        %p552 = pneg %p76
        %p553 = pneg %p73
        %s554 = sand.u32 %s41, 1
        %s555 = scalar_lea.sflag [#allocation9], %s554
        %s556 = sand.u32 %s89, 1
        %s557 = smul.addr %s556, 8
        %s558 = scalar_lea.vmem [#allocation8], %s557
        %p559 = pneg %p102
        %p560 = pneg %p99
        %s561 = sand.u32 %s41, 1
        %s562 = scalar_lea.sflag [#allocation9], %s561
        %s563 = sand.u32 %s115, 1
        %s564 = smul.addr %s563, 8
        %s565 = scalar_lea.vmem [#allocation10], %s564
        %p566 = pneg %p128
        %p567 = pneg %p125
        %s568 = sand.u32 %s41, 1
        %s569 = scalar_lea.sflag [#allocation12], %s568
        %s570 = sand.u32 %s141, 1
        %s571 = smul.addr %s570, 1024
        %s572 = scalar_lea.vmem [#allocation11], %s571
        %p573 = pneg %p154
        %p574 = pneg %p151
        %p575 = pneg %p175
        %p576 = pneg %p172
        %p577 = pneg %p196
        %p578 = pneg %p193
        %p579 = pneg %p217
        %p580 = pneg %p214
        %p581 = pneg %p238
        %p582 = pneg %p235
        %p583 = pneg %p259
        %p584 = pneg %p256
        %p585 = pneg %p280
        %p586 = pneg %p277
        %p587 = pneg %p308
        %p588 = pneg %p305
        %s589 = sand.u32 %s295, 1
        %s590 = scalar_lea.sflag [#allocation7], %s589
        %s591 = sand.u32 %s295, 1
        %s592 = smul.addr %s591, 8
        %s593 = scalar_lea.vmem [#allocation16], %s592
        %p594 = pneg %p334
        %p595 = pneg %p331
        %s596 = sand.u32 %s41, 1
        %s597 = scalar_lea.sflag [#allocation18], %s596
        %s598 = sand.u32 %s321, 1
        %s599 = smul.addr %s598, 8
        %s600 = scalar_lea.vmem [#allocation17], %s599
        %p601 = pneg %p360
        %p602 = pneg %p357
        %s603 = sand.u32 %s41, 1
        %s604 = scalar_lea.sflag [#allocation18], %s603
        %s605 = sand.u32 %s347, 1
        %s606 = smul.addr %s605, 1024
        %s607 = scalar_lea.vmem [#allocation19], %s606
        %s608 = smul.u32 8, %s45
        %s609 = smul.u32 8, %s45
        %p610 = scmp.eq.s32.totalorder %s46, 0
        // Predicated region
        $region85: #{tpu_custom_call.1} parent=59 // pred_check
          %p611 = pneg %p610
        $region86: #{tpu_custom_call.1} parent=59 // pred_check_branch
          %613 = sbr.rel (%p611) target = $region88
        $region87: #{tpu_custom_call.1} parent=59 // pred_region
          %v614 = vld [vmem:[%s516] sm:$0xff]
          %615 = vst [vmem:[#allocation2] sm:$0xff] %v614
          %v616 = vld [vmem:[%s525] sm:$0xff]
          %617 = vst [vmem:[#allocation3] sm:$0xff] %v616
          %v618 = vld [vmem:[%s534] sm:$0xff]
          %v619 = vld [vmem:[%s534 + $0x8] sm:$0xff]
          %v620 = vld [vmem:[%s534 + $0x10] sm:$0xff]
          %v621 = vld [vmem:[%s534 + $0x18] sm:$0xff]
          %v622 = vld [vmem:[%s534 + $0x20] sm:$0xff]
          %v623 = vld [vmem:[%s534 + $0x28] sm:$0xff]
          %v624 = vld [vmem:[%s534 + $0x30] sm:$0xff]
          %v625 = vld [vmem:[%s534 + $0x38] sm:$0xff]
          %v626 = vld [vmem:[%s534 + $0x40] sm:$0xff]
          %v627 = vld [vmem:[%s534 + $0x48] sm:$0xff]
          %v628 = vld [vmem:[%s534 + $0x50] sm:$0xff]
          %v629 = vld [vmem:[%s534 + $0x58] sm:$0xff]
          %v630 = vld [vmem:[%s534 + $0x60] sm:$0xff]
          %v631 = vld [vmem:[%s534 + $0x68] sm:$0xff]
          %v632 = vld [vmem:[%s534 + $0x70] sm:$0xff]
          %v633 = vld [vmem:[%s534 + $0x78] sm:$0xff]
          %v634 = vld [vmem:[%s534 + $0x80] sm:$0xff]
          %v635 = vld [vmem:[%s534 + $0x88] sm:$0xff]
          %v636 = vld [vmem:[%s534 + $0x90] sm:$0xff]
          %v637 = vld [vmem:[%s534 + $0x98] sm:$0xff]
          %v638 = vld [vmem:[%s534 + $0xa0] sm:$0xff]
          %v639 = vld [vmem:[%s534 + $0xa8] sm:$0xff]
          %v640 = vld [vmem:[%s534 + $0xb0] sm:$0xff]
          %v641 = vld [vmem:[%s534 + $0xb8] sm:$0xff]
          %v642 = vld [vmem:[%s534 + $0xc0] sm:$0xff]
          %v643 = vld [vmem:[%s534 + $0xc8] sm:$0xff]
          %v644 = vld [vmem:[%s534 + $0xd0] sm:$0xff]
          %v645 = vld [vmem:[%s534 + $0xd8] sm:$0xff]
          %v646 = vld [vmem:[%s534 + $0xe0] sm:$0xff]
          %v647 = vld [vmem:[%s534 + $0xe8] sm:$0xff]
          %v648 = vld [vmem:[%s534 + $0xf0] sm:$0xff]
          %v649 = vld [vmem:[%s534 + $0xf8] sm:$0xff]
          %v650 = vld [vmem:[%s534 + $0x100] sm:$0xff]
          %v651 = vld [vmem:[%s534 + $0x108] sm:$0xff]
          %v652 = vld [vmem:[%s534 + $0x110] sm:$0xff]
          %v653 = vld [vmem:[%s534 + $0x118] sm:$0xff]
          %v654 = vld [vmem:[%s534 + $0x120] sm:$0xff]
          %v655 = vld [vmem:[%s534 + $0x128] sm:$0xff]
          %v656 = vld [vmem:[%s534 + $0x130] sm:$0xff]
          %v657 = vld [vmem:[%s534 + $0x138] sm:$0xff]
          %v658 = vld [vmem:[%s534 + $0x140] sm:$0xff]
          %v659 = vld [vmem:[%s534 + $0x148] sm:$0xff]
          %v660 = vld [vmem:[%s534 + $0x150] sm:$0xff]
          %v661 = vld [vmem:[%s534 + $0x158] sm:$0xff]
          %v662 = vld [vmem:[%s534 + $0x160] sm:$0xff]
          %v663 = vld [vmem:[%s534 + $0x168] sm:$0xff]
          %v664 = vld [vmem:[%s534 + $0x170] sm:$0xff]
          %v665 = vld [vmem:[%s534 + $0x178] sm:$0xff]
          %v666 = vld [vmem:[%s534 + $0x180] sm:$0xff]
          %v667 = vld [vmem:[%s534 + $0x188] sm:$0xff]
          %v668 = vld [vmem:[%s534 + $0x190] sm:$0xff]
          %v669 = vld [vmem:[%s534 + $0x198] sm:$0xff]
          %v670 = vld [vmem:[%s534 + $0x1a0] sm:$0xff]
          %v671 = vld [vmem:[%s534 + $0x1a8] sm:$0xff]
          %v672 = vld [vmem:[%s534 + $0x1b0] sm:$0xff]
          %v673 = vld [vmem:[%s534 + $0x1b8] sm:$0xff]
          %v674 = vld [vmem:[%s534 + $0x1c0] sm:$0xff]
          %v675 = vld [vmem:[%s534 + $0x1c8] sm:$0xff]
          %v676 = vld [vmem:[%s534 + $0x1d0] sm:$0xff]
          %v677 = vld [vmem:[%s534 + $0x1d8] sm:$0xff]
          %v678 = vld [vmem:[%s534 + $0x1e0] sm:$0xff]
          %v679 = vld [vmem:[%s534 + $0x1e8] sm:$0xff]
          %v680 = vld [vmem:[%s534 + $0x1f0] sm:$0xff]
          %v681 = vld [vmem:[%s534 + $0x1f8] sm:$0xff]
          %v682 = vld [vmem:[%s534 + $0x200] sm:$0xff]
          %v683 = vld [vmem:[%s534 + $0x208] sm:$0xff]
          %v684 = vld [vmem:[%s534 + $0x210] sm:$0xff]
          %v685 = vld [vmem:[%s534 + $0x218] sm:$0xff]
          %v686 = vld [vmem:[%s534 + $0x220] sm:$0xff]
          %v687 = vld [vmem:[%s534 + $0x228] sm:$0xff]
          %v688 = vld [vmem:[%s534 + $0x230] sm:$0xff]
          %v689 = vld [vmem:[%s534 + $0x238] sm:$0xff]
          %v690 = vld [vmem:[%s534 + $0x240] sm:$0xff]
          %v691 = vld [vmem:[%s534 + $0x248] sm:$0xff]
          %v692 = vld [vmem:[%s534 + $0x250] sm:$0xff]
          %v693 = vld [vmem:[%s534 + $0x258] sm:$0xff]
          %v694 = vld [vmem:[%s534 + $0x260] sm:$0xff]
          %v695 = vld [vmem:[%s534 + $0x268] sm:$0xff]
          %v696 = vld [vmem:[%s534 + $0x270] sm:$0xff]
          %v697 = vld [vmem:[%s534 + $0x278] sm:$0xff]
          %v698 = vld [vmem:[%s534 + $0x280] sm:$0xff]
          %v699 = vld [vmem:[%s534 + $0x288] sm:$0xff]
          %v700 = vld [vmem:[%s534 + $0x290] sm:$0xff]
          %v701 = vld [vmem:[%s534 + $0x298] sm:$0xff]
          %v702 = vld [vmem:[%s534 + $0x2a0] sm:$0xff]
          %v703 = vld [vmem:[%s534 + $0x2a8] sm:$0xff]
          %v704 = vld [vmem:[%s534 + $0x2b0] sm:$0xff]
          %v705 = vld [vmem:[%s534 + $0x2b8] sm:$0xff]
          %v706 = vld [vmem:[%s534 + $0x2c0] sm:$0xff]
          %v707 = vld [vmem:[%s534 + $0x2c8] sm:$0xff]
          %v708 = vld [vmem:[%s534 + $0x2d0] sm:$0xff]
          %v709 = vld [vmem:[%s534 + $0x2d8] sm:$0xff]
          %v710 = vld [vmem:[%s534 + $0x2e0] sm:$0xff]
          %v711 = vld [vmem:[%s534 + $0x2e8] sm:$0xff]
          %v712 = vld [vmem:[%s534 + $0x2f0] sm:$0xff]
          %v713 = vld [vmem:[%s534 + $0x2f8] sm:$0xff]
          %v714 = vld [vmem:[%s534 + $0x300] sm:$0xff]
          %v715 = vld [vmem:[%s534 + $0x308] sm:$0xff]
          %v716 = vld [vmem:[%s534 + $0x310] sm:$0xff]
          %v717 = vld [vmem:[%s534 + $0x318] sm:$0xff]
          %v718 = vld [vmem:[%s534 + $0x320] sm:$0xff]
          %v719 = vld [vmem:[%s534 + $0x328] sm:$0xff]
          %v720 = vld [vmem:[%s534 + $0x330] sm:$0xff]
          %v721 = vld [vmem:[%s534 + $0x338] sm:$0xff]
          %v722 = vld [vmem:[%s534 + $0x340] sm:$0xff]
          %v723 = vld [vmem:[%s534 + $0x348] sm:$0xff]
          %v724 = vld [vmem:[%s534 + $0x350] sm:$0xff]
          %v725 = vld [vmem:[%s534 + $0x358] sm:$0xff]
          %v726 = vld [vmem:[%s534 + $0x360] sm:$0xff]
          %v727 = vld [vmem:[%s534 + $0x368] sm:$0xff]
          %v728 = vld [vmem:[%s534 + $0x370] sm:$0xff]
          %v729 = vld [vmem:[%s534 + $0x378] sm:$0xff]
          %v730 = vld [vmem:[%s534 + $0x380] sm:$0xff]
          %v731 = vld [vmem:[%s534 + $0x388] sm:$0xff]
          %v732 = vld [vmem:[%s534 + $0x390] sm:$0xff]
          %v733 = vld [vmem:[%s534 + $0x398] sm:$0xff]
          %v734 = vld [vmem:[%s534 + $0x3a0] sm:$0xff]
          %v735 = vld [vmem:[%s534 + $0x3a8] sm:$0xff]
          %v736 = vld [vmem:[%s534 + $0x3b0] sm:$0xff]
          %v737 = vld [vmem:[%s534 + $0x3b8] sm:$0xff]
          %v738 = vld [vmem:[%s534 + $0x3c0] sm:$0xff]
          %v739 = vld [vmem:[%s534 + $0x3c8] sm:$0xff]
          %v740 = vld [vmem:[%s534 + $0x3d0] sm:$0xff]
          %v741 = vld [vmem:[%s534 + $0x3d8] sm:$0xff]
          %v742 = vld [vmem:[%s534 + $0x3e0] sm:$0xff]
          %v743 = vld [vmem:[%s534 + $0x3e8] sm:$0xff]
          %v744 = vld [vmem:[%s534 + $0x3f0] sm:$0xff]
          %v745 = vld [vmem:[%s534 + $0x3f8] sm:$0xff]
          %746 = vst [vmem:[%s607] sm:$0xff] %v618
          %747 = vst [vmem:[%s607 + $0x8] sm:$0xff] %v619
          %748 = vst [vmem:[%s607 + $0x10] sm:$0xff] %v620
          %749 = vst [vmem:[%s607 + $0x18] sm:$0xff] %v621
          %750 = vst [vmem:[%s607 + $0x20] sm:$0xff] %v622
          %751 = vst [vmem:[%s607 + $0x28] sm:$0xff] %v623
          %752 = vst [vmem:[%s607 + $0x30] sm:$0xff] %v624
          %753 = vst [vmem:[%s607 + $0x38] sm:$0xff] %v625
          %754 = vst [vmem:[%s607 + $0x40] sm:$0xff] %v626
          %755 = vst [vmem:[%s607 + $0x48] sm:$0xff] %v627
          %756 = vst [vmem:[%s607 + $0x50] sm:$0xff] %v628
          %757 = vst [vmem:[%s607 + $0x58] sm:$0xff] %v629
          %758 = vst [vmem:[%s607 + $0x60] sm:$0xff] %v630
          %759 = vst [vmem:[%s607 + $0x68] sm:$0xff] %v631
          %760 = vst [vmem:[%s607 + $0x70] sm:$0xff] %v632
          %761 = vst [vmem:[%s607 + $0x78] sm:$0xff] %v633
          %762 = vst [vmem:[%s607 + $0x80] sm:$0xff] %v634
          %763 = vst [vmem:[%s607 + $0x88] sm:$0xff] %v635
          %764 = vst [vmem:[%s607 + $0x90] sm:$0xff] %v636
          %765 = vst [vmem:[%s607 + $0x98] sm:$0xff] %v637
          %766 = vst [vmem:[%s607 + $0xa0] sm:$0xff] %v638
          %767 = vst [vmem:[%s607 + $0xa8] sm:$0xff] %v639
          %768 = vst [vmem:[%s607 + $0xb0] sm:$0xff] %v640
          %769 = vst [vmem:[%s607 + $0xb8] sm:$0xff] %v641
          %770 = vst [vmem:[%s607 + $0xc0] sm:$0xff] %v642
          %771 = vst [vmem:[%s607 + $0xc8] sm:$0xff] %v643
          %772 = vst [vmem:[%s607 + $0xd0] sm:$0xff] %v644
          %773 = vst [vmem:[%s607 + $0xd8] sm:$0xff] %v645
          %774 = vst [vmem:[%s607 + $0xe0] sm:$0xff] %v646
          %775 = vst [vmem:[%s607 + $0xe8] sm:$0xff] %v647
          %776 = vst [vmem:[%s607 + $0xf0] sm:$0xff] %v648
          %777 = vst [vmem:[%s607 + $0xf8] sm:$0xff] %v649
          %778 = vst [vmem:[%s607 + $0x100] sm:$0xff] %v650
          %779 = vst [vmem:[%s607 + $0x108] sm:$0xff] %v651
          %780 = vst [vmem:[%s607 + $0x110] sm:$0xff] %v652
          %781 = vst [vmem:[%s607 + $0x118] sm:$0xff] %v653
          %782 = vst [vmem:[%s607 + $0x120] sm:$0xff] %v654
          %783 = vst [vmem:[%s607 + $0x128] sm:$0xff] %v655
          %784 = vst [vmem:[%s607 + $0x130] sm:$0xff] %v656
          %785 = vst [vmem:[%s607 + $0x138] sm:$0xff] %v657
          %786 = vst [vmem:[%s607 + $0x140] sm:$0xff] %v658
          %787 = vst [vmem:[%s607 + $0x148] sm:$0xff] %v659
          %788 = vst [vmem:[%s607 + $0x150] sm:$0xff] %v660
          %789 = vst [vmem:[%s607 + $0x158] sm:$0xff] %v661
          %790 = vst [vmem:[%s607 + $0x160] sm:$0xff] %v662
          %791 = vst [vmem:[%s607 + $0x168] sm:$0xff] %v663
          %792 = vst [vmem:[%s607 + $0x170] sm:$0xff] %v664
          %793 = vst [vmem:[%s607 + $0x178] sm:$0xff] %v665
          %794 = vst [vmem:[%s607 + $0x180] sm:$0xff] %v666
          %795 = vst [vmem:[%s607 + $0x188] sm:$0xff] %v667
          %796 = vst [vmem:[%s607 + $0x190] sm:$0xff] %v668
          %797 = vst [vmem:[%s607 + $0x198] sm:$0xff] %v669
          %798 = vst [vmem:[%s607 + $0x1a0] sm:$0xff] %v670
          %799 = vst [vmem:[%s607 + $0x1a8] sm:$0xff] %v671
          %800 = vst [vmem:[%s607 + $0x1b0] sm:$0xff] %v672
          %801 = vst [vmem:[%s607 + $0x1b8] sm:$0xff] %v673
          %802 = vst [vmem:[%s607 + $0x1c0] sm:$0xff] %v674
          %803 = vst [vmem:[%s607 + $0x1c8] sm:$0xff] %v675
          %804 = vst [vmem:[%s607 + $0x1d0] sm:$0xff] %v676
          %805 = vst [vmem:[%s607 + $0x1d8] sm:$0xff] %v677
          %806 = vst [vmem:[%s607 + $0x1e0] sm:$0xff] %v678
          %807 = vst [vmem:[%s607 + $0x1e8] sm:$0xff] %v679
          %808 = vst [vmem:[%s607 + $0x1f0] sm:$0xff] %v680
          %809 = vst [vmem:[%s607 + $0x1f8] sm:$0xff] %v681
          %810 = vst [vmem:[%s607 + $0x200] sm:$0xff] %v682
          %811 = vst [vmem:[%s607 + $0x208] sm:$0xff] %v683
          %812 = vst [vmem:[%s607 + $0x210] sm:$0xff] %v684
          %813 = vst [vmem:[%s607 + $0x218] sm:$0xff] %v685
          %814 = vst [vmem:[%s607 + $0x220] sm:$0xff] %v686
          %815 = vst [vmem:[%s607 + $0x228] sm:$0xff] %v687
          %816 = vst [vmem:[%s607 + $0x230] sm:$0xff] %v688
          %817 = vst [vmem:[%s607 + $0x238] sm:$0xff] %v689
          %818 = vst [vmem:[%s607 + $0x240] sm:$0xff] %v690
          %819 = vst [vmem:[%s607 + $0x248] sm:$0xff] %v691
          %820 = vst [vmem:[%s607 + $0x250] sm:$0xff] %v692
          %821 = vst [vmem:[%s607 + $0x258] sm:$0xff] %v693
          %822 = vst [vmem:[%s607 + $0x260] sm:$0xff] %v694
          %823 = vst [vmem:[%s607 + $0x268] sm:$0xff] %v695
          %824 = vst [vmem:[%s607 + $0x270] sm:$0xff] %v696
          %825 = vst [vmem:[%s607 + $0x278] sm:$0xff] %v697
          %826 = vst [vmem:[%s607 + $0x280] sm:$0xff] %v698
          %827 = vst [vmem:[%s607 + $0x288] sm:$0xff] %v699
          %828 = vst [vmem:[%s607 + $0x290] sm:$0xff] %v700
          %829 = vst [vmem:[%s607 + $0x298] sm:$0xff] %v701
          %830 = vst [vmem:[%s607 + $0x2a0] sm:$0xff] %v702
          %831 = vst [vmem:[%s607 + $0x2a8] sm:$0xff] %v703
          %832 = vst [vmem:[%s607 + $0x2b0] sm:$0xff] %v704
          %833 = vst [vmem:[%s607 + $0x2b8] sm:$0xff] %v705
          %834 = vst [vmem:[%s607 + $0x2c0] sm:$0xff] %v706
          %835 = vst [vmem:[%s607 + $0x2c8] sm:$0xff] %v707
          %836 = vst [vmem:[%s607 + $0x2d0] sm:$0xff] %v708
          %837 = vst [vmem:[%s607 + $0x2d8] sm:$0xff] %v709
          %838 = vst [vmem:[%s607 + $0x2e0] sm:$0xff] %v710
          %839 = vst [vmem:[%s607 + $0x2e8] sm:$0xff] %v711
          %840 = vst [vmem:[%s607 + $0x2f0] sm:$0xff] %v712
          %841 = vst [vmem:[%s607 + $0x2f8] sm:$0xff] %v713
          %842 = vst [vmem:[%s607 + $0x300] sm:$0xff] %v714
          %843 = vst [vmem:[%s607 + $0x308] sm:$0xff] %v715
          %844 = vst [vmem:[%s607 + $0x310] sm:$0xff] %v716
          %845 = vst [vmem:[%s607 + $0x318] sm:$0xff] %v717
          %846 = vst [vmem:[%s607 + $0x320] sm:$0xff] %v718
          %847 = vst [vmem:[%s607 + $0x328] sm:$0xff] %v719
          %848 = vst [vmem:[%s607 + $0x330] sm:$0xff] %v720
          %849 = vst [vmem:[%s607 + $0x338] sm:$0xff] %v721
          %850 = vst [vmem:[%s607 + $0x340] sm:$0xff] %v722
          %851 = vst [vmem:[%s607 + $0x348] sm:$0xff] %v723
          %852 = vst [vmem:[%s607 + $0x350] sm:$0xff] %v724
          %853 = vst [vmem:[%s607 + $0x358] sm:$0xff] %v725
          %854 = vst [vmem:[%s607 + $0x360] sm:$0xff] %v726
          %855 = vst [vmem:[%s607 + $0x368] sm:$0xff] %v727
          %856 = vst [vmem:[%s607 + $0x370] sm:$0xff] %v728
          %857 = vst [vmem:[%s607 + $0x378] sm:$0xff] %v729
          %858 = vst [vmem:[%s607 + $0x380] sm:$0xff] %v730
          %859 = vst [vmem:[%s607 + $0x388] sm:$0xff] %v731
          %860 = vst [vmem:[%s607 + $0x390] sm:$0xff] %v732
          %861 = vst [vmem:[%s607 + $0x398] sm:$0xff] %v733
          %862 = vst [vmem:[%s607 + $0x3a0] sm:$0xff] %v734
          %863 = vst [vmem:[%s607 + $0x3a8] sm:$0xff] %v735
          %864 = vst [vmem:[%s607 + $0x3b0] sm:$0xff] %v736
          %865 = vst [vmem:[%s607 + $0x3b8] sm:$0xff] %v737
          %866 = vst [vmem:[%s607 + $0x3c0] sm:$0xff] %v738
          %867 = vst [vmem:[%s607 + $0x3c8] sm:$0xff] %v739
          %868 = vst [vmem:[%s607 + $0x3d0] sm:$0xff] %v740
          %869 = vst [vmem:[%s607 + $0x3d8] sm:$0xff] %v741
          %870 = vst [vmem:[%s607 + $0x3e0] sm:$0xff] %v742
          %871 = vst [vmem:[%s607 + $0x3e8] sm:$0xff] %v743
          %872 = vst [vmem:[%s607 + $0x3f0] sm:$0xff] %v744
          %873 = vst [vmem:[%s607 + $0x3f8] sm:$0xff] %v745
        $region88: #{tpu_custom_call.1} parent=59 // pred_fallthru
          _
        %v874 = vld [vmem:[#allocation2] sm:$0xff]
        %v875 = vld [vmem:[#allocation3] sm:$0xff]
        %v876 = vld [vmem:[%s607] sm:$0xff]
        %v877 = vld [vmem:[%s607 + $0x8] sm:$0xff]
        %v878 = vld [vmem:[%s607 + $0x10] sm:$0xff]
        %v879 = vld [vmem:[%s607 + $0x18] sm:$0xff]
        %v880 = vld [vmem:[%s607 + $0x20] sm:$0xff]
        %v881 = vld [vmem:[%s607 + $0x28] sm:$0xff]
        %v882 = vld [vmem:[%s607 + $0x30] sm:$0xff]
        %v883 = vld [vmem:[%s607 + $0x38] sm:$0xff]
        %v884 = vld [vmem:[%s607 + $0x40] sm:$0xff]
        %v885 = vld [vmem:[%s607 + $0x48] sm:$0xff]
        %v886 = vld [vmem:[%s607 + $0x50] sm:$0xff]
        %v887 = vld [vmem:[%s607 + $0x58] sm:$0xff]
        %v888 = vld [vmem:[%s607 + $0x60] sm:$0xff]
        %v889 = vld [vmem:[%s607 + $0x68] sm:$0xff]
        %v890 = vld [vmem:[%s607 + $0x70] sm:$0xff]
        %v891 = vld [vmem:[%s607 + $0x78] sm:$0xff]
        %v892 = vld [vmem:[%s607 + $0x80] sm:$0xff]
        %v893 = vld [vmem:[%s607 + $0x88] sm:$0xff]
        %v894 = vld [vmem:[%s607 + $0x90] sm:$0xff]
        %v895 = vld [vmem:[%s607 + $0x98] sm:$0xff]
        %v896 = vld [vmem:[%s607 + $0xa0] sm:$0xff]
        %v897 = vld [vmem:[%s607 + $0xa8] sm:$0xff]
        %v898 = vld [vmem:[%s607 + $0xb0] sm:$0xff]
        %v899 = vld [vmem:[%s607 + $0xb8] sm:$0xff]
        %v900 = vld [vmem:[%s607 + $0xc0] sm:$0xff]
        %v901 = vld [vmem:[%s607 + $0xc8] sm:$0xff]
        %v902 = vld [vmem:[%s607 + $0xd0] sm:$0xff]
        %v903 = vld [vmem:[%s607 + $0xd8] sm:$0xff]
        %v904 = vld [vmem:[%s607 + $0xe0] sm:$0xff]
        %v905 = vld [vmem:[%s607 + $0xe8] sm:$0xff]
        %v906 = vld [vmem:[%s607 + $0xf0] sm:$0xff]
        %v907 = vld [vmem:[%s607 + $0xf8] sm:$0xff]
        %v908 = vld [vmem:[%s607 + $0x100] sm:$0xff]
        %v909 = vld [vmem:[%s607 + $0x108] sm:$0xff]
        %v910 = vld [vmem:[%s607 + $0x110] sm:$0xff]
        %v911 = vld [vmem:[%s607 + $0x118] sm:$0xff]
        %v912 = vld [vmem:[%s607 + $0x120] sm:$0xff]
        %v913 = vld [vmem:[%s607 + $0x128] sm:$0xff]
        %v914 = vld [vmem:[%s607 + $0x130] sm:$0xff]
        %v915 = vld [vmem:[%s607 + $0x138] sm:$0xff]
        %v916 = vld [vmem:[%s607 + $0x140] sm:$0xff]
        %v917 = vld [vmem:[%s607 + $0x148] sm:$0xff]
        %v918 = vld [vmem:[%s607 + $0x150] sm:$0xff]
        %v919 = vld [vmem:[%s607 + $0x158] sm:$0xff]
        %v920 = vld [vmem:[%s607 + $0x160] sm:$0xff]
        %v921 = vld [vmem:[%s607 + $0x168] sm:$0xff]
        %v922 = vld [vmem:[%s607 + $0x170] sm:$0xff]
        %v923 = vld [vmem:[%s607 + $0x178] sm:$0xff]
        %v924 = vld [vmem:[%s607 + $0x180] sm:$0xff]
        %v925 = vld [vmem:[%s607 + $0x188] sm:$0xff]
        %v926 = vld [vmem:[%s607 + $0x190] sm:$0xff]
        %v927 = vld [vmem:[%s607 + $0x198] sm:$0xff]
        %v928 = vld [vmem:[%s607 + $0x1a0] sm:$0xff]
        %v929 = vld [vmem:[%s607 + $0x1a8] sm:$0xff]
        %v930 = vld [vmem:[%s607 + $0x1b0] sm:$0xff]
        %v931 = vld [vmem:[%s607 + $0x1b8] sm:$0xff]
        %v932 = vld [vmem:[%s607 + $0x1c0] sm:$0xff]
        %v933 = vld [vmem:[%s607 + $0x1c8] sm:$0xff]
        %v934 = vld [vmem:[%s607 + $0x1d0] sm:$0xff]
        %v935 = vld [vmem:[%s607 + $0x1d8] sm:$0xff]
        %v936 = vld [vmem:[%s607 + $0x1e0] sm:$0xff]
        %v937 = vld [vmem:[%s607 + $0x1e8] sm:$0xff]
        %v938 = vld [vmem:[%s607 + $0x1f0] sm:$0xff]
        %v939 = vld [vmem:[%s607 + $0x1f8] sm:$0xff]
        %v940 = vld [vmem:[%s607 + $0x200] sm:$0xff]
        %v941 = vld [vmem:[%s607 + $0x208] sm:$0xff]
        %v942 = vld [vmem:[%s607 + $0x210] sm:$0xff]
        %v943 = vld [vmem:[%s607 + $0x218] sm:$0xff]
        %v944 = vld [vmem:[%s607 + $0x220] sm:$0xff]
        %v945 = vld [vmem:[%s607 + $0x228] sm:$0xff]
        %v946 = vld [vmem:[%s607 + $0x230] sm:$0xff]
        %v947 = vld [vmem:[%s607 + $0x238] sm:$0xff]
        %v948 = vld [vmem:[%s607 + $0x240] sm:$0xff]
        %v949 = vld [vmem:[%s607 + $0x248] sm:$0xff]
        %v950 = vld [vmem:[%s607 + $0x250] sm:$0xff]
        %v951 = vld [vmem:[%s607 + $0x258] sm:$0xff]
        %v952 = vld [vmem:[%s607 + $0x260] sm:$0xff]
        %v953 = vld [vmem:[%s607 + $0x268] sm:$0xff]
        %v954 = vld [vmem:[%s607 + $0x270] sm:$0xff]
        %v955 = vld [vmem:[%s607 + $0x278] sm:$0xff]
        %v956 = vld [vmem:[%s607 + $0x280] sm:$0xff]
        %v957 = vld [vmem:[%s607 + $0x288] sm:$0xff]
        %v958 = vld [vmem:[%s607 + $0x290] sm:$0xff]
        %v959 = vld [vmem:[%s607 + $0x298] sm:$0xff]
        %v960 = vld [vmem:[%s607 + $0x2a0] sm:$0xff]
        %v961 = vld [vmem:[%s607 + $0x2a8] sm:$0xff]
        %v962 = vld [vmem:[%s607 + $0x2b0] sm:$0xff]
        %v963 = vld [vmem:[%s607 + $0x2b8] sm:$0xff]
        %v964 = vld [vmem:[%s607 + $0x2c0] sm:$0xff]
        %v965 = vld [vmem:[%s607 + $0x2c8] sm:$0xff]
        %v966 = vld [vmem:[%s607 + $0x2d0] sm:$0xff]
        %v967 = vld [vmem:[%s607 + $0x2d8] sm:$0xff]
        %v968 = vld [vmem:[%s607 + $0x2e0] sm:$0xff]
        %v969 = vld [vmem:[%s607 + $0x2e8] sm:$0xff]
        %v970 = vld [vmem:[%s607 + $0x2f0] sm:$0xff]
        %v971 = vld [vmem:[%s607 + $0x2f8] sm:$0xff]
        %v972 = vld [vmem:[%s607 + $0x300] sm:$0xff]
        %v973 = vld [vmem:[%s607 + $0x308] sm:$0xff]
        %v974 = vld [vmem:[%s607 + $0x310] sm:$0xff]
        %v975 = vld [vmem:[%s607 + $0x318] sm:$0xff]
        %v976 = vld [vmem:[%s607 + $0x320] sm:$0xff]
        %v977 = vld [vmem:[%s607 + $0x328] sm:$0xff]
        %v978 = vld [vmem:[%s607 + $0x330] sm:$0xff]
        %v979 = vld [vmem:[%s607 + $0x338] sm:$0xff]
        %v980 = vld [vmem:[%s607 + $0x340] sm:$0xff]
        %v981 = vld [vmem:[%s607 + $0x348] sm:$0xff]
        %v982 = vld [vmem:[%s607 + $0x350] sm:$0xff]
        %v983 = vld [vmem:[%s607 + $0x358] sm:$0xff]
        %v984 = vld [vmem:[%s607 + $0x360] sm:$0xff]
        %v985 = vld [vmem:[%s607 + $0x368] sm:$0xff]
        %v986 = vld [vmem:[%s607 + $0x370] sm:$0xff]
        %v987 = vld [vmem:[%s607 + $0x378] sm:$0xff]
        %v988 = vld [vmem:[%s607 + $0x380] sm:$0xff]
        %v989 = vld [vmem:[%s607 + $0x388] sm:$0xff]
        %v990 = vld [vmem:[%s607 + $0x390] sm:$0xff]
        %v991 = vld [vmem:[%s607 + $0x398] sm:$0xff]
        %v992 = vld [vmem:[%s607 + $0x3a0] sm:$0xff]
        %v993 = vld [vmem:[%s607 + $0x3a8] sm:$0xff]
        %v994 = vld [vmem:[%s607 + $0x3b0] sm:$0xff]
        %v995 = vld [vmem:[%s607 + $0x3b8] sm:$0xff]
        %v996 = vld [vmem:[%s607 + $0x3c0] sm:$0xff]
        %v997 = vld [vmem:[%s607 + $0x3c8] sm:$0xff]
        %v998 = vld [vmem:[%s607 + $0x3d0] sm:$0xff]
        %v999 = vld [vmem:[%s607 + $0x3d8] sm:$0xff]
        %v1000 = vld [vmem:[%s607 + $0x3e0] sm:$0xff]
        %v1001 = vld [vmem:[%s607 + $0x3e8] sm:$0xff]
        %v1002 = vld [vmem:[%s607 + $0x3f0] sm:$0xff]
        %v1003 = vld [vmem:[%s607 + $0x3f8] sm:$0xff]
        %v1004 = vld [vmem:[%s507] sm:$0xff]
        %v1005 = vld [vmem:[%s507 + $0x8] sm:$0xff]
        %v1006 = vld [vmem:[%s507 + $0x10] sm:$0xff]
        %v1007 = vld [vmem:[%s507 + $0x18] sm:$0xff]
        %v1008 = vld [vmem:[#allocation13] sm:$0xff]
        %v1009 = vld [vmem:[#allocation13 + $0x8] sm:$0xff]
        %v1010 = vld [vmem:[#allocation13 + $0x10] sm:$0xff]
        %v1011 = vld [vmem:[#allocation13 + $0x18] sm:$0xff]
        %v1012 = vld [vmem:[#allocation13 + $0x20] sm:$0xff]
        %v1013 = vld [vmem:[#allocation13 + $0x28] sm:$0xff]
        %v1014 = vld [vmem:[#allocation13 + $0x30] sm:$0xff]
        %v1015 = vld [vmem:[#allocation13 + $0x38] sm:$0xff]
        %v1016 = vld [vmem:[#allocation13 + $0x40] sm:$0xff]
        %v1017 = vld [vmem:[#allocation13 + $0x48] sm:$0xff]
        %v1018 = vld [vmem:[#allocation13 + $0x50] sm:$0xff]
        %v1019 = vld [vmem:[#allocation13 + $0x58] sm:$0xff]
        %v1020 = vld [vmem:[#allocation13 + $0x60] sm:$0xff]
        %v1021 = vld [vmem:[#allocation13 + $0x68] sm:$0xff]
        %v1022 = vld [vmem:[#allocation13 + $0x70] sm:$0xff]
        %v1023 = vld [vmem:[#allocation13 + $0x78] sm:$0xff]
        %v1024 = vld [vmem:[#allocation13 + $0x80] sm:$0xff]
        %v1025 = vld [vmem:[#allocation13 + $0x88] sm:$0xff]
        %v1026 = vld [vmem:[#allocation13 + $0x90] sm:$0xff]
        %v1027 = vld [vmem:[#allocation13 + $0x98] sm:$0xff]
        %v1028 = vld [vmem:[#allocation13 + $0xa0] sm:$0xff]
        %v1029 = vld [vmem:[#allocation13 + $0xa8] sm:$0xff]
        %v1030 = vld [vmem:[#allocation13 + $0xb0] sm:$0xff]
        %v1031 = vld [vmem:[#allocation13 + $0xb8] sm:$0xff]
        %v1032 = vld [vmem:[#allocation13 + $0xc0] sm:$0xff]
        %v1033 = vld [vmem:[#allocation13 + $0xc8] sm:$0xff]
        %v1034 = vld [vmem:[#allocation13 + $0xd0] sm:$0xff]
        %v1035 = vld [vmem:[#allocation13 + $0xd8] sm:$0xff]
        %v1036 = vld [vmem:[#allocation13 + $0xe0] sm:$0xff]
        %v1037 = vld [vmem:[#allocation13 + $0xe8] sm:$0xff]
        %v1038 = vld [vmem:[#allocation13 + $0xf0] sm:$0xff]
        %v1039 = vld [vmem:[#allocation13 + $0xf8] sm:$0xff]
        %v1040 = vld [vmem:[#allocation13 + $0x100] sm:$0xff]
        %v1041 = vld [vmem:[#allocation13 + $0x108] sm:$0xff]
        %v1042 = vld [vmem:[#allocation13 + $0x110] sm:$0xff]
        %v1043 = vld [vmem:[#allocation13 + $0x118] sm:$0xff]
        %v1044 = vld [vmem:[#allocation13 + $0x120] sm:$0xff]
        %v1045 = vld [vmem:[#allocation13 + $0x128] sm:$0xff]
        %v1046 = vld [vmem:[#allocation13 + $0x130] sm:$0xff]
        %v1047 = vld [vmem:[#allocation13 + $0x138] sm:$0xff]
        %v1048 = vld [vmem:[#allocation13 + $0x140] sm:$0xff]
        %v1049 = vld [vmem:[#allocation13 + $0x148] sm:$0xff]
        %v1050 = vld [vmem:[#allocation13 + $0x150] sm:$0xff]
        %v1051 = vld [vmem:[#allocation13 + $0x158] sm:$0xff]
        %v1052 = vld [vmem:[#allocation13 + $0x160] sm:$0xff]
        %v1053 = vld [vmem:[#allocation13 + $0x168] sm:$0xff]
        %v1054 = vld [vmem:[#allocation13 + $0x170] sm:$0xff]
        %v1055 = vld [vmem:[#allocation13 + $0x178] sm:$0xff]
        %v1056 = vld [vmem:[#allocation13 + $0x180] sm:$0xff]
        %v1057 = vld [vmem:[#allocation13 + $0x188] sm:$0xff]
        %v1058 = vld [vmem:[#allocation13 + $0x190] sm:$0xff]
        %v1059 = vld [vmem:[#allocation13 + $0x198] sm:$0xff]
        %v1060 = vld [vmem:[#allocation13 + $0x1a0] sm:$0xff]
        %v1061 = vld [vmem:[#allocation13 + $0x1a8] sm:$0xff]
        %v1062 = vld [vmem:[#allocation13 + $0x1b0] sm:$0xff]
        %v1063 = vld [vmem:[#allocation13 + $0x1b8] sm:$0xff]
        %v1064 = vld [vmem:[#allocation13 + $0x1c0] sm:$0xff]
        %v1065 = vld [vmem:[#allocation13 + $0x1c8] sm:$0xff]
        %v1066 = vld [vmem:[#allocation13 + $0x1d0] sm:$0xff]
        %v1067 = vld [vmem:[#allocation13 + $0x1d8] sm:$0xff]
        %v1068 = vld [vmem:[#allocation13 + $0x1e0] sm:$0xff]
        %v1069 = vld [vmem:[#allocation13 + $0x1e8] sm:$0xff]
        %v1070 = vld [vmem:[#allocation13 + $0x1f0] sm:$0xff]
        %v1071 = vld [vmem:[#allocation13 + $0x1f8] sm:$0xff]
        %1072 = vmatprep.subr.mxu0 %v1009
        %1073 = vmatpush1.msra.mxu0 %v1008
        %1074 = vmatprep.subr.mxu0 %v1013
        %1075 = vmatpush1.msra.mxu0 %v1012
        %1076 = vmatprep.subr.mxu0 %v1017
        %1077 = vmatpush1.msra.mxu0 %v1016
        %1078 = vmatprep.subr.mxu0 %v1021
        %1079 = vmatpush1.msra.mxu0 %v1020
        %1080 = vmatprep.subr.mxu0 %v1025
        %1081 = vmatpush1.msra.mxu0 %v1024
        %1082 = vmatprep.subr.mxu0 %v1029
        %1083 = vmatpush1.msra.mxu0 %v1028
        %1084 = vmatprep.subr.mxu0 %v1033
        %1085 = vmatpush1.msra.mxu0 %v1032
        %1086 = vmatprep.subr.mxu0 %v1037
        %1087 = vmatpush1.msra.mxu0 %v1036
        %1088 = vmatprep.subr.mxu0 %v1041
        %1089 = vmatpush1.msra.mxu0 %v1040
        %1090 = vmatprep.subr.mxu0 %v1045
        %1091 = vmatpush1.msra.mxu0 %v1044
        %1092 = vmatprep.subr.mxu0 %v1049
        %1093 = vmatpush1.msra.mxu0 %v1048
        %1094 = vmatprep.subr.mxu0 %v1053
        %1095 = vmatpush1.msra.mxu0 %v1052
        %1096 = vmatprep.subr.mxu0 %v1057
        %1097 = vmatpush1.msra.mxu0 %v1056
        %1098 = vmatprep.subr.mxu0 %v1061
        %1099 = vmatpush1.msra.mxu0 %v1060
        %1100 = vmatprep.subr.mxu0 %v1065
        %1101 = vmatpush1.msra.mxu0 %v1064
        %1102 = vmatprep.subr.mxu0 %v1069
        %1103 = vmatpush1.msra.mxu0 %v1068
        %1104 = vmatprep.subr.mxu0 0.0
        %1105 = vmatpush1.msra.mxu0 0.0
        %1106 = vmatprep.subr.mxu0 0.0
        %1107 = vmatpush1.msra.mxu0 0.0
        %1108 = vmatprep.subr.mxu0 0.0
        %1109 = vmatpush1.msra.mxu0 0.0
        %1110 = vmatprep.subr.mxu0 0.0
        %1111 = vmatpush1.msra.mxu0 0.0
        %1112 = vmatprep.subr.mxu0 0.0
        %1113 = vmatpush1.msra.mxu0 0.0
        %1114 = vmatprep.subr.mxu0 0.0
        %1115 = vmatpush1.msra.mxu0 0.0
        %1116 = vmatprep.subr.mxu0 0.0
        %1117 = vmatpush1.msra.mxu0 0.0
        %1118 = vmatprep.subr.mxu0 0.0
        %1119 = vmatpush1.msra.mxu0 0.0
        %1120 = vmatprep.subr.mxu0 0.0
        %1121 = vmatpush1.msra.mxu0 0.0
        %1122 = vmatprep.subr.mxu0 0.0
        %1123 = vmatpush1.msra.mxu0 0.0
        %1124 = vmatprep.subr.mxu0 0.0
        %1125 = vmatpush1.msra.mxu0 0.0
        %1126 = vmatprep.subr.mxu0 0.0
        %1127 = vmatpush1.msra.mxu0 0.0
        %1128 = vmatprep.subr.mxu0 0.0
        %1129 = vmatpush1.msra.mxu0 0.0
        %1130 = vmatprep.subr.mxu0 0.0
        %1131 = vmatpush1.msra.mxu0 0.0
        %1132 = vmatprep.subr.mxu0 0.0
        %1133 = vmatpush1.msra.mxu0 0.0
        %1134 = vmatprep.subr.mxu0 0.0
        %1135 = vmatpush1.msra.mxu0 0.0
        %1136 = vmatprep.mubr.f32.mxu0 0.0
        %1137 = vmatmul.mubr.f32.gmra.mrb[0].mxu0 %v874
        %v1138 = vpop.f32.mrb[0].mxu0
        %v1139 = vadd.f32 0.0, %v1138
        %v1140 = vpop.f32.mrb[0].mxu0
        %v1141 = vadd.f32 0.0, %v1140
        %1142 = vdwg.mxu0
        %1143 = vmatprep.subr.mxu0 %v1011
        %1144 = vmatpush1.msra.mxu0 %v1010
        %1145 = vmatprep.subr.mxu0 %v1015
        %1146 = vmatpush1.msra.mxu0 %v1014
        %1147 = vmatprep.subr.mxu0 %v1019
        %1148 = vmatpush1.msra.mxu0 %v1018
        %1149 = vmatprep.subr.mxu0 %v1023
        %1150 = vmatpush1.msra.mxu0 %v1022
        %1151 = vmatprep.subr.mxu0 %v1027
        %1152 = vmatpush1.msra.mxu0 %v1026
        %1153 = vmatprep.subr.mxu0 %v1031
        %1154 = vmatpush1.msra.mxu0 %v1030
        %1155 = vmatprep.subr.mxu0 %v1035
        %1156 = vmatpush1.msra.mxu0 %v1034
        %1157 = vmatprep.subr.mxu0 %v1039
        %1158 = vmatpush1.msra.mxu0 %v1038
        %1159 = vmatprep.subr.mxu0 %v1043
        %1160 = vmatpush1.msra.mxu0 %v1042
        %1161 = vmatprep.subr.mxu0 %v1047
        %1162 = vmatpush1.msra.mxu0 %v1046
        %1163 = vmatprep.subr.mxu0 %v1051
        %1164 = vmatpush1.msra.mxu0 %v1050
        %1165 = vmatprep.subr.mxu0 %v1055
        %1166 = vmatpush1.msra.mxu0 %v1054
        %1167 = vmatprep.subr.mxu0 %v1059
        %1168 = vmatpush1.msra.mxu0 %v1058
        %1169 = vmatprep.subr.mxu0 %v1063
        %1170 = vmatpush1.msra.mxu0 %v1062
        %1171 = vmatprep.subr.mxu0 %v1067
        %1172 = vmatpush1.msra.mxu0 %v1066
        %1173 = vmatprep.subr.mxu0 %v1071
        %1174 = vmatpush1.msra.mxu0 %v1070
        %1175 = vmatprep.subr.mxu0 0.0
        %1176 = vmatpush1.msra.mxu0 0.0
        %1177 = vmatprep.subr.mxu0 0.0
        %1178 = vmatpush1.msra.mxu0 0.0
        %1179 = vmatprep.subr.mxu0 0.0
        %1180 = vmatpush1.msra.mxu0 0.0
        %1181 = vmatprep.subr.mxu0 0.0
        %1182 = vmatpush1.msra.mxu0 0.0
        %1183 = vmatprep.subr.mxu0 0.0
        %1184 = vmatpush1.msra.mxu0 0.0
        %1185 = vmatprep.subr.mxu0 0.0
        %1186 = vmatpush1.msra.mxu0 0.0
        %1187 = vmatprep.subr.mxu0 0.0
        %1188 = vmatpush1.msra.mxu0 0.0
        %1189 = vmatprep.subr.mxu0 0.0
        %1190 = vmatpush1.msra.mxu0 0.0
        %1191 = vmatprep.subr.mxu0 0.0
        %1192 = vmatpush1.msra.mxu0 0.0
        %1193 = vmatprep.subr.mxu0 0.0
        %1194 = vmatpush1.msra.mxu0 0.0
        %1195 = vmatprep.subr.mxu0 0.0
        %1196 = vmatpush1.msra.mxu0 0.0
        %1197 = vmatprep.subr.mxu0 0.0
        %1198 = vmatpush1.msra.mxu0 0.0
        %1199 = vmatprep.subr.mxu0 0.0
        %1200 = vmatpush1.msra.mxu0 0.0
        %1201 = vmatprep.subr.mxu0 0.0
        %1202 = vmatpush1.msra.mxu0 0.0
        %1203 = vmatprep.subr.mxu0 0.0
        %1204 = vmatpush1.msra.mxu0 0.0
        %1205 = vmatprep.subr.mxu0 0.0
        %1206 = vmatpush1.msra.mxu0 0.0
        %1207 = vmatprep.mubr.f32.mxu0 0.0
        %1208 = vmatmul.mubr.f32.gmra.mrb[0].mxu0 %v874
        %v1209 = vpop.f32.mrb[0].mxu0
        %v1210 = vadd.f32 0.0, %v1209
        %v1211 = vpop.f32.mrb[0].mxu0
        %v1212 = vadd.f32 0.0, %v1211
        %1213 = vdwg.mxu0
        %v1214 = vadd.f32 %v1004, %v1139
        %v1215 = vadd.f32 %v1005, %v1141
        %v1216 = vadd.f32 %v1006, %v1210
        %v1217 = vadd.f32 %v1007, %v1212
        %v1218 = vxor.u32 %v1214, 2147483648
        %v1219 = vmul.f32 %v1218, 1.442695
        %v1220 = vpow.pop %v1219
        %v1221 = vadd.f32 %v1220, 1.0
        %v1222 = vrcp.pop %v1221
        %v1223 = vmul.f32 1.0, %v1222
        %v1224 = vxor.u32 %v1215, 2147483648
        %v1225 = vmul.f32 %v1224, 1.442695
        %v1226 = vpow.pop %v1225
        %v1227 = vadd.f32 %v1226, 1.0
        %v1228 = vrcp.pop %v1227
        %v1229 = vmul.f32 1.0, %v1228
        %v1230 = vxor.u32 %v1216, 2147483648
        %v1231 = vmul.f32 %v1230, 1.442695
        %v1232 = vpow.pop %v1231
        %v1233 = vadd.f32 %v1232, 1.0
        %v1234 = vrcp.pop %v1233
        %v1235 = vmul.f32 1.0, %v1234
        %v1236 = vld [vmem:[#allocation14] sm:$0xff]
        %v1237 = vld [vmem:[#allocation14 + $0x8] sm:$0xff]
        %v1238 = vld [vmem:[#allocation14 + $0x10] sm:$0xff]
        %v1239 = vld [vmem:[#allocation14 + $0x18] sm:$0xff]
        %v1240 = vld [vmem:[#allocation14 + $0x20] sm:$0xff]
        %v1241 = vld [vmem:[#allocation14 + $0x28] sm:$0xff]
        %v1242 = vld [vmem:[#allocation14 + $0x30] sm:$0xff]
        %v1243 = vld [vmem:[#allocation14 + $0x38] sm:$0xff]
        %v1244 = vld [vmem:[#allocation14 + $0x40] sm:$0xff]
        %v1245 = vld [vmem:[#allocation14 + $0x48] sm:$0xff]
        %v1246 = vld [vmem:[#allocation14 + $0x50] sm:$0xff]
        %v1247 = vld [vmem:[#allocation14 + $0x58] sm:$0xff]
        %v1248 = vld [vmem:[#allocation14 + $0x60] sm:$0xff]
        %v1249 = vld [vmem:[#allocation14 + $0x68] sm:$0xff]
        %v1250 = vld [vmem:[#allocation14 + $0x70] sm:$0xff]
        %v1251 = vld [vmem:[#allocation14 + $0x78] sm:$0xff]
        %v1252 = vmul.f32 %v1236, %v876
        %v1253 = vmul.f32 %v1237, %v877
        %v1254 = vmul.f32 %v1238, %v878
        %v1255 = vmul.f32 %v1239, %v879
        %v1256 = vmul.f32 %v1240, %v880
        %v1257 = vmul.f32 %v1241, %v881
        %v1258 = vmul.f32 %v1242, %v882
        %v1259 = vmul.f32 %v1243, %v883
        %v1260 = vmul.f32 %v1244, %v884
        %v1261 = vmul.f32 %v1245, %v885
        %v1262 = vmul.f32 %v1246, %v886
        %v1263 = vmul.f32 %v1247, %v887
        %v1264 = vmul.f32 %v1248, %v888
        %v1265 = vmul.f32 %v1249, %v889
        %v1266 = vmul.f32 %v1250, %v890
        %v1267 = vmul.f32 %v1251, %v891
        %v1268 = vmul.f32 %v1236, %v892
        %v1269 = vmul.f32 %v1237, %v893
        %v1270 = vmul.f32 %v1238, %v894
        %v1271 = vmul.f32 %v1239, %v895
        %v1272 = vmul.f32 %v1240, %v896
        %v1273 = vmul.f32 %v1241, %v897
        %v1274 = vmul.f32 %v1242, %v898
        %v1275 = vmul.f32 %v1243, %v899
        %v1276 = vmul.f32 %v1244, %v900
        %v1277 = vmul.f32 %v1245, %v901
        %v1278 = vmul.f32 %v1246, %v902
        %v1279 = vmul.f32 %v1247, %v903
        %v1280 = vmul.f32 %v1248, %v904
        %v1281 = vmul.f32 %v1249, %v905
        %v1282 = vmul.f32 %v1250, %v906
        %v1283 = vmul.f32 %v1251, %v907
        %v1284 = vmul.f32 %v1236, %v908
        %v1285 = vmul.f32 %v1237, %v909
        %v1286 = vmul.f32 %v1238, %v910
        %v1287 = vmul.f32 %v1239, %v911
        %v1288 = vmul.f32 %v1240, %v912
        %v1289 = vmul.f32 %v1241, %v913
        %v1290 = vmul.f32 %v1242, %v914
        %v1291 = vmul.f32 %v1243, %v915
        %v1292 = vmul.f32 %v1244, %v916
        %v1293 = vmul.f32 %v1245, %v917
        %v1294 = vmul.f32 %v1246, %v918
        %v1295 = vmul.f32 %v1247, %v919
        %v1296 = vmul.f32 %v1248, %v920
        %v1297 = vmul.f32 %v1249, %v921
        %v1298 = vmul.f32 %v1250, %v922
        %v1299 = vmul.f32 %v1251, %v923
        %v1300 = vmul.f32 %v1236, %v924
        %v1301 = vmul.f32 %v1237, %v925
        %v1302 = vmul.f32 %v1238, %v926
        %v1303 = vmul.f32 %v1239, %v927
        %v1304 = vmul.f32 %v1240, %v928
        %v1305 = vmul.f32 %v1241, %v929
        %v1306 = vmul.f32 %v1242, %v930
        %v1307 = vmul.f32 %v1243, %v931
        %v1308 = vmul.f32 %v1244, %v932
        %v1309 = vmul.f32 %v1245, %v933
        %v1310 = vmul.f32 %v1246, %v934
        %v1311 = vmul.f32 %v1247, %v935
        %v1312 = vmul.f32 %v1248, %v936
        %v1313 = vmul.f32 %v1249, %v937
        %v1314 = vmul.f32 %v1250, %v938
        %v1315 = vmul.f32 %v1251, %v939
        %v1316 = vmul.f32 %v1236, %v940
        %v1317 = vmul.f32 %v1237, %v941
        %v1318 = vmul.f32 %v1238, %v942
        %v1319 = vmul.f32 %v1239, %v943
        %v1320 = vmul.f32 %v1240, %v944
        %v1321 = vmul.f32 %v1241, %v945
        %v1322 = vmul.f32 %v1242, %v946
        %v1323 = vmul.f32 %v1243, %v947
        %v1324 = vmul.f32 %v1244, %v948
        %v1325 = vmul.f32 %v1245, %v949
        %v1326 = vmul.f32 %v1246, %v950
        %v1327 = vmul.f32 %v1247, %v951
        %v1328 = vmul.f32 %v1248, %v952
        %v1329 = vmul.f32 %v1249, %v953
        %v1330 = vmul.f32 %v1250, %v954
        %v1331 = vmul.f32 %v1251, %v955
        %v1332 = vmul.f32 %v1236, %v956
        %v1333 = vmul.f32 %v1237, %v957
        %v1334 = vmul.f32 %v1238, %v958
        %v1335 = vmul.f32 %v1239, %v959
        %v1336 = vmul.f32 %v1240, %v960
        %v1337 = vmul.f32 %v1241, %v961
        %v1338 = vmul.f32 %v1242, %v962
        %v1339 = vmul.f32 %v1243, %v963
        %v1340 = vmul.f32 %v1244, %v964
        %v1341 = vmul.f32 %v1245, %v965
        %v1342 = vmul.f32 %v1246, %v966
        %v1343 = vmul.f32 %v1247, %v967
        %v1344 = vmul.f32 %v1248, %v968
        %v1345 = vmul.f32 %v1249, %v969
        %v1346 = vmul.f32 %v1250, %v970
        %v1347 = vmul.f32 %v1251, %v971
        %v1348 = vmul.f32 %v1236, %v972
        %v1349 = vmul.f32 %v1237, %v973
        %v1350 = vmul.f32 %v1238, %v974
        %v1351 = vmul.f32 %v1239, %v975
        %v1352 = vmul.f32 %v1240, %v976
        %v1353 = vmul.f32 %v1241, %v977
        %v1354 = vmul.f32 %v1242, %v978
        %v1355 = vmul.f32 %v1243, %v979
        %v1356 = vmul.f32 %v1244, %v980
        %v1357 = vmul.f32 %v1245, %v981
        %v1358 = vmul.f32 %v1246, %v982
        %v1359 = vmul.f32 %v1247, %v983
        %v1360 = vmul.f32 %v1248, %v984
        %v1361 = vmul.f32 %v1249, %v985
        %v1362 = vmul.f32 %v1250, %v986
        %v1363 = vmul.f32 %v1251, %v987
        %v1364 = vmul.f32 %v1236, %v988
        %v1365 = vmul.f32 %v1237, %v989
        %v1366 = vmul.f32 %v1238, %v990
        %v1367 = vmul.f32 %v1239, %v991
        %v1368 = vmul.f32 %v1240, %v992
        %v1369 = vmul.f32 %v1241, %v993
        %v1370 = vmul.f32 %v1242, %v994
        %v1371 = vmul.f32 %v1243, %v995
        %v1372 = vmul.f32 %v1244, %v996
        %v1373 = vmul.f32 %v1245, %v997
        %v1374 = vmul.f32 %v1246, %v998
        %v1375 = vmul.f32 %v1247, %v999
        %v1376 = vmul.f32 %v1248, %v1000
        %v1377 = vmul.f32 %v1249, %v1001
        %v1378 = vmul.f32 %v1250, %v1002
        %v1379 = vmul.f32 %v1251, %v1003
        %v1380 = vlaneseq
        %v1381 = vshrl.u32 %v1380, 7
        %v1382 = vsub.s32 0, %v1381
        %v1383 = vrot.slane %v874, %v1382
        %1385 = vbcast.lane.b32.xlu0 %v1383, 256
        %v1386 = vpop.permute.xlu0 %1385
        %s1388 = sor.u32 256, 8
        %1389 = vbcast.lane.b32.xlu0 %v1383, %s1388
        %v1390 = vpop.permute.xlu0 %1389
        %s1392 = sor.u32 256, 16
        %1393 = vbcast.lane.b32.xlu0 %v1383, %s1392
        %v1394 = vpop.permute.xlu0 %1393
        %s1396 = sor.u32 256, 24
        %1397 = vbcast.lane.b32.xlu0 %v1383, %s1396
        %v1398 = vpop.permute.xlu0 %1397
        %s1400 = sor.u32 256, 32
        %1401 = vbcast.lane.b32.xlu0 %v1383, %s1400
        %v1402 = vpop.permute.xlu0 %1401
        %s1404 = sor.u32 256, 40
        %1405 = vbcast.lane.b32.xlu0 %v1383, %s1404
        %v1406 = vpop.permute.xlu0 %1405
        %s1408 = sor.u32 256, 48
        %1409 = vbcast.lane.b32.xlu0 %v1383, %s1408
        %v1410 = vpop.permute.xlu0 %1409
        %s1412 = sor.u32 256, 56
        %1413 = vbcast.lane.b32.xlu0 %v1383, %s1412
        %v1414 = vpop.permute.xlu0 %1413
        %s1416 = sor.u32 256, 64
        %1417 = vbcast.lane.b32.xlu0 %v1383, %s1416
        %v1418 = vpop.permute.xlu0 %1417
        %s1420 = sor.u32 256, 72
        %1421 = vbcast.lane.b32.xlu0 %v1383, %s1420
        %v1422 = vpop.permute.xlu0 %1421
        %s1424 = sor.u32 256, 80
        %1425 = vbcast.lane.b32.xlu0 %v1383, %s1424
        %v1426 = vpop.permute.xlu0 %1425
        %s1428 = sor.u32 256, 88
        %1429 = vbcast.lane.b32.xlu0 %v1383, %s1428
        %v1430 = vpop.permute.xlu0 %1429
        %s1432 = sor.u32 256, 96
        %1433 = vbcast.lane.b32.xlu0 %v1383, %s1432
        %v1434 = vpop.permute.xlu0 %1433
        %s1436 = sor.u32 256, 104
        %1437 = vbcast.lane.b32.xlu0 %v1383, %s1436
        %v1438 = vpop.permute.xlu0 %1437
        %s1440 = sor.u32 256, 112
        %1441 = vbcast.lane.b32.xlu0 %v1383, %s1440
        %v1442 = vpop.permute.xlu0 %1441
        %s1444 = sor.u32 256, 120
        %1445 = vbcast.lane.b32.xlu0 %v1383, %s1444
        %v1446 = vpop.permute.xlu0 %1445
        %v1447 = vlaneseq
        %v1448 = vshrl.u32 %v1447, 7
        %v1449 = vsub.s32 1, %v1448
        %v1450 = vrot.slane %v874, %v1449
        %1452 = vbcast.lane.b32.xlu0 %v1450, 256
        %v1453 = vpop.permute.xlu0 %1452
        %s1455 = sor.u32 256, 8
        %1456 = vbcast.lane.b32.xlu0 %v1450, %s1455
        %v1457 = vpop.permute.xlu0 %1456
        %s1459 = sor.u32 256, 16
        %1460 = vbcast.lane.b32.xlu0 %v1450, %s1459
        %v1461 = vpop.permute.xlu0 %1460
        %s1463 = sor.u32 256, 24
        %1464 = vbcast.lane.b32.xlu0 %v1450, %s1463
        %v1465 = vpop.permute.xlu0 %1464
        %s1467 = sor.u32 256, 32
        %1468 = vbcast.lane.b32.xlu0 %v1450, %s1467
        %v1469 = vpop.permute.xlu0 %1468
        %s1471 = sor.u32 256, 40
        %1472 = vbcast.lane.b32.xlu0 %v1450, %s1471
        %v1473 = vpop.permute.xlu0 %1472
        %s1475 = sor.u32 256, 48
        %1476 = vbcast.lane.b32.xlu0 %v1450, %s1475
        %v1477 = vpop.permute.xlu0 %1476
        %s1479 = sor.u32 256, 56
        %1480 = vbcast.lane.b32.xlu0 %v1450, %s1479
        %v1481 = vpop.permute.xlu0 %1480
        %s1483 = sor.u32 256, 64
        %1484 = vbcast.lane.b32.xlu0 %v1450, %s1483
        %v1485 = vpop.permute.xlu0 %1484
        %s1487 = sor.u32 256, 72
        %1488 = vbcast.lane.b32.xlu0 %v1450, %s1487
        %v1489 = vpop.permute.xlu0 %1488
        %s1491 = sor.u32 256, 80
        %1492 = vbcast.lane.b32.xlu0 %v1450, %s1491
        %v1493 = vpop.permute.xlu0 %1492
        %s1495 = sor.u32 256, 88
        %1496 = vbcast.lane.b32.xlu0 %v1450, %s1495
        %v1497 = vpop.permute.xlu0 %1496
        %s1499 = sor.u32 256, 96
        %1500 = vbcast.lane.b32.xlu0 %v1450, %s1499
        %v1501 = vpop.permute.xlu0 %1500
        %s1503 = sor.u32 256, 104
        %1504 = vbcast.lane.b32.xlu0 %v1450, %s1503
        %v1505 = vpop.permute.xlu0 %1504
        %s1507 = sor.u32 256, 112
        %1508 = vbcast.lane.b32.xlu0 %v1450, %s1507
        %v1509 = vpop.permute.xlu0 %1508
        %s1511 = sor.u32 256, 120
        %1512 = vbcast.lane.b32.xlu0 %v1450, %s1511
        %v1513 = vpop.permute.xlu0 %1512
        %v1514 = vlaneseq
        %v1515 = vshrl.u32 %v1514, 7
        %v1516 = vsub.s32 2, %v1515
        %v1517 = vrot.slane %v874, %v1516
        %1519 = vbcast.lane.b32.xlu0 %v1517, 256
        %v1520 = vpop.permute.xlu0 %1519
        %s1522 = sor.u32 256, 8
        %1523 = vbcast.lane.b32.xlu0 %v1517, %s1522
        %v1524 = vpop.permute.xlu0 %1523
        %s1526 = sor.u32 256, 16
        %1527 = vbcast.lane.b32.xlu0 %v1517, %s1526
        %v1528 = vpop.permute.xlu0 %1527
        %s1530 = sor.u32 256, 24
        %1531 = vbcast.lane.b32.xlu0 %v1517, %s1530
        %v1532 = vpop.permute.xlu0 %1531
        %s1534 = sor.u32 256, 32
        %1535 = vbcast.lane.b32.xlu0 %v1517, %s1534
        %v1536 = vpop.permute.xlu0 %1535
        %s1538 = sor.u32 256, 40
        %1539 = vbcast.lane.b32.xlu0 %v1517, %s1538
        %v1540 = vpop.permute.xlu0 %1539
        %s1542 = sor.u32 256, 48
        %1543 = vbcast.lane.b32.xlu0 %v1517, %s1542
        %v1544 = vpop.permute.xlu0 %1543
        %s1546 = sor.u32 256, 56
        %1547 = vbcast.lane.b32.xlu0 %v1517, %s1546
        %v1548 = vpop.permute.xlu0 %1547
        %s1550 = sor.u32 256, 64
        %1551 = vbcast.lane.b32.xlu0 %v1517, %s1550
        %v1552 = vpop.permute.xlu0 %1551
        %s1554 = sor.u32 256, 72
        %1555 = vbcast.lane.b32.xlu0 %v1517, %s1554
        %v1556 = vpop.permute.xlu0 %1555
        %s1558 = sor.u32 256, 80
        %1559 = vbcast.lane.b32.xlu0 %v1517, %s1558
        %v1560 = vpop.permute.xlu0 %1559
        %s1562 = sor.u32 256, 88
        %1563 = vbcast.lane.b32.xlu0 %v1517, %s1562
        %v1564 = vpop.permute.xlu0 %1563
        %s1566 = sor.u32 256, 96
        %1567 = vbcast.lane.b32.xlu0 %v1517, %s1566
        %v1568 = vpop.permute.xlu0 %1567
        %s1570 = sor.u32 256, 104
        %1571 = vbcast.lane.b32.xlu0 %v1517, %s1570
        %v1572 = vpop.permute.xlu0 %1571
        %s1574 = sor.u32 256, 112
        %1575 = vbcast.lane.b32.xlu0 %v1517, %s1574
        %v1576 = vpop.permute.xlu0 %1575
        %s1578 = sor.u32 256, 120
        %1579 = vbcast.lane.b32.xlu0 %v1517, %s1578
        %v1580 = vpop.permute.xlu0 %1579
        %v1581 = vlaneseq
        %v1582 = vshrl.u32 %v1581, 7
        %v1583 = vsub.s32 3, %v1582
        %v1584 = vrot.slane %v874, %v1583
        %1586 = vbcast.lane.b32.xlu0 %v1584, 256
        %v1587 = vpop.permute.xlu0 %1586
        %s1589 = sor.u32 256, 8
        %1590 = vbcast.lane.b32.xlu0 %v1584, %s1589
        %v1591 = vpop.permute.xlu0 %1590
        %s1593 = sor.u32 256, 16
        %1594 = vbcast.lane.b32.xlu0 %v1584, %s1593
        %v1595 = vpop.permute.xlu0 %1594
        %s1597 = sor.u32 256, 24
        %1598 = vbcast.lane.b32.xlu0 %v1584, %s1597
        %v1599 = vpop.permute.xlu0 %1598
        %s1601 = sor.u32 256, 32
        %1602 = vbcast.lane.b32.xlu0 %v1584, %s1601
        %v1603 = vpop.permute.xlu0 %1602
        %s1605 = sor.u32 256, 40
        %1606 = vbcast.lane.b32.xlu0 %v1584, %s1605
        %v1607 = vpop.permute.xlu0 %1606
        %s1609 = sor.u32 256, 48
        %1610 = vbcast.lane.b32.xlu0 %v1584, %s1609
        %v1611 = vpop.permute.xlu0 %1610
        %s1613 = sor.u32 256, 56
        %1614 = vbcast.lane.b32.xlu0 %v1584, %s1613
        %v1615 = vpop.permute.xlu0 %1614
        %s1617 = sor.u32 256, 64
        %1618 = vbcast.lane.b32.xlu0 %v1584, %s1617
        %v1619 = vpop.permute.xlu0 %1618
        %s1621 = sor.u32 256, 72
        %1622 = vbcast.lane.b32.xlu0 %v1584, %s1621
        %v1623 = vpop.permute.xlu0 %1622
        %s1625 = sor.u32 256, 80
        %1626 = vbcast.lane.b32.xlu0 %v1584, %s1625
        %v1627 = vpop.permute.xlu0 %1626
        %s1629 = sor.u32 256, 88
        %1630 = vbcast.lane.b32.xlu0 %v1584, %s1629
        %v1631 = vpop.permute.xlu0 %1630
        %s1633 = sor.u32 256, 96
        %1634 = vbcast.lane.b32.xlu0 %v1584, %s1633
        %v1635 = vpop.permute.xlu0 %1634
        %s1637 = sor.u32 256, 104
        %1638 = vbcast.lane.b32.xlu0 %v1584, %s1637
        %v1639 = vpop.permute.xlu0 %1638
        %s1641 = sor.u32 256, 112
        %1642 = vbcast.lane.b32.xlu0 %v1584, %s1641
        %v1643 = vpop.permute.xlu0 %1642
        %s1645 = sor.u32 256, 120
        %1646 = vbcast.lane.b32.xlu0 %v1584, %s1645
        %v1647 = vpop.permute.xlu0 %1646
        %v1648 = vlaneseq
        %v1649 = vshrl.u32 %v1648, 7
        %v1650 = vsub.s32 4, %v1649
        %v1651 = vrot.slane %v874, %v1650
        %1653 = vbcast.lane.b32.xlu0 %v1651, 256
        %v1654 = vpop.permute.xlu0 %1653
        %s1656 = sor.u32 256, 8
        %1657 = vbcast.lane.b32.xlu0 %v1651, %s1656
        %v1658 = vpop.permute.xlu0 %1657
        %s1660 = sor.u32 256, 16
        %1661 = vbcast.lane.b32.xlu0 %v1651, %s1660
        %v1662 = vpop.permute.xlu0 %1661
        %s1664 = sor.u32 256, 24
        %1665 = vbcast.lane.b32.xlu0 %v1651, %s1664
        %v1666 = vpop.permute.xlu0 %1665
        %s1668 = sor.u32 256, 32
        %1669 = vbcast.lane.b32.xlu0 %v1651, %s1668
        %v1670 = vpop.permute.xlu0 %1669
        %s1672 = sor.u32 256, 40
        %1673 = vbcast.lane.b32.xlu0 %v1651, %s1672
        %v1674 = vpop.permute.xlu0 %1673
        %s1676 = sor.u32 256, 48
        %1677 = vbcast.lane.b32.xlu0 %v1651, %s1676
        %v1678 = vpop.permute.xlu0 %1677
        %s1680 = sor.u32 256, 56
        %1681 = vbcast.lane.b32.xlu0 %v1651, %s1680
        %v1682 = vpop.permute.xlu0 %1681
        %s1684 = sor.u32 256, 64
        %1685 = vbcast.lane.b32.xlu0 %v1651, %s1684
        %v1686 = vpop.permute.xlu0 %1685
        %s1688 = sor.u32 256, 72
        %1689 = vbcast.lane.b32.xlu0 %v1651, %s1688
        %v1690 = vpop.permute.xlu0 %1689
        %s1692 = sor.u32 256, 80
        %1693 = vbcast.lane.b32.xlu0 %v1651, %s1692
        %v1694 = vpop.permute.xlu0 %1693
        %s1696 = sor.u32 256, 88
        %1697 = vbcast.lane.b32.xlu0 %v1651, %s1696
        %v1698 = vpop.permute.xlu0 %1697
        %s1700 = sor.u32 256, 96
        %1701 = vbcast.lane.b32.xlu0 %v1651, %s1700
        %v1702 = vpop.permute.xlu0 %1701
        %s1704 = sor.u32 256, 104
        %1705 = vbcast.lane.b32.xlu0 %v1651, %s1704
        %v1706 = vpop.permute.xlu0 %1705
        %s1708 = sor.u32 256, 112
        %1709 = vbcast.lane.b32.xlu0 %v1651, %s1708
        %v1710 = vpop.permute.xlu0 %1709
        %s1712 = sor.u32 256, 120
        %1713 = vbcast.lane.b32.xlu0 %v1651, %s1712
        %v1714 = vpop.permute.xlu0 %1713
        %v1715 = vlaneseq
        %v1716 = vshrl.u32 %v1715, 7
        %v1717 = vsub.s32 5, %v1716
        %v1718 = vrot.slane %v874, %v1717
        %1720 = vbcast.lane.b32.xlu0 %v1718, 256
        %v1721 = vpop.permute.xlu0 %1720
        %s1723 = sor.u32 256, 8
        %1724 = vbcast.lane.b32.xlu0 %v1718, %s1723
        %v1725 = vpop.permute.xlu0 %1724
        %s1727 = sor.u32 256, 16
        %1728 = vbcast.lane.b32.xlu0 %v1718, %s1727
        %v1729 = vpop.permute.xlu0 %1728
        %s1731 = sor.u32 256, 24
        %1732 = vbcast.lane.b32.xlu0 %v1718, %s1731
        %v1733 = vpop.permute.xlu0 %1732
        %s1735 = sor.u32 256, 32
        %1736 = vbcast.lane.b32.xlu0 %v1718, %s1735
        %v1737 = vpop.permute.xlu0 %1736
        %s1739 = sor.u32 256, 40
        %1740 = vbcast.lane.b32.xlu0 %v1718, %s1739
        %v1741 = vpop.permute.xlu0 %1740
        %s1743 = sor.u32 256, 48
        %1744 = vbcast.lane.b32.xlu0 %v1718, %s1743
        %v1745 = vpop.permute.xlu0 %1744
        %s1747 = sor.u32 256, 56
        %1748 = vbcast.lane.b32.xlu0 %v1718, %s1747
        %v1749 = vpop.permute.xlu0 %1748
        %s1751 = sor.u32 256, 64
        %1752 = vbcast.lane.b32.xlu0 %v1718, %s1751
        %v1753 = vpop.permute.xlu0 %1752
        %s1755 = sor.u32 256, 72
        %1756 = vbcast.lane.b32.xlu0 %v1718, %s1755
        %v1757 = vpop.permute.xlu0 %1756
        %s1759 = sor.u32 256, 80
        %1760 = vbcast.lane.b32.xlu0 %v1718, %s1759
        %v1761 = vpop.permute.xlu0 %1760
        %s1763 = sor.u32 256, 88
        %1764 = vbcast.lane.b32.xlu0 %v1718, %s1763
        %v1765 = vpop.permute.xlu0 %1764
        %s1767 = sor.u32 256, 96
        %1768 = vbcast.lane.b32.xlu0 %v1718, %s1767
        %v1769 = vpop.permute.xlu0 %1768
        %s1771 = sor.u32 256, 104
        %1772 = vbcast.lane.b32.xlu0 %v1718, %s1771
        %v1773 = vpop.permute.xlu0 %1772
        %s1775 = sor.u32 256, 112
        %1776 = vbcast.lane.b32.xlu0 %v1718, %s1775
        %v1777 = vpop.permute.xlu0 %1776
        %s1779 = sor.u32 256, 120
        %1780 = vbcast.lane.b32.xlu0 %v1718, %s1779
        %v1781 = vpop.permute.xlu0 %1780
        %v1782 = vlaneseq
        %v1783 = vshrl.u32 %v1782, 7
        %v1784 = vsub.s32 6, %v1783
        %v1785 = vrot.slane %v874, %v1784
        %1787 = vbcast.lane.b32.xlu0 %v1785, 256
        %v1788 = vpop.permute.xlu0 %1787
        %s1790 = sor.u32 256, 8
        %1791 = vbcast.lane.b32.xlu0 %v1785, %s1790
        %v1792 = vpop.permute.xlu0 %1791
        %s1794 = sor.u32 256, 16
        %1795 = vbcast.lane.b32.xlu0 %v1785, %s1794
        %v1796 = vpop.permute.xlu0 %1795
        %s1798 = sor.u32 256, 24
        %1799 = vbcast.lane.b32.xlu0 %v1785, %s1798
        %v1800 = vpop.permute.xlu0 %1799
        %s1802 = sor.u32 256, 32
        %1803 = vbcast.lane.b32.xlu0 %v1785, %s1802
        %v1804 = vpop.permute.xlu0 %1803
        %s1806 = sor.u32 256, 40
        %1807 = vbcast.lane.b32.xlu0 %v1785, %s1806
        %v1808 = vpop.permute.xlu0 %1807
        %s1810 = sor.u32 256, 48
        %1811 = vbcast.lane.b32.xlu0 %v1785, %s1810
        %v1812 = vpop.permute.xlu0 %1811
        %s1814 = sor.u32 256, 56
        %1815 = vbcast.lane.b32.xlu0 %v1785, %s1814
        %v1816 = vpop.permute.xlu0 %1815
        %s1818 = sor.u32 256, 64
        %1819 = vbcast.lane.b32.xlu0 %v1785, %s1818
        %v1820 = vpop.permute.xlu0 %1819
        %s1822 = sor.u32 256, 72
        %1823 = vbcast.lane.b32.xlu0 %v1785, %s1822
        %v1824 = vpop.permute.xlu0 %1823
        %s1826 = sor.u32 256, 80
        %1827 = vbcast.lane.b32.xlu0 %v1785, %s1826
        %v1828 = vpop.permute.xlu0 %1827
        %s1830 = sor.u32 256, 88
        %1831 = vbcast.lane.b32.xlu0 %v1785, %s1830
        %v1832 = vpop.permute.xlu0 %1831
        %s1834 = sor.u32 256, 96
        %1835 = vbcast.lane.b32.xlu0 %v1785, %s1834
        %v1836 = vpop.permute.xlu0 %1835
        %s1838 = sor.u32 256, 104
        %1839 = vbcast.lane.b32.xlu0 %v1785, %s1838
        %v1840 = vpop.permute.xlu0 %1839
        %s1842 = sor.u32 256, 112
        %1843 = vbcast.lane.b32.xlu0 %v1785, %s1842
        %v1844 = vpop.permute.xlu0 %1843
        %s1846 = sor.u32 256, 120
        %1847 = vbcast.lane.b32.xlu0 %v1785, %s1846
        %v1848 = vpop.permute.xlu0 %1847
        %v1849 = vlaneseq
        %v1850 = vshrl.u32 %v1849, 7
        %v1851 = vsub.s32 7, %v1850
        %v1852 = vrot.slane %v874, %v1851
        %1854 = vbcast.lane.b32.xlu0 %v1852, 256
        %v1855 = vpop.permute.xlu0 %1854
        %s1857 = sor.u32 256, 8
        %1858 = vbcast.lane.b32.xlu0 %v1852, %s1857
        %v1859 = vpop.permute.xlu0 %1858
        %s1861 = sor.u32 256, 16
        %1862 = vbcast.lane.b32.xlu0 %v1852, %s1861
        %v1863 = vpop.permute.xlu0 %1862
        %s1865 = sor.u32 256, 24
        %1866 = vbcast.lane.b32.xlu0 %v1852, %s1865
        %v1867 = vpop.permute.xlu0 %1866
        %s1869 = sor.u32 256, 32
        %1870 = vbcast.lane.b32.xlu0 %v1852, %s1869
        %v1871 = vpop.permute.xlu0 %1870
        %s1873 = sor.u32 256, 40
        %1874 = vbcast.lane.b32.xlu0 %v1852, %s1873
        %v1875 = vpop.permute.xlu0 %1874
        %s1877 = sor.u32 256, 48
        %1878 = vbcast.lane.b32.xlu0 %v1852, %s1877
        %v1879 = vpop.permute.xlu0 %1878
        %s1881 = sor.u32 256, 56
        %1882 = vbcast.lane.b32.xlu0 %v1852, %s1881
        %v1883 = vpop.permute.xlu0 %1882
        %s1885 = sor.u32 256, 64
        %1886 = vbcast.lane.b32.xlu0 %v1852, %s1885
        %v1887 = vpop.permute.xlu0 %1886
        %s1889 = sor.u32 256, 72
        %1890 = vbcast.lane.b32.xlu0 %v1852, %s1889
        %v1891 = vpop.permute.xlu0 %1890
        %s1893 = sor.u32 256, 80
        %1894 = vbcast.lane.b32.xlu0 %v1852, %s1893
        %v1895 = vpop.permute.xlu0 %1894
        %s1897 = sor.u32 256, 88
        %1898 = vbcast.lane.b32.xlu0 %v1852, %s1897
        %v1899 = vpop.permute.xlu0 %1898
        %s1901 = sor.u32 256, 96
        %1902 = vbcast.lane.b32.xlu0 %v1852, %s1901
        %v1903 = vpop.permute.xlu0 %1902
        %s1905 = sor.u32 256, 104
        %1906 = vbcast.lane.b32.xlu0 %v1852, %s1905
        %v1907 = vpop.permute.xlu0 %1906
        %s1909 = sor.u32 256, 112
        %1910 = vbcast.lane.b32.xlu0 %v1852, %s1909
        %v1911 = vpop.permute.xlu0 %1910
        %s1913 = sor.u32 256, 120
        %1914 = vbcast.lane.b32.xlu0 %v1852, %s1913
        %v1915 = vpop.permute.xlu0 %1914
        %v1916 = vmul.f32 %v1252, %v1386
        %v1917 = vmul.f32 %v1253, %v1390
        %v1918 = vmul.f32 %v1254, %v1394
        %v1919 = vmul.f32 %v1255, %v1398
        %v1920 = vmul.f32 %v1256, %v1402
        %v1921 = vmul.f32 %v1257, %v1406
        %v1922 = vmul.f32 %v1258, %v1410
        %v1923 = vmul.f32 %v1259, %v1414
        %v1924 = vmul.f32 %v1260, %v1418
        %v1925 = vmul.f32 %v1261, %v1422
        %v1926 = vmul.f32 %v1262, %v1426
        %v1927 = vmul.f32 %v1263, %v1430
        %v1928 = vmul.f32 %v1264, %v1434
        %v1929 = vmul.f32 %v1265, %v1438
        %v1930 = vmul.f32 %v1266, %v1442
        %v1931 = vmul.f32 %v1267, %v1446
        %v1932 = vmul.f32 %v1268, %v1453
        %v1933 = vmul.f32 %v1269, %v1457
        %v1934 = vmul.f32 %v1270, %v1461
        %v1935 = vmul.f32 %v1271, %v1465
        %v1936 = vmul.f32 %v1272, %v1469
        %v1937 = vmul.f32 %v1273, %v1473
        %v1938 = vmul.f32 %v1274, %v1477
        %v1939 = vmul.f32 %v1275, %v1481
        %v1940 = vmul.f32 %v1276, %v1485
        %v1941 = vmul.f32 %v1277, %v1489
        %v1942 = vmul.f32 %v1278, %v1493
        %v1943 = vmul.f32 %v1279, %v1497
        %v1944 = vmul.f32 %v1280, %v1501
        %v1945 = vmul.f32 %v1281, %v1505
        %v1946 = vmul.f32 %v1282, %v1509
        %v1947 = vmul.f32 %v1283, %v1513
        %v1948 = vmul.f32 %v1284, %v1520
        %v1949 = vmul.f32 %v1285, %v1524
        %v1950 = vmul.f32 %v1286, %v1528
        %v1951 = vmul.f32 %v1287, %v1532
        %v1952 = vmul.f32 %v1288, %v1536
        %v1953 = vmul.f32 %v1289, %v1540
        %v1954 = vmul.f32 %v1290, %v1544
        %v1955 = vmul.f32 %v1291, %v1548
        %v1956 = vmul.f32 %v1292, %v1552
        %v1957 = vmul.f32 %v1293, %v1556
        %v1958 = vmul.f32 %v1294, %v1560
        %v1959 = vmul.f32 %v1295, %v1564
        %v1960 = vmul.f32 %v1296, %v1568
        %v1961 = vmul.f32 %v1297, %v1572
        %v1962 = vmul.f32 %v1298, %v1576
        %v1963 = vmul.f32 %v1299, %v1580
        %v1964 = vmul.f32 %v1300, %v1587
        %v1965 = vmul.f32 %v1301, %v1591
        %v1966 = vmul.f32 %v1302, %v1595
        %v1967 = vmul.f32 %v1303, %v1599
        %v1968 = vmul.f32 %v1304, %v1603
        %v1969 = vmul.f32 %v1305, %v1607
        %v1970 = vmul.f32 %v1306, %v1611
        %v1971 = vmul.f32 %v1307, %v1615
        %v1972 = vmul.f32 %v1308, %v1619
        %v1973 = vmul.f32 %v1309, %v1623
        %v1974 = vmul.f32 %v1310, %v1627
        %v1975 = vmul.f32 %v1311, %v1631
        %v1976 = vmul.f32 %v1312, %v1635
        %v1977 = vmul.f32 %v1313, %v1639
        %v1978 = vmul.f32 %v1314, %v1643
        %v1979 = vmul.f32 %v1315, %v1647
        %v1980 = vmul.f32 %v1316, %v1654
        %v1981 = vmul.f32 %v1317, %v1658
        %v1982 = vmul.f32 %v1318, %v1662
        %v1983 = vmul.f32 %v1319, %v1666
        %v1984 = vmul.f32 %v1320, %v1670
        %v1985 = vmul.f32 %v1321, %v1674
        %v1986 = vmul.f32 %v1322, %v1678
        %v1987 = vmul.f32 %v1323, %v1682
        %v1988 = vmul.f32 %v1324, %v1686
        %v1989 = vmul.f32 %v1325, %v1690
        %v1990 = vmul.f32 %v1326, %v1694
        %v1991 = vmul.f32 %v1327, %v1698
        %v1992 = vmul.f32 %v1328, %v1702
        %v1993 = vmul.f32 %v1329, %v1706
        %v1994 = vmul.f32 %v1330, %v1710
        %v1995 = vmul.f32 %v1331, %v1714
        %v1996 = vmul.f32 %v1332, %v1721
        %v1997 = vmul.f32 %v1333, %v1725
        %v1998 = vmul.f32 %v1334, %v1729
        %v1999 = vmul.f32 %v1335, %v1733
        %v2000 = vmul.f32 %v1336, %v1737
        %v2001 = vmul.f32 %v1337, %v1741
        %v2002 = vmul.f32 %v1338, %v1745
        %v2003 = vmul.f32 %v1339, %v1749
        %v2004 = vmul.f32 %v1340, %v1753
        %v2005 = vmul.f32 %v1341, %v1757
        %v2006 = vmul.f32 %v1342, %v1761
        %v2007 = vmul.f32 %v1343, %v1765
        %v2008 = vmul.f32 %v1344, %v1769
        %v2009 = vmul.f32 %v1345, %v1773
        %v2010 = vmul.f32 %v1346, %v1777
        %v2011 = vmul.f32 %v1347, %v1781
        %v2012 = vmul.f32 %v1348, %v1788
        %v2013 = vmul.f32 %v1349, %v1792
        %v2014 = vmul.f32 %v1350, %v1796
        %v2015 = vmul.f32 %v1351, %v1800
        %v2016 = vmul.f32 %v1352, %v1804
        %v2017 = vmul.f32 %v1353, %v1808
        %v2018 = vmul.f32 %v1354, %v1812
        %v2019 = vmul.f32 %v1355, %v1816
        %v2020 = vmul.f32 %v1356, %v1820
        %v2021 = vmul.f32 %v1357, %v1824
        %v2022 = vmul.f32 %v1358, %v1828
        %v2023 = vmul.f32 %v1359, %v1832
        %v2024 = vmul.f32 %v1360, %v1836
        %v2025 = vmul.f32 %v1361, %v1840
        %v2026 = vmul.f32 %v1362, %v1844
        %v2027 = vmul.f32 %v1363, %v1848
        %v2028 = vmul.f32 %v1364, %v1855
        %v2029 = vmul.f32 %v1365, %v1859
        %v2030 = vmul.f32 %v1366, %v1863
        %v2031 = vmul.f32 %v1367, %v1867
        %v2032 = vmul.f32 %v1368, %v1871
        %v2033 = vmul.f32 %v1369, %v1875
        %v2034 = vmul.f32 %v1370, %v1879
        %v2035 = vmul.f32 %v1371, %v1883
        %v2036 = vmul.f32 %v1372, %v1887
        %v2037 = vmul.f32 %v1373, %v1891
        %v2038 = vmul.f32 %v1374, %v1895
        %v2039 = vmul.f32 %v1375, %v1899
        %v2040 = vmul.f32 %v1376, %v1903
        %v2041 = vmul.f32 %v1377, %v1907
        %v2042 = vmul.f32 %v1378, %v1911
        %v2043 = vmul.f32 %v1379, %v1915
        %v2044 = vadd.f32 %v1916, %v1917
        %v2045 = vadd.f32 %v2044, %v1918
        %v2046 = vadd.f32 %v2045, %v1919
        %v2047 = vadd.f32 %v2046, %v1920
        %v2048 = vadd.f32 %v2047, %v1921
        %v2049 = vadd.f32 %v2048, %v1922
        %v2050 = vadd.f32 %v2049, %v1923
        %v2051 = vadd.f32 %v2050, %v1924
        %v2052 = vadd.f32 %v2051, %v1925
        %v2053 = vadd.f32 %v2052, %v1926
        %v2054 = vadd.f32 %v2053, %v1927
        %v2055 = vadd.f32 %v2054, %v1928
        %v2056 = vadd.f32 %v2055, %v1929
        %v2057 = vadd.f32 %v2056, %v1930
        %v2058 = vadd.f32 %v2057, %v1931
        %v2059 = vrot.slane %v2058, 4
        %v2060 = vadd.f32 %v2058, %v2059
        %v2061 = vrot.slane %v2060, 2
        %v2062 = vadd.f32 %v2060, %v2061
        %v2063 = vrot.slane %v2062, 1
        %v2064 = vadd.f32 %v2062, %v2063
        %v2065 = vadd.f32 %v1932, %v1933
        %v2066 = vadd.f32 %v2065, %v1934
        %v2067 = vadd.f32 %v2066, %v1935
        %v2068 = vadd.f32 %v2067, %v1936
        %v2069 = vadd.f32 %v2068, %v1937
        %v2070 = vadd.f32 %v2069, %v1938
        %v2071 = vadd.f32 %v2070, %v1939
        %v2072 = vadd.f32 %v2071, %v1940
        %v2073 = vadd.f32 %v2072, %v1941
        %v2074 = vadd.f32 %v2073, %v1942
        %v2075 = vadd.f32 %v2074, %v1943
        %v2076 = vadd.f32 %v2075, %v1944
        %v2077 = vadd.f32 %v2076, %v1945
        %v2078 = vadd.f32 %v2077, %v1946
        %v2079 = vadd.f32 %v2078, %v1947
        %v2080 = vrot.slane %v2079, 4
        %v2081 = vadd.f32 %v2079, %v2080
        %v2082 = vrot.slane %v2081, 2
        %v2083 = vadd.f32 %v2081, %v2082
        %v2084 = vrot.slane %v2083, 1
        %v2085 = vadd.f32 %v2083, %v2084
        %v2086 = vadd.f32 %v1948, %v1949
        %v2087 = vadd.f32 %v2086, %v1950
        %v2088 = vadd.f32 %v2087, %v1951
        %v2089 = vadd.f32 %v2088, %v1952
        %v2090 = vadd.f32 %v2089, %v1953
        %v2091 = vadd.f32 %v2090, %v1954
        %v2092 = vadd.f32 %v2091, %v1955
        %v2093 = vadd.f32 %v2092, %v1956
        %v2094 = vadd.f32 %v2093, %v1957
        %v2095 = vadd.f32 %v2094, %v1958
        %v2096 = vadd.f32 %v2095, %v1959
        %v2097 = vadd.f32 %v2096, %v1960
        %v2098 = vadd.f32 %v2097, %v1961
        %v2099 = vadd.f32 %v2098, %v1962
        %v2100 = vadd.f32 %v2099, %v1963
        %v2101 = vrot.slane %v2100, 4
        %v2102 = vadd.f32 %v2100, %v2101
        %v2103 = vrot.slane %v2102, 2
        %v2104 = vadd.f32 %v2102, %v2103
        %v2105 = vrot.slane %v2104, 1
        %v2106 = vadd.f32 %v2104, %v2105
        %v2107 = vadd.f32 %v1964, %v1965
        %v2108 = vadd.f32 %v2107, %v1966
        %v2109 = vadd.f32 %v2108, %v1967
        %v2110 = vadd.f32 %v2109, %v1968
        %v2111 = vadd.f32 %v2110, %v1969
        %v2112 = vadd.f32 %v2111, %v1970
        %v2113 = vadd.f32 %v2112, %v1971
        %v2114 = vadd.f32 %v2113, %v1972
        %v2115 = vadd.f32 %v2114, %v1973
        %v2116 = vadd.f32 %v2115, %v1974
        %v2117 = vadd.f32 %v2116, %v1975
        %v2118 = vadd.f32 %v2117, %v1976
        %v2119 = vadd.f32 %v2118, %v1977
        %v2120 = vadd.f32 %v2119, %v1978
        %v2121 = vadd.f32 %v2120, %v1979
        %v2122 = vrot.slane %v2121, 4
        %v2123 = vadd.f32 %v2121, %v2122
        %v2124 = vrot.slane %v2123, 2
        %v2125 = vadd.f32 %v2123, %v2124
        %v2126 = vrot.slane %v2125, 1
        %v2127 = vadd.f32 %v2125, %v2126
        %v2128 = vadd.f32 %v1980, %v1981
        %v2129 = vadd.f32 %v2128, %v1982
        %v2130 = vadd.f32 %v2129, %v1983
        %v2131 = vadd.f32 %v2130, %v1984
        %v2132 = vadd.f32 %v2131, %v1985
        %v2133 = vadd.f32 %v2132, %v1986
        %v2134 = vadd.f32 %v2133, %v1987
        %v2135 = vadd.f32 %v2134, %v1988
        %v2136 = vadd.f32 %v2135, %v1989
        %v2137 = vadd.f32 %v2136, %v1990
        %v2138 = vadd.f32 %v2137, %v1991
        %v2139 = vadd.f32 %v2138, %v1992
        %v2140 = vadd.f32 %v2139, %v1993
        %v2141 = vadd.f32 %v2140, %v1994
        %v2142 = vadd.f32 %v2141, %v1995
        %v2143 = vrot.slane %v2142, 4
        %v2144 = vadd.f32 %v2142, %v2143
        %v2145 = vrot.slane %v2144, 2
        %v2146 = vadd.f32 %v2144, %v2145
        %v2147 = vrot.slane %v2146, 1
        %v2148 = vadd.f32 %v2146, %v2147
        %v2149 = vadd.f32 %v1996, %v1997
        %v2150 = vadd.f32 %v2149, %v1998
        %v2151 = vadd.f32 %v2150, %v1999
        %v2152 = vadd.f32 %v2151, %v2000
        %v2153 = vadd.f32 %v2152, %v2001
        %v2154 = vadd.f32 %v2153, %v2002
        %v2155 = vadd.f32 %v2154, %v2003
        %v2156 = vadd.f32 %v2155, %v2004
        %v2157 = vadd.f32 %v2156, %v2005
        %v2158 = vadd.f32 %v2157, %v2006
        %v2159 = vadd.f32 %v2158, %v2007
        %v2160 = vadd.f32 %v2159, %v2008
        %v2161 = vadd.f32 %v2160, %v2009
        %v2162 = vadd.f32 %v2161, %v2010
        %v2163 = vadd.f32 %v2162, %v2011
        %v2164 = vrot.slane %v2163, 4
        %v2165 = vadd.f32 %v2163, %v2164
        %v2166 = vrot.slane %v2165, 2
        %v2167 = vadd.f32 %v2165, %v2166
        %v2168 = vrot.slane %v2167, 1
        %v2169 = vadd.f32 %v2167, %v2168
        %v2170 = vadd.f32 %v2012, %v2013
        %v2171 = vadd.f32 %v2170, %v2014
        %v2172 = vadd.f32 %v2171, %v2015
        %v2173 = vadd.f32 %v2172, %v2016
        %v2174 = vadd.f32 %v2173, %v2017
        %v2175 = vadd.f32 %v2174, %v2018
        %v2176 = vadd.f32 %v2175, %v2019
        %v2177 = vadd.f32 %v2176, %v2020
        %v2178 = vadd.f32 %v2177, %v2021
        %v2179 = vadd.f32 %v2178, %v2022
        %v2180 = vadd.f32 %v2179, %v2023
        %v2181 = vadd.f32 %v2180, %v2024
        %v2182 = vadd.f32 %v2181, %v2025
        %v2183 = vadd.f32 %v2182, %v2026
        %v2184 = vadd.f32 %v2183, %v2027
        %v2185 = vrot.slane %v2184, 4
        %v2186 = vadd.f32 %v2184, %v2185
        %v2187 = vrot.slane %v2186, 2
        %v2188 = vadd.f32 %v2186, %v2187
        %v2189 = vrot.slane %v2188, 1
        %v2190 = vadd.f32 %v2188, %v2189
        %v2191 = vadd.f32 %v2028, %v2029
        %v2192 = vadd.f32 %v2191, %v2030
        %v2193 = vadd.f32 %v2192, %v2031
        %v2194 = vadd.f32 %v2193, %v2032
        %v2195 = vadd.f32 %v2194, %v2033
        %v2196 = vadd.f32 %v2195, %v2034
        %v2197 = vadd.f32 %v2196, %v2035
        %v2198 = vadd.f32 %v2197, %v2036
        %v2199 = vadd.f32 %v2198, %v2037
        %v2200 = vadd.f32 %v2199, %v2038
        %v2201 = vadd.f32 %v2200, %v2039
        %v2202 = vadd.f32 %v2201, %v2040
        %v2203 = vadd.f32 %v2202, %v2041
        %v2204 = vadd.f32 %v2203, %v2042
        %v2205 = vadd.f32 %v2204, %v2043
        %v2206 = vrot.slane %v2205, 4
        %v2207 = vadd.f32 %v2205, %v2206
        %v2208 = vrot.slane %v2207, 2
        %v2209 = vadd.f32 %v2207, %v2208
        %v2210 = vrot.slane %v2209, 1
        %v2211 = vadd.f32 %v2209, %v2210
        %vm2220 = vcmask 1041409
        %v2221 = vsel %vm2220, %v2085, %v2064
        %vm2222 = vcmask 1042434
        %v2223 = vsel %vm2222, %v2106, %v2221
        %vm2224 = vcmask 1043459
        %v2225 = vsel %vm2224, %v2127, %v2223
        %vm2226 = vcmask 1044484
        %v2227 = vsel %vm2226, %v2148, %v2225
        %vm2228 = vcmask 1045509
        %v2229 = vsel %vm2228, %v2169, %v2227
        %vm2230 = vcmask 1046534
        %v2231 = vsel %vm2230, %v2190, %v2229
        %vm2232 = vcmask 1047559
        %v2233 = vsel %vm2232, %v2211, %v2231
        %v2235 = vadd.f32 %v1217, %v2233
        %v2236 = vtanh.pop %v2235
        %v2237 = vmul.f32 %v1223, %v875
        %v2238 = vmul.f32 %v1229, %v2236
        %v2239 = vadd.f32 %v2237, %v2238
        %v2240 = vtanh.pop %v2239
        %v2241 = vmul.f32 %v1235, %v2240
        %v2242 = vld [vmem:[%s6] sm:$0x1]
        %v2244 = vlaneseq
        %v2245 = vshrl.u32 %v2244, 7
        %v2246 = vsub.s32 0, %v2245
        %v2247 = vrot.slane %v2242, %v2246
        %v2249 = vmul.f32 %v2241, %v2247
        %2250 = vadd.xlane.f32.xlu0 %v2249
        %v2251 = vpop.xlane.xlu0 %2250
        %s2252 = sld [smem:[#allocation4]]
        %v2253 = vstv %s2252
        %v2254 = vadd.f32 %v2251, %v2253
        %v2255 = vtanh.pop %v2254
        %v2256 = vld [vmem:[%s7] sm:$0x1]
        %v2258 = vlaneseq
        %v2259 = vshrl.u32 %v2258, 7
        %v2260 = vsub.s32 0, %v2259
        %v2261 = vrot.slane %v2256, %v2260
        %v2263 = vmul.f32 %v2255, %v2261
        %v2264 = vld [vmem:[%s8] sm:$0x1]
        %v2266 = vlaneseq
        %v2267 = vshrl.u32 %v2266, 7
        %v2268 = vsub.s32 0, %v2267
        %v2269 = vrot.slane %v2264, %v2268
        %v2271 = vadd.f32 %v2263, %v2269
        %v2272 = vsub.f32 1.0, %v2271
        %v2273 = vmul.f32 %v2271, %v2236
        %v2275 = vcombine.high %v2272, %v2272
        %v2277 = vunpack.c.l.s4 1966171168
        %v2278 = vunpack.c.0.s8 %v2277
        %v2279 = vlaneseq
        %v2280 = vshrl.u32 %v2279, 7
        %v2281 = vsub.s32 %v2278, %v2280
        %v2282 = vrot.slane %v2272, %v2281
        %v2284 = vunpack.c.l.s4 1966171168
        %v2285 = vunpack.c.0.s8 %v2284
        %v2286 = vlaneseq
        %v2287 = vshrl.u32 %v2286, 7
        %v2288 = vsub.s32 %v2285, %v2287
        %v2289 = vrot.slane %v2275, %v2288
        %v2290 = vcombine.high %v2282, %v2282
        %v2291 = vcombine.high %v2289, %v2289
        %v2293 = vunpack.c.l.s4 1966171168
        %v2294 = vunpack.c.0.s8 %v2293
        %v2295 = vlaneseq
        %v2296 = vshrl.u32 %v2295, 7
        %v2297 = vsub.s32 %v2294, %v2296
        %v2298 = vrot.slane %v2282, %v2297
        %v2300 = vunpack.c.l.s4 1966171168
        %v2301 = vunpack.c.0.s8 %v2300
        %v2302 = vlaneseq
        %v2303 = vshrl.u32 %v2302, 7
        %v2304 = vsub.s32 %v2301, %v2303
        %v2305 = vrot.slane %v2289, %v2304
        %v2307 = vunpack.c.l.s4 1966171168
        %v2308 = vunpack.c.0.s8 %v2307
        %v2309 = vlaneseq
        %v2310 = vshrl.u32 %v2309, 7
        %v2311 = vsub.s32 %v2308, %v2310
        %v2312 = vrot.slane %v2290, %v2311
        %v2314 = vunpack.c.l.s4 1966171168
        %v2315 = vunpack.c.0.s8 %v2314
        %v2316 = vlaneseq
        %v2317 = vshrl.u32 %v2316, 7
        %v2318 = vsub.s32 %v2315, %v2317
        %v2319 = vrot.slane %v2291, %v2318
        %v2320 = vcombine.high %v2298, %v2298
        %v2321 = vcombine.high %v2305, %v2305
        %v2322 = vcombine.high %v2312, %v2312
        %v2323 = vcombine.high %v2319, %v2319
        %v2324 = vlaneseq
        %v2325 = vshrl.u32 %v2324, 7
        %v2326 = vsub.s32 0, %v2325
        %v2327 = vrot.slane %v2298, %v2326
        %v2328 = vlaneseq
        %v2329 = vshrl.u32 %v2328, 7
        %v2330 = vsub.s32 0, %v2329
        %v2331 = vrot.slane %v2312, %v2330
        %v2332 = vlaneseq
        %v2333 = vshrl.u32 %v2332, 7
        %v2334 = vsub.s32 0, %v2333
        %v2335 = vrot.slane %v2320, %v2334
        %v2336 = vlaneseq
        %v2337 = vshrl.u32 %v2336, 7
        %v2338 = vsub.s32 0, %v2337
        %v2339 = vrot.slane %v2322, %v2338
        %v2340 = vlaneseq
        %v2341 = vshrl.u32 %v2340, 7
        %v2342 = vsub.s32 0, %v2341
        %v2343 = vrot.slane %v2305, %v2342
        %v2344 = vlaneseq
        %v2345 = vshrl.u32 %v2344, 7
        %v2346 = vsub.s32 0, %v2345
        %v2347 = vrot.slane %v2319, %v2346
        %v2348 = vlaneseq
        %v2349 = vshrl.u32 %v2348, 7
        %v2350 = vsub.s32 0, %v2349
        %v2351 = vrot.slane %v2321, %v2350
        %v2352 = vlaneseq
        %v2353 = vshrl.u32 %v2352, 7
        %v2354 = vsub.s32 0, %v2353
        %v2355 = vrot.slane %v2323, %v2354
        %v2364 = vmul.f32 %v2327, %v876
        %v2365 = vmul.f32 %v2327, %v877
        %v2366 = vmul.f32 %v2327, %v878
        %v2367 = vmul.f32 %v2327, %v879
        %v2368 = vmul.f32 %v2327, %v880
        %v2369 = vmul.f32 %v2327, %v881
        %v2370 = vmul.f32 %v2327, %v882
        %v2371 = vmul.f32 %v2327, %v883
        %v2372 = vmul.f32 %v2327, %v884
        %v2373 = vmul.f32 %v2327, %v885
        %v2374 = vmul.f32 %v2327, %v886
        %v2375 = vmul.f32 %v2327, %v887
        %v2376 = vmul.f32 %v2327, %v888
        %v2377 = vmul.f32 %v2327, %v889
        %v2378 = vmul.f32 %v2327, %v890
        %v2379 = vmul.f32 %v2327, %v891
        %v2380 = vmul.f32 %v2331, %v892
        %v2381 = vmul.f32 %v2331, %v893
        %v2382 = vmul.f32 %v2331, %v894
        %v2383 = vmul.f32 %v2331, %v895
        %v2384 = vmul.f32 %v2331, %v896
        %v2385 = vmul.f32 %v2331, %v897
        %v2386 = vmul.f32 %v2331, %v898
        %v2387 = vmul.f32 %v2331, %v899
        %v2388 = vmul.f32 %v2331, %v900
        %v2389 = vmul.f32 %v2331, %v901
        %v2390 = vmul.f32 %v2331, %v902
        %v2391 = vmul.f32 %v2331, %v903
        %v2392 = vmul.f32 %v2331, %v904
        %v2393 = vmul.f32 %v2331, %v905
        %v2394 = vmul.f32 %v2331, %v906
        %v2395 = vmul.f32 %v2331, %v907
        %v2396 = vmul.f32 %v2335, %v908
        %v2397 = vmul.f32 %v2335, %v909
        %v2398 = vmul.f32 %v2335, %v910
        %v2399 = vmul.f32 %v2335, %v911
        %v2400 = vmul.f32 %v2335, %v912
        %v2401 = vmul.f32 %v2335, %v913
        %v2402 = vmul.f32 %v2335, %v914
        %v2403 = vmul.f32 %v2335, %v915
        %v2404 = vmul.f32 %v2335, %v916
        %v2405 = vmul.f32 %v2335, %v917
        %v2406 = vmul.f32 %v2335, %v918
        %v2407 = vmul.f32 %v2335, %v919
        %v2408 = vmul.f32 %v2335, %v920
        %v2409 = vmul.f32 %v2335, %v921
        %v2410 = vmul.f32 %v2335, %v922
        %v2411 = vmul.f32 %v2335, %v923
        %v2412 = vmul.f32 %v2339, %v924
        %v2413 = vmul.f32 %v2339, %v925
        %v2414 = vmul.f32 %v2339, %v926
        %v2415 = vmul.f32 %v2339, %v927
        %v2416 = vmul.f32 %v2339, %v928
        %v2417 = vmul.f32 %v2339, %v929
        %v2418 = vmul.f32 %v2339, %v930
        %v2419 = vmul.f32 %v2339, %v931
        %v2420 = vmul.f32 %v2339, %v932
        %v2421 = vmul.f32 %v2339, %v933
        %v2422 = vmul.f32 %v2339, %v934
        %v2423 = vmul.f32 %v2339, %v935
        %v2424 = vmul.f32 %v2339, %v936
        %v2425 = vmul.f32 %v2339, %v937
        %v2426 = vmul.f32 %v2339, %v938
        %v2427 = vmul.f32 %v2339, %v939
        %v2428 = vmul.f32 %v2343, %v940
        %v2429 = vmul.f32 %v2343, %v941
        %v2430 = vmul.f32 %v2343, %v942
        %v2431 = vmul.f32 %v2343, %v943
        %v2432 = vmul.f32 %v2343, %v944
        %v2433 = vmul.f32 %v2343, %v945
        %v2434 = vmul.f32 %v2343, %v946
        %v2435 = vmul.f32 %v2343, %v947
        %v2436 = vmul.f32 %v2343, %v948
        %v2437 = vmul.f32 %v2343, %v949
        %v2438 = vmul.f32 %v2343, %v950
        %v2439 = vmul.f32 %v2343, %v951
        %v2440 = vmul.f32 %v2343, %v952
        %v2441 = vmul.f32 %v2343, %v953
        %v2442 = vmul.f32 %v2343, %v954
        %v2443 = vmul.f32 %v2343, %v955
        %v2444 = vmul.f32 %v2347, %v956
        %v2445 = vmul.f32 %v2347, %v957
        %v2446 = vmul.f32 %v2347, %v958
        %v2447 = vmul.f32 %v2347, %v959
        %v2448 = vmul.f32 %v2347, %v960
        %v2449 = vmul.f32 %v2347, %v961
        %v2450 = vmul.f32 %v2347, %v962
        %v2451 = vmul.f32 %v2347, %v963
        %v2452 = vmul.f32 %v2347, %v964
        %v2453 = vmul.f32 %v2347, %v965
        %v2454 = vmul.f32 %v2347, %v966
        %v2455 = vmul.f32 %v2347, %v967
        %v2456 = vmul.f32 %v2347, %v968
        %v2457 = vmul.f32 %v2347, %v969
        %v2458 = vmul.f32 %v2347, %v970
        %v2459 = vmul.f32 %v2347, %v971
        %v2460 = vmul.f32 %v2351, %v972
        %v2461 = vmul.f32 %v2351, %v973
        %v2462 = vmul.f32 %v2351, %v974
        %v2463 = vmul.f32 %v2351, %v975
        %v2464 = vmul.f32 %v2351, %v976
        %v2465 = vmul.f32 %v2351, %v977
        %v2466 = vmul.f32 %v2351, %v978
        %v2467 = vmul.f32 %v2351, %v979
        %v2468 = vmul.f32 %v2351, %v980
        %v2469 = vmul.f32 %v2351, %v981
        %v2470 = vmul.f32 %v2351, %v982
        %v2471 = vmul.f32 %v2351, %v983
        %v2472 = vmul.f32 %v2351, %v984
        %v2473 = vmul.f32 %v2351, %v985
        %v2474 = vmul.f32 %v2351, %v986
        %v2475 = vmul.f32 %v2351, %v987
        %v2476 = vmul.f32 %v2355, %v988
        %v2477 = vmul.f32 %v2355, %v989
        %v2478 = vmul.f32 %v2355, %v990
        %v2479 = vmul.f32 %v2355, %v991
        %v2480 = vmul.f32 %v2355, %v992
        %v2481 = vmul.f32 %v2355, %v993
        %v2482 = vmul.f32 %v2355, %v994
        %v2483 = vmul.f32 %v2355, %v995
        %v2484 = vmul.f32 %v2355, %v996
        %v2485 = vmul.f32 %v2355, %v997
        %v2486 = vmul.f32 %v2355, %v998
        %v2487 = vmul.f32 %v2355, %v999
        %v2488 = vmul.f32 %v2355, %v1000
        %v2489 = vmul.f32 %v2355, %v1001
        %v2490 = vmul.f32 %v2355, %v1002
        %v2491 = vmul.f32 %v2355, %v1003
        %v2493 = vcombine.high %v2273, %v2273
        %v2495 = vunpack.c.l.s4 1966171168
        %v2496 = vunpack.c.0.s8 %v2495
        %v2497 = vlaneseq
        %v2498 = vshrl.u32 %v2497, 7
        %v2499 = vsub.s32 %v2496, %v2498
        %v2500 = vrot.slane %v2273, %v2499
        %v2502 = vunpack.c.l.s4 1966171168
        %v2503 = vunpack.c.0.s8 %v2502
        %v2504 = vlaneseq
        %v2505 = vshrl.u32 %v2504, 7
        %v2506 = vsub.s32 %v2503, %v2505
        %v2507 = vrot.slane %v2493, %v2506
        %v2508 = vcombine.high %v2500, %v2500
        %v2509 = vcombine.high %v2507, %v2507
        %v2511 = vunpack.c.l.s4 1966171168
        %v2512 = vunpack.c.0.s8 %v2511
        %v2513 = vlaneseq
        %v2514 = vshrl.u32 %v2513, 7
        %v2515 = vsub.s32 %v2512, %v2514
        %v2516 = vrot.slane %v2500, %v2515
        %v2518 = vunpack.c.l.s4 1966171168
        %v2519 = vunpack.c.0.s8 %v2518
        %v2520 = vlaneseq
        %v2521 = vshrl.u32 %v2520, 7
        %v2522 = vsub.s32 %v2519, %v2521
        %v2523 = vrot.slane %v2507, %v2522
        %v2525 = vunpack.c.l.s4 1966171168
        %v2526 = vunpack.c.0.s8 %v2525
        %v2527 = vlaneseq
        %v2528 = vshrl.u32 %v2527, 7
        %v2529 = vsub.s32 %v2526, %v2528
        %v2530 = vrot.slane %v2508, %v2529
        %v2532 = vunpack.c.l.s4 1966171168
        %v2533 = vunpack.c.0.s8 %v2532
        %v2534 = vlaneseq
        %v2535 = vshrl.u32 %v2534, 7
        %v2536 = vsub.s32 %v2533, %v2535
        %v2537 = vrot.slane %v2509, %v2536
        %v2538 = vcombine.high %v2516, %v2516
        %v2539 = vcombine.high %v2523, %v2523
        %v2540 = vcombine.high %v2530, %v2530
        %v2541 = vcombine.high %v2537, %v2537
        %v2542 = vlaneseq
        %v2543 = vshrl.u32 %v2542, 7
        %v2544 = vsub.s32 0, %v2543
        %v2545 = vrot.slane %v2516, %v2544
        %v2546 = vlaneseq
        %v2547 = vshrl.u32 %v2546, 7
        %v2548 = vsub.s32 0, %v2547
        %v2549 = vrot.slane %v2530, %v2548
        %v2550 = vlaneseq
        %v2551 = vshrl.u32 %v2550, 7
        %v2552 = vsub.s32 0, %v2551
        %v2553 = vrot.slane %v2538, %v2552
        %v2554 = vlaneseq
        %v2555 = vshrl.u32 %v2554, 7
        %v2556 = vsub.s32 0, %v2555
        %v2557 = vrot.slane %v2540, %v2556
        %v2558 = vlaneseq
        %v2559 = vshrl.u32 %v2558, 7
        %v2560 = vsub.s32 0, %v2559
        %v2561 = vrot.slane %v2523, %v2560
        %v2562 = vlaneseq
        %v2563 = vshrl.u32 %v2562, 7
        %v2564 = vsub.s32 0, %v2563
        %v2565 = vrot.slane %v2537, %v2564
        %v2566 = vlaneseq
        %v2567 = vshrl.u32 %v2566, 7
        %v2568 = vsub.s32 0, %v2567
        %v2569 = vrot.slane %v2539, %v2568
        %v2570 = vlaneseq
        %v2571 = vshrl.u32 %v2570, 7
        %v2572 = vsub.s32 0, %v2571
        %v2573 = vrot.slane %v2541, %v2572
        %v2582 = vmul.f32 %v1386, %v2545
        %v2583 = vmul.f32 %v1390, %v2545
        %v2584 = vmul.f32 %v1394, %v2545
        %v2585 = vmul.f32 %v1398, %v2545
        %v2586 = vmul.f32 %v1402, %v2545
        %v2587 = vmul.f32 %v1406, %v2545
        %v2588 = vmul.f32 %v1410, %v2545
        %v2589 = vmul.f32 %v1414, %v2545
        %v2590 = vmul.f32 %v1418, %v2545
        %v2591 = vmul.f32 %v1422, %v2545
        %v2592 = vmul.f32 %v1426, %v2545
        %v2593 = vmul.f32 %v1430, %v2545
        %v2594 = vmul.f32 %v1434, %v2545
        %v2595 = vmul.f32 %v1438, %v2545
        %v2596 = vmul.f32 %v1442, %v2545
        %v2597 = vmul.f32 %v1446, %v2545
        %v2598 = vmul.f32 %v1453, %v2549
        %v2599 = vmul.f32 %v1457, %v2549
        %v2600 = vmul.f32 %v1461, %v2549
        %v2601 = vmul.f32 %v1465, %v2549
        %v2602 = vmul.f32 %v1469, %v2549
        %v2603 = vmul.f32 %v1473, %v2549
        %v2604 = vmul.f32 %v1477, %v2549
        %v2605 = vmul.f32 %v1481, %v2549
        %v2606 = vmul.f32 %v1485, %v2549
        %v2607 = vmul.f32 %v1489, %v2549
        %v2608 = vmul.f32 %v1493, %v2549
        %v2609 = vmul.f32 %v1497, %v2549
        %v2610 = vmul.f32 %v1501, %v2549
        %v2611 = vmul.f32 %v1505, %v2549
        %v2612 = vmul.f32 %v1509, %v2549
        %v2613 = vmul.f32 %v1513, %v2549
        %v2614 = vmul.f32 %v1520, %v2553
        %v2615 = vmul.f32 %v1524, %v2553
        %v2616 = vmul.f32 %v1528, %v2553
        %v2617 = vmul.f32 %v1532, %v2553
        %v2618 = vmul.f32 %v1536, %v2553
        %v2619 = vmul.f32 %v1540, %v2553
        %v2620 = vmul.f32 %v1544, %v2553
        %v2621 = vmul.f32 %v1548, %v2553
        %v2622 = vmul.f32 %v1552, %v2553
        %v2623 = vmul.f32 %v1556, %v2553
        %v2624 = vmul.f32 %v1560, %v2553
        %v2625 = vmul.f32 %v1564, %v2553
        %v2626 = vmul.f32 %v1568, %v2553
        %v2627 = vmul.f32 %v1572, %v2553
        %v2628 = vmul.f32 %v1576, %v2553
        %v2629 = vmul.f32 %v1580, %v2553
        %v2630 = vmul.f32 %v1587, %v2557
        %v2631 = vmul.f32 %v1591, %v2557
        %v2632 = vmul.f32 %v1595, %v2557
        %v2633 = vmul.f32 %v1599, %v2557
        %v2634 = vmul.f32 %v1603, %v2557
        %v2635 = vmul.f32 %v1607, %v2557
        %v2636 = vmul.f32 %v1611, %v2557
        %v2637 = vmul.f32 %v1615, %v2557
        %v2638 = vmul.f32 %v1619, %v2557
        %v2639 = vmul.f32 %v1623, %v2557
        %v2640 = vmul.f32 %v1627, %v2557
        %v2641 = vmul.f32 %v1631, %v2557
        %v2642 = vmul.f32 %v1635, %v2557
        %v2643 = vmul.f32 %v1639, %v2557
        %v2644 = vmul.f32 %v1643, %v2557
        %v2645 = vmul.f32 %v1647, %v2557
        %v2646 = vmul.f32 %v1654, %v2561
        %v2647 = vmul.f32 %v1658, %v2561
        %v2648 = vmul.f32 %v1662, %v2561
        %v2649 = vmul.f32 %v1666, %v2561
        %v2650 = vmul.f32 %v1670, %v2561
        %v2651 = vmul.f32 %v1674, %v2561
        %v2652 = vmul.f32 %v1678, %v2561
        %v2653 = vmul.f32 %v1682, %v2561
        %v2654 = vmul.f32 %v1686, %v2561
        %v2655 = vmul.f32 %v1690, %v2561
        %v2656 = vmul.f32 %v1694, %v2561
        %v2657 = vmul.f32 %v1698, %v2561
        %v2658 = vmul.f32 %v1702, %v2561
        %v2659 = vmul.f32 %v1706, %v2561
        %v2660 = vmul.f32 %v1710, %v2561
        %v2661 = vmul.f32 %v1714, %v2561
        %v2662 = vmul.f32 %v1721, %v2565
        %v2663 = vmul.f32 %v1725, %v2565
        %v2664 = vmul.f32 %v1729, %v2565
        %v2665 = vmul.f32 %v1733, %v2565
        %v2666 = vmul.f32 %v1737, %v2565
        %v2667 = vmul.f32 %v1741, %v2565
        %v2668 = vmul.f32 %v1745, %v2565
        %v2669 = vmul.f32 %v1749, %v2565
        %v2670 = vmul.f32 %v1753, %v2565
        %v2671 = vmul.f32 %v1757, %v2565
        %v2672 = vmul.f32 %v1761, %v2565
        %v2673 = vmul.f32 %v1765, %v2565
        %v2674 = vmul.f32 %v1769, %v2565
        %v2675 = vmul.f32 %v1773, %v2565
        %v2676 = vmul.f32 %v1777, %v2565
        %v2677 = vmul.f32 %v1781, %v2565
        %v2678 = vmul.f32 %v1788, %v2569
        %v2679 = vmul.f32 %v1792, %v2569
        %v2680 = vmul.f32 %v1796, %v2569
        %v2681 = vmul.f32 %v1800, %v2569
        %v2682 = vmul.f32 %v1804, %v2569
        %v2683 = vmul.f32 %v1808, %v2569
        %v2684 = vmul.f32 %v1812, %v2569
        %v2685 = vmul.f32 %v1816, %v2569
        %v2686 = vmul.f32 %v1820, %v2569
        %v2687 = vmul.f32 %v1824, %v2569
        %v2688 = vmul.f32 %v1828, %v2569
        %v2689 = vmul.f32 %v1832, %v2569
        %v2690 = vmul.f32 %v1836, %v2569
        %v2691 = vmul.f32 %v1840, %v2569
        %v2692 = vmul.f32 %v1844, %v2569
        %v2693 = vmul.f32 %v1848, %v2569
        %v2694 = vmul.f32 %v1855, %v2573
        %v2695 = vmul.f32 %v1859, %v2573
        %v2696 = vmul.f32 %v1863, %v2573
        %v2697 = vmul.f32 %v1867, %v2573
        %v2698 = vmul.f32 %v1871, %v2573
        %v2699 = vmul.f32 %v1875, %v2573
        %v2700 = vmul.f32 %v1879, %v2573
        %v2701 = vmul.f32 %v1883, %v2573
        %v2702 = vmul.f32 %v1887, %v2573
        %v2703 = vmul.f32 %v1891, %v2573
        %v2704 = vmul.f32 %v1895, %v2573
        %v2705 = vmul.f32 %v1899, %v2573
        %v2706 = vmul.f32 %v1903, %v2573
        %v2707 = vmul.f32 %v1907, %v2573
        %v2708 = vmul.f32 %v1911, %v2573
        %v2709 = vmul.f32 %v1915, %v2573
        %v2710 = vadd.f32 %v2364, %v2582
        %v2711 = vadd.f32 %v2365, %v2583
        %v2712 = vadd.f32 %v2366, %v2584
        %v2713 = vadd.f32 %v2367, %v2585
        %v2714 = vadd.f32 %v2368, %v2586
        %v2715 = vadd.f32 %v2369, %v2587
        %v2716 = vadd.f32 %v2370, %v2588
        %v2717 = vadd.f32 %v2371, %v2589
        %v2718 = vadd.f32 %v2372, %v2590
        %v2719 = vadd.f32 %v2373, %v2591
        %v2720 = vadd.f32 %v2374, %v2592
        %v2721 = vadd.f32 %v2375, %v2593
        %v2722 = vadd.f32 %v2376, %v2594
        %v2723 = vadd.f32 %v2377, %v2595
        %v2724 = vadd.f32 %v2378, %v2596
        %v2725 = vadd.f32 %v2379, %v2597
        %v2726 = vadd.f32 %v2380, %v2598
        %v2727 = vadd.f32 %v2381, %v2599
        %v2728 = vadd.f32 %v2382, %v2600
        %v2729 = vadd.f32 %v2383, %v2601
        %v2730 = vadd.f32 %v2384, %v2602
        %v2731 = vadd.f32 %v2385, %v2603
        %v2732 = vadd.f32 %v2386, %v2604
        %v2733 = vadd.f32 %v2387, %v2605
        %v2734 = vadd.f32 %v2388, %v2606
        %v2735 = vadd.f32 %v2389, %v2607
        %v2736 = vadd.f32 %v2390, %v2608
        %v2737 = vadd.f32 %v2391, %v2609
        %v2738 = vadd.f32 %v2392, %v2610
        %v2739 = vadd.f32 %v2393, %v2611
        %v2740 = vadd.f32 %v2394, %v2612
        %v2741 = vadd.f32 %v2395, %v2613
        %v2742 = vadd.f32 %v2396, %v2614
        %v2743 = vadd.f32 %v2397, %v2615
        %v2744 = vadd.f32 %v2398, %v2616
        %v2745 = vadd.f32 %v2399, %v2617
        %v2746 = vadd.f32 %v2400, %v2618
        %v2747 = vadd.f32 %v2401, %v2619
        %v2748 = vadd.f32 %v2402, %v2620
        %v2749 = vadd.f32 %v2403, %v2621
        %v2750 = vadd.f32 %v2404, %v2622
        %v2751 = vadd.f32 %v2405, %v2623
        %v2752 = vadd.f32 %v2406, %v2624
        %v2753 = vadd.f32 %v2407, %v2625
        %v2754 = vadd.f32 %v2408, %v2626
        %v2755 = vadd.f32 %v2409, %v2627
        %v2756 = vadd.f32 %v2410, %v2628
        %v2757 = vadd.f32 %v2411, %v2629
        %v2758 = vadd.f32 %v2412, %v2630
        %v2759 = vadd.f32 %v2413, %v2631
        %v2760 = vadd.f32 %v2414, %v2632
        %v2761 = vadd.f32 %v2415, %v2633
        %v2762 = vadd.f32 %v2416, %v2634
        %v2763 = vadd.f32 %v2417, %v2635
        %v2764 = vadd.f32 %v2418, %v2636
        %v2765 = vadd.f32 %v2419, %v2637
        %v2766 = vadd.f32 %v2420, %v2638
        %v2767 = vadd.f32 %v2421, %v2639
        %v2768 = vadd.f32 %v2422, %v2640
        %v2769 = vadd.f32 %v2423, %v2641
        %v2770 = vadd.f32 %v2424, %v2642
        %v2771 = vadd.f32 %v2425, %v2643
        %v2772 = vadd.f32 %v2426, %v2644
        %v2773 = vadd.f32 %v2427, %v2645
        %v2774 = vadd.f32 %v2428, %v2646
        %v2775 = vadd.f32 %v2429, %v2647
        %v2776 = vadd.f32 %v2430, %v2648
        %v2777 = vadd.f32 %v2431, %v2649
        %v2778 = vadd.f32 %v2432, %v2650
        %v2779 = vadd.f32 %v2433, %v2651
        %v2780 = vadd.f32 %v2434, %v2652
        %v2781 = vadd.f32 %v2435, %v2653
        %v2782 = vadd.f32 %v2436, %v2654
        %v2783 = vadd.f32 %v2437, %v2655
        %v2784 = vadd.f32 %v2438, %v2656
        %v2785 = vadd.f32 %v2439, %v2657
        %v2786 = vadd.f32 %v2440, %v2658
        %v2787 = vadd.f32 %v2441, %v2659
        %v2788 = vadd.f32 %v2442, %v2660
        %v2789 = vadd.f32 %v2443, %v2661
        %v2790 = vadd.f32 %v2444, %v2662
        %v2791 = vadd.f32 %v2445, %v2663
        %v2792 = vadd.f32 %v2446, %v2664
        %v2793 = vadd.f32 %v2447, %v2665
        %v2794 = vadd.f32 %v2448, %v2666
        %v2795 = vadd.f32 %v2449, %v2667
        %v2796 = vadd.f32 %v2450, %v2668
        %v2797 = vadd.f32 %v2451, %v2669
        %v2798 = vadd.f32 %v2452, %v2670
        %v2799 = vadd.f32 %v2453, %v2671
        %v2800 = vadd.f32 %v2454, %v2672
        %v2801 = vadd.f32 %v2455, %v2673
        %v2802 = vadd.f32 %v2456, %v2674
        %v2803 = vadd.f32 %v2457, %v2675
        %v2804 = vadd.f32 %v2458, %v2676
        %v2805 = vadd.f32 %v2459, %v2677
        %v2806 = vadd.f32 %v2460, %v2678
        %v2807 = vadd.f32 %v2461, %v2679
        %v2808 = vadd.f32 %v2462, %v2680
        %v2809 = vadd.f32 %v2463, %v2681
        %v2810 = vadd.f32 %v2464, %v2682
        %v2811 = vadd.f32 %v2465, %v2683
        %v2812 = vadd.f32 %v2466, %v2684
        %v2813 = vadd.f32 %v2467, %v2685
        %v2814 = vadd.f32 %v2468, %v2686
        %v2815 = vadd.f32 %v2469, %v2687
        %v2816 = vadd.f32 %v2470, %v2688
        %v2817 = vadd.f32 %v2471, %v2689
        %v2818 = vadd.f32 %v2472, %v2690
        %v2819 = vadd.f32 %v2473, %v2691
        %v2820 = vadd.f32 %v2474, %v2692
        %v2821 = vadd.f32 %v2475, %v2693
        %v2822 = vadd.f32 %v2476, %v2694
        %v2823 = vadd.f32 %v2477, %v2695
        %v2824 = vadd.f32 %v2478, %v2696
        %v2825 = vadd.f32 %v2479, %v2697
        %v2826 = vadd.f32 %v2480, %v2698
        %v2827 = vadd.f32 %v2481, %v2699
        %v2828 = vadd.f32 %v2482, %v2700
        %v2829 = vadd.f32 %v2483, %v2701
        %v2830 = vadd.f32 %v2484, %v2702
        %v2831 = vadd.f32 %v2485, %v2703
        %v2832 = vadd.f32 %v2486, %v2704
        %v2833 = vadd.f32 %v2487, %v2705
        %v2834 = vadd.f32 %v2488, %v2706
        %v2835 = vadd.f32 %v2489, %v2707
        %v2836 = vadd.f32 %v2490, %v2708
        %v2837 = vadd.f32 %v2491, %v2709
        %2838 = vst [vmem:[%s607] sm:$0xff] %v2710
        %2839 = vst [vmem:[%s607 + $0x8] sm:$0xff] %v2711
        %2840 = vst [vmem:[%s607 + $0x10] sm:$0xff] %v2712
        %2841 = vst [vmem:[%s607 + $0x18] sm:$0xff] %v2713
        %2842 = vst [vmem:[%s607 + $0x20] sm:$0xff] %v2714
        %2843 = vst [vmem:[%s607 + $0x28] sm:$0xff] %v2715
        %2844 = vst [vmem:[%s607 + $0x30] sm:$0xff] %v2716
        %2845 = vst [vmem:[%s607 + $0x38] sm:$0xff] %v2717
        %2846 = vst [vmem:[%s607 + $0x40] sm:$0xff] %v2718
        %2847 = vst [vmem:[%s607 + $0x48] sm:$0xff] %v2719
        %2848 = vst [vmem:[%s607 + $0x50] sm:$0xff] %v2720
        %2849 = vst [vmem:[%s607 + $0x58] sm:$0xff] %v2721
        %2850 = vst [vmem:[%s607 + $0x60] sm:$0xff] %v2722
        %2851 = vst [vmem:[%s607 + $0x68] sm:$0xff] %v2723
        %2852 = vst [vmem:[%s607 + $0x70] sm:$0xff] %v2724
        %2853 = vst [vmem:[%s607 + $0x78] sm:$0xff] %v2725
        %2854 = vst [vmem:[%s607 + $0x80] sm:$0xff] %v2726
        %2855 = vst [vmem:[%s607 + $0x88] sm:$0xff] %v2727
        %2856 = vst [vmem:[%s607 + $0x90] sm:$0xff] %v2728
        %2857 = vst [vmem:[%s607 + $0x98] sm:$0xff] %v2729
        %2858 = vst [vmem:[%s607 + $0xa0] sm:$0xff] %v2730
        %2859 = vst [vmem:[%s607 + $0xa8] sm:$0xff] %v2731
        %2860 = vst [vmem:[%s607 + $0xb0] sm:$0xff] %v2732
        %2861 = vst [vmem:[%s607 + $0xb8] sm:$0xff] %v2733
        %2862 = vst [vmem:[%s607 + $0xc0] sm:$0xff] %v2734
        %2863 = vst [vmem:[%s607 + $0xc8] sm:$0xff] %v2735
        %2864 = vst [vmem:[%s607 + $0xd0] sm:$0xff] %v2736
        %2865 = vst [vmem:[%s607 + $0xd8] sm:$0xff] %v2737
        %2866 = vst [vmem:[%s607 + $0xe0] sm:$0xff] %v2738
        %2867 = vst [vmem:[%s607 + $0xe8] sm:$0xff] %v2739
        %2868 = vst [vmem:[%s607 + $0xf0] sm:$0xff] %v2740
        %2869 = vst [vmem:[%s607 + $0xf8] sm:$0xff] %v2741
        %2870 = vst [vmem:[%s607 + $0x100] sm:$0xff] %v2742
        %2871 = vst [vmem:[%s607 + $0x108] sm:$0xff] %v2743
        %2872 = vst [vmem:[%s607 + $0x110] sm:$0xff] %v2744
        %2873 = vst [vmem:[%s607 + $0x118] sm:$0xff] %v2745
        %2874 = vst [vmem:[%s607 + $0x120] sm:$0xff] %v2746
        %2875 = vst [vmem:[%s607 + $0x128] sm:$0xff] %v2747
        %2876 = vst [vmem:[%s607 + $0x130] sm:$0xff] %v2748
        %2877 = vst [vmem:[%s607 + $0x138] sm:$0xff] %v2749
        %2878 = vst [vmem:[%s607 + $0x140] sm:$0xff] %v2750
        %2879 = vst [vmem:[%s607 + $0x148] sm:$0xff] %v2751
        %2880 = vst [vmem:[%s607 + $0x150] sm:$0xff] %v2752
        %2881 = vst [vmem:[%s607 + $0x158] sm:$0xff] %v2753
        %2882 = vst [vmem:[%s607 + $0x160] sm:$0xff] %v2754
        %2883 = vst [vmem:[%s607 + $0x168] sm:$0xff] %v2755
        %2884 = vst [vmem:[%s607 + $0x170] sm:$0xff] %v2756
        %2885 = vst [vmem:[%s607 + $0x178] sm:$0xff] %v2757
        %2886 = vst [vmem:[%s607 + $0x180] sm:$0xff] %v2758
        %2887 = vst [vmem:[%s607 + $0x188] sm:$0xff] %v2759
        %2888 = vst [vmem:[%s607 + $0x190] sm:$0xff] %v2760
        %2889 = vst [vmem:[%s607 + $0x198] sm:$0xff] %v2761
        %2890 = vst [vmem:[%s607 + $0x1a0] sm:$0xff] %v2762
        %2891 = vst [vmem:[%s607 + $0x1a8] sm:$0xff] %v2763
        %2892 = vst [vmem:[%s607 + $0x1b0] sm:$0xff] %v2764
        %2893 = vst [vmem:[%s607 + $0x1b8] sm:$0xff] %v2765
        %2894 = vst [vmem:[%s607 + $0x1c0] sm:$0xff] %v2766
        %2895 = vst [vmem:[%s607 + $0x1c8] sm:$0xff] %v2767
        %2896 = vst [vmem:[%s607 + $0x1d0] sm:$0xff] %v2768
        %2897 = vst [vmem:[%s607 + $0x1d8] sm:$0xff] %v2769
        %2898 = vst [vmem:[%s607 + $0x1e0] sm:$0xff] %v2770
        %2899 = vst [vmem:[%s607 + $0x1e8] sm:$0xff] %v2771
        %2900 = vst [vmem:[%s607 + $0x1f0] sm:$0xff] %v2772
        %2901 = vst [vmem:[%s607 + $0x1f8] sm:$0xff] %v2773
        %2902 = vst [vmem:[%s607 + $0x200] sm:$0xff] %v2774
        %2903 = vst [vmem:[%s607 + $0x208] sm:$0xff] %v2775
        %2904 = vst [vmem:[%s607 + $0x210] sm:$0xff] %v2776
        %2905 = vst [vmem:[%s607 + $0x218] sm:$0xff] %v2777
        %2906 = vst [vmem:[%s607 + $0x220] sm:$0xff] %v2778
        %2907 = vst [vmem:[%s607 + $0x228] sm:$0xff] %v2779
        %2908 = vst [vmem:[%s607 + $0x230] sm:$0xff] %v2780
        %2909 = vst [vmem:[%s607 + $0x238] sm:$0xff] %v2781
        %2910 = vst [vmem:[%s607 + $0x240] sm:$0xff] %v2782
        %2911 = vst [vmem:[%s607 + $0x248] sm:$0xff] %v2783
        %2912 = vst [vmem:[%s607 + $0x250] sm:$0xff] %v2784
        %2913 = vst [vmem:[%s607 + $0x258] sm:$0xff] %v2785
        %2914 = vst [vmem:[%s607 + $0x260] sm:$0xff] %v2786
        %2915 = vst [vmem:[%s607 + $0x268] sm:$0xff] %v2787
        %2916 = vst [vmem:[%s607 + $0x270] sm:$0xff] %v2788
        %2917 = vst [vmem:[%s607 + $0x278] sm:$0xff] %v2789
        %2918 = vst [vmem:[%s607 + $0x280] sm:$0xff] %v2790
        %2919 = vst [vmem:[%s607 + $0x288] sm:$0xff] %v2791
        %2920 = vst [vmem:[%s607 + $0x290] sm:$0xff] %v2792
        %2921 = vst [vmem:[%s607 + $0x298] sm:$0xff] %v2793
        %2922 = vst [vmem:[%s607 + $0x2a0] sm:$0xff] %v2794
        %2923 = vst [vmem:[%s607 + $0x2a8] sm:$0xff] %v2795
        %2924 = vst [vmem:[%s607 + $0x2b0] sm:$0xff] %v2796
        %2925 = vst [vmem:[%s607 + $0x2b8] sm:$0xff] %v2797
        %2926 = vst [vmem:[%s607 + $0x2c0] sm:$0xff] %v2798
        %2927 = vst [vmem:[%s607 + $0x2c8] sm:$0xff] %v2799
        %2928 = vst [vmem:[%s607 + $0x2d0] sm:$0xff] %v2800
        %2929 = vst [vmem:[%s607 + $0x2d8] sm:$0xff] %v2801
        %2930 = vst [vmem:[%s607 + $0x2e0] sm:$0xff] %v2802
        %2931 = vst [vmem:[%s607 + $0x2e8] sm:$0xff] %v2803
        %2932 = vst [vmem:[%s607 + $0x2f0] sm:$0xff] %v2804
        %2933 = vst [vmem:[%s607 + $0x2f8] sm:$0xff] %v2805
        %2934 = vst [vmem:[%s607 + $0x300] sm:$0xff] %v2806
        %2935 = vst [vmem:[%s607 + $0x308] sm:$0xff] %v2807
        %2936 = vst [vmem:[%s607 + $0x310] sm:$0xff] %v2808
        %2937 = vst [vmem:[%s607 + $0x318] sm:$0xff] %v2809
        %2938 = vst [vmem:[%s607 + $0x320] sm:$0xff] %v2810
        %2939 = vst [vmem:[%s607 + $0x328] sm:$0xff] %v2811
        %2940 = vst [vmem:[%s607 + $0x330] sm:$0xff] %v2812
        %2941 = vst [vmem:[%s607 + $0x338] sm:$0xff] %v2813
        %2942 = vst [vmem:[%s607 + $0x340] sm:$0xff] %v2814
        %2943 = vst [vmem:[%s607 + $0x348] sm:$0xff] %v2815
        %2944 = vst [vmem:[%s607 + $0x350] sm:$0xff] %v2816
        %2945 = vst [vmem:[%s607 + $0x358] sm:$0xff] %v2817
        %2946 = vst [vmem:[%s607 + $0x360] sm:$0xff] %v2818
        %2947 = vst [vmem:[%s607 + $0x368] sm:$0xff] %v2819
        %2948 = vst [vmem:[%s607 + $0x370] sm:$0xff] %v2820
        %2949 = vst [vmem:[%s607 + $0x378] sm:$0xff] %v2821
        %2950 = vst [vmem:[%s607 + $0x380] sm:$0xff] %v2822
        %2951 = vst [vmem:[%s607 + $0x388] sm:$0xff] %v2823
        %2952 = vst [vmem:[%s607 + $0x390] sm:$0xff] %v2824
        %2953 = vst [vmem:[%s607 + $0x398] sm:$0xff] %v2825
        %2954 = vst [vmem:[%s607 + $0x3a0] sm:$0xff] %v2826
        %2955 = vst [vmem:[%s607 + $0x3a8] sm:$0xff] %v2827
        %2956 = vst [vmem:[%s607 + $0x3b0] sm:$0xff] %v2828
        %2957 = vst [vmem:[%s607 + $0x3b8] sm:$0xff] %v2829
        %2958 = vst [vmem:[%s607 + $0x3c0] sm:$0xff] %v2830
        %2959 = vst [vmem:[%s607 + $0x3c8] sm:$0xff] %v2831
        %2960 = vst [vmem:[%s607 + $0x3d0] sm:$0xff] %v2832
        %2961 = vst [vmem:[%s607 + $0x3d8] sm:$0xff] %v2833
        %2962 = vst [vmem:[%s607 + $0x3e0] sm:$0xff] %v2834
        %2963 = vst [vmem:[%s607 + $0x3e8] sm:$0xff] %v2835
        %2964 = vst [vmem:[%s607 + $0x3f0] sm:$0xff] %v2836
        %2965 = vst [vmem:[%s607 + $0x3f8] sm:$0xff] %v2837
        %2966 = vst [vmem:[#allocation2] sm:$0xff] %v2241
        %2967 = vst [vmem:[#allocation3] sm:$0xff] %v2239
        %2968 = vst [vmem:[%s593] sm:$0xff] %v2241
        %2969 = vst [vmem:[%s600] sm:$0xff] %v2239
        %s2970 = sand.u32 %s295, 1
        %s2971 = scalar_lea.sflag [#allocation7], %s2970
        %s2972 = sand.u32 %s295, 1
        %s2973 = smul.addr %s2972, 8
        %s2974 = scalar_lea.vmem [#allocation16], %s2973
        %s2975 = sand.u32 %s41, 1
        %s2976 = scalar_lea.sflag [#allocation18], %s2975
        %s2977 = sand.u32 %s321, 1
        %s2978 = smul.addr %s2977, 8
        %s2979 = scalar_lea.vmem [#allocation17], %s2978
        %s2980 = sand.u32 %s41, 1
        %s2981 = scalar_lea.sflag [#allocation18], %s2980
        %s2982 = sand.u32 %s347, 1
        %s2983 = smul.addr %s2982, 1024
        %s2984 = scalar_lea.vmem [#allocation19], %s2983
        // Predicated region
        $region89: #{tpu_custom_call.1} parent=59 // pred_check
          %p2985 = pneg %p305
        $region90: #{tpu_custom_call.1} parent=59 // pred_check_branch
          %2987 = sbr.rel (%p2985) target = $region92
        $region91: #{tpu_custom_call.1} parent=59 // pred_region
          %s2989 = ssub.s32 128, 128
          %2990 = vsyncadd %s2971, %s2989
          %s2991 = smul.addr %s46, 2
          %s2992 = sadd.s32 %s45, %s2991
          %s2993 = smul.addr %s2992, 128
          %s2994 = scalar_lea.hbm %s10, %s2993
          %s2996 = sshll.u32 %s2974, 4
          %s2997 = int_to_ptr.vmem [resolvable:$true] %s2996
          %2999 = dma.vmem_to_hbm [thread:$0]  %s2997, 128, %s2994, %s2971
        $region92: #{tpu_custom_call.1} parent=59 // pred_fallthru
          _
        // Predicated region
        $region93: #{tpu_custom_call.1} parent=59 // pred_check
          %p3000 = pneg %p331
        $region94: #{tpu_custom_call.1} parent=59 // pred_check_branch
          %3002 = sbr.rel (%p3000) target = $region96
        $region95: #{tpu_custom_call.1} parent=59 // pred_region
          %s3004 = ssub.s32 128, 128
          %3005 = vsyncadd %s2976, %s3004
          %s3006 = smul.addr %s45, 128
          %s3007 = scalar_lea.hbm %s11, %s3006
          %s3009 = sshll.u32 %s2979, 4
          %s3010 = int_to_ptr.vmem [resolvable:$true] %s3009
          %3012 = dma.vmem_to_hbm [thread:$0]  %s3010, 128, %s3007, %s2976
        $region96: #{tpu_custom_call.1} parent=59 // pred_fallthru
          _
        // Predicated region
        $region97: #{tpu_custom_call.1} parent=59 // pred_check
          %p3013 = pneg %p357
        $region98: #{tpu_custom_call.1} parent=59 // pred_check_branch
          %3015 = sbr.rel (%p3013) target = $region100
        $region99: #{tpu_custom_call.1} parent=59 // pred_region
          %s3016 = smul.u32 8, %s45
          %s3018 = ssub.s32 16384, 16384
          %3019 = vsyncadd %s2981, %s3018
          %s3020 = smul.addr %s3016, 16
          %s3021 = smul.addr %s3020, 128
          %s3022 = scalar_lea.hbm %s12, %s3021
          %s3023 = sshll.u32 %s2984, 4
          %s3024 = int_to_ptr.vmem [resolvable:$true] %s3023
          %3029 = dma.vmem_to_hbm [thread:$0]  %s3024, 16384, %s3022, %s2981, 128, 128, 8
        $region100: #{tpu_custom_call.1} parent=59 // pred_fallthru
          _
      $region60: #{tpu_custom_call.1} parent=5 // pred_fallthru
        _
      %p3030 = scmp.le.s32.totalorder 2, %s36
      // Predicated region
      $region101: #{tpu_custom_call.1} parent=5 // pred_check
        %p3031 = pneg %p3030
      $region102: #{tpu_custom_call.1} parent=5 // pred_check_branch
        %3033 = sbr.rel (%p3031) target = $region104
      $region103: #{tpu_custom_call.1} parent=5 // pred_region
        %s3034 = ssub.s32 %s36, 2
        // Predicated region
        $region105: #{tpu_custom_call.1} parent=103 // pred_check
          %p3035 = pneg %p311
        $region106: #{tpu_custom_call.1} parent=103 // pred_check_branch
          %3037 = sbr.rel (%p3035) target = $region108
        $region107: #{tpu_custom_call.1} parent=103 // pred_region
          %s3038 = sand.u32 %s296, 1
          %s3039 = scalar_lea.sflag [#allocation7], %s3038
          %s3040 = sand.u32 %s296, 1
          %s3041 = smul.addr %s3040, 8
          %s3042 = scalar_lea.vmem [#allocation16], %s3041
          %3043 = dma.done %s3039, 128
        $region108: #{tpu_custom_call.1} parent=103 // pred_fallthru
          _
        // Predicated region
        $region109: #{tpu_custom_call.1} parent=103 // pred_check
          %p3044 = pneg %p337
        $region110: #{tpu_custom_call.1} parent=103 // pred_check_branch
          %3046 = sbr.rel (%p3044) target = $region112
        $region111: #{tpu_custom_call.1} parent=103 // pred_region
          %s3047 = sand.u32 %s42, 1
          %s3048 = scalar_lea.sflag [#allocation18], %s3047
          %s3049 = sand.u32 %s322, 1
          %s3050 = smul.addr %s3049, 8
          %s3051 = scalar_lea.vmem [#allocation17], %s3050
          %3052 = dma.done %s3048, 128
        $region112: #{tpu_custom_call.1} parent=103 // pred_fallthru
          _
        // Predicated region
        $region113: #{tpu_custom_call.1} parent=103 // pred_check
          %p3053 = pneg %p363
        $region114: #{tpu_custom_call.1} parent=103 // pred_check_branch
          %3055 = sbr.rel (%p3053) target = $region116
        $region115: #{tpu_custom_call.1} parent=103 // pred_region
          %s3056 = sand.u32 %s42, 1
          %s3057 = scalar_lea.sflag [#allocation18], %s3056
          %s3058 = sand.u32 %s348, 1
          %s3059 = smul.addr %s3058, 1024
          %s3060 = scalar_lea.vmem [#allocation19], %s3059
          %3061 = dma.done %s3057, 16384
        $region116: #{tpu_custom_call.1} parent=103 // pred_fallthru
          _
      $region104: #{tpu_custom_call.1} parent=5 // pred_fallthru
        _
    $region6: #{tpu_custom_call.1} parent=1 // loop_footer
      %s40 = sadd.s32 1, %s36
    $region7: #{tpu_custom_call.1} parent=1 // loop_footer_branch
      %35 = sbr.rel target = $region3
    $region8: #{tpu_custom_call.1} parent=1 // loop_exit
      _
    %3062 = vsyncpa [#allocation6], 1
    %s3063 = scalar_lea.sflag [#allocation6], 1
    %3064 = vsyncpa %s3063, 1
    %3065 = vsyncpa [#allocation9], 1
    %s3066 = scalar_lea.sflag [#allocation9], 1
    %3067 = vsyncpa %s3066, 1
    %3068 = vsyncpa [#allocation12], 1
    %s3069 = scalar_lea.sflag [#allocation12], 1
    %3070 = vsyncpa %s3069, 1
    %3071 = vsyncpa [#allocation15], 1
    %3072 = vsyncpa [#allocation7], 1
    %s3073 = scalar_lea.sflag [#allocation7], 1
    %3074 = vsyncpa %s3073, 1
    %3075 = vsyncpa [#allocation18], 1
    %s3076 = scalar_lea.sflag [#allocation18], 1
    %3077 = vsyncpa %s3076, 1

</llo_original>
